<compile_context>
chip_gen: v5e
topology: v5e:2x2
jax: 0.10.0
libtpu: 0.0.40
codegen_flags: <defaults>
</compile_context>

<pallas_src>
import functools
import numpy as np
import jax
import jax.numpy as jnp
from jax.experimental import pallas as pl
from jax.experimental.pallas import tpu as pltpu


def _round_up(x, m):
    return ((x + m - 1) // m) * m


# ----------------------------------------------------------------------------
# Kernel 1: fused encoder-head + resize + BatchNorm1d + fused input-to-hidden
# matmul + statically unrolled GRU recurrence.
# Emits all T+1 hidden states as one lane/sublane-dense ((T+1)*P, H) bf16 slab.
# ----------------------------------------------------------------------------
def encoder_gru_kernel(b_real,                      # static: real batch size (BN stats)
                       pooled_ref,                  # VMEM (P, C_pad) f32  (avg-pooled image)
                       w_head_ref, b_head_ref,      # (C_pad, F) bf16 / (1, F) f32
                       w_rs_ref, b_rs_ref,          # (F, E) bf16 / (1, E) f32
                       gamma_ref, beta_ref,         # (1, E) f32
                       xemb_ref,                    # VMEM (T*P, E) bf16 (time-major, padded)
                       w_ih_ref, b_ih_ref,          # (E, 3H) bf16 / (1, 3H) f32
                       w_hh_ref, b_hh_ref,          # (H, 3H) bf16 / (1, 3H) f32
                       h_all_ref,                   # out VMEM ((T+1)*P, H) bf16
                       x_all):                      # scratch VMEM ((T+1)*P, E) bf16
    P = pooled_ref.shape[0]
    H = w_hh_ref.shape[0]
    steps = h_all_ref.shape[0] // P                 # T + 1

    # ---- encoder: AdaptiveAvgPool2d((1,1)) was folded into the pooled input;
    #      the 1x1-conv head commutes with the pool -> plain matmul here.
    feats = (jnp.dot(pooled_ref[...].astype(jnp.bfloat16), w_head_ref[...],
                     preferred_element_type=jnp.float32) + b_head_ref[...])     # (P, F)

    # ---- decoder.resize + BatchNorm1d (training: biased batch stats, eps=1e-5)
    #      Stats use only the b_real real rows (padding rows masked out).
    f = (jnp.dot(feats.astype(jnp.bfloat16), w_rs_ref[...],
                 preferred_element_type=jnp.float32) + b_rs_ref[...])           # (P, E)
    row = jax.lax.broadcasted_iota(jnp.int32, (P, 1), 0)
    mask = (row < b_real).astype(jnp.float32)
    mean = jnp.sum(f * mask, axis=0, keepdims=True) / b_real
    var = jnp.sum(((f - mean) * mask) ** 2, axis=0, keepdims=True) / b_real
    f_hat = (f - mean) * jax.lax.rsqrt(var + 1e-5) * gamma_ref[...] + beta_ref[...]

    # ---- ONE fused input-to-hidden matmul covering all T+1 timesteps:
    #      rows [0:P) = BN'd image features, rows [P:) = caption embeddings.
    x_all[0:P, :] = f_hat.astype(x_all.dtype)
    x_all[P:, :] = xemb_ref[...]
    gi_all = (jnp.dot(x_all[...], w_ih_ref[...],
                      preferred_element_type=jnp.float32) + b_ih_ref[...])      # (steps*P, 3H)

    # ---- GRU recurrence (PyTorch gate order r, z, n; b_hn inside the r* term).
    # Statically unrolled; per-step slices/stores are 8-sublane aligned (P=8),
    # hidden states stream straight to h_all_ref so only `h` stays live.
    # TODO(synk): W_hh could stay MXU-resident via matmul_push_rhs/acc_lhs/pop.
    h = jnp.zeros((P, H), jnp.float32)
    for t in range(steps):
        gi = gi_all[t * P:(t + 1) * P, :]
        gh = (jnp.dot(h.astype(jnp.bfloat16), w_hh_ref[...],
                      preferred_element_type=jnp.float32) + b_hh_ref[...])      # (P, 3H)
        r = jax.nn.sigmoid(gi[:, 0:H] + gh[:, 0:H])
        z = jax.nn.sigmoid(gi[:, H:2 * H] + gh[:, H:2 * H])
        n = jnp.tanh(gi[:, 2 * H:3 * H] + r * gh[:, 2 * H:3 * H])
        h = (1.0 - z) * n + z * h
        # TODO(synk): nn.Dropout(0.5, train) on GRU outputs is stochastic; identity here.
        h_all_ref[t * P:(t + 1) * P, :] = h.astype(h_all_ref.dtype)


# ----------------------------------------------------------------------------
# Kernel 2: fc projection, tiled over the (padded) vocab axis, parallel grid.
# ----------------------------------------------------------------------------
def fc_vocab_tile_kernel(h_ref, w_fc_ref, b_fc_ref, o_ref):
    # h_ref: (N_pad, H) bf16 ; w_fc tile: (H, TV) bf16 ; b_fc tile: (1, TV) f32
    o_ref[...] = (jnp.dot(h_ref[...], w_fc_ref[...],
                          preferred_element_type=jnp.float32) + b_fc_ref[...])


# ----------------------------------------------------------------------------
# Host wrapper
# ----------------------------------------------------------------------------
def seq2seq_forward(img, captions, lengths, params):
    B, C, Hi, Wi = img.shape
    E = params["w_resize"].shape[1]
    H = params["w_hh"].shape[0]
    V = params["w_fc"].shape[1]
    T = captions.shape[1]

    P = _round_up(B, 8)                 # sublane-padded per-step row count
    C_pad = _round_up(C, 8)
    steps = T + 1
    N_pad = steps * P                   # sublane-aligned M for both kernels

    # --- host-side prep (plain XLA, cheap): global average pool, padding, and
    #     one coalesced embedding gather (replaces T*B tiny in-kernel row DMAs).
    pooled = jnp.mean(img.reshape(B, C, Hi * Wi).astype(jnp.float32), axis=2)   # (B, C)
    pooled = jnp.pad(pooled, ((0, P - B), (0, C_pad - C)))                      # (P, C_pad)
    w_head = jnp.pad(params["w_head"], ((0, C_pad - C), (0, 0)))                # (C_pad, F)

    idx = jnp.clip(captions.astype(jnp.int32), 0, V - 1)   # nn.Embedding would raise on OOB
    emb = jnp.take(params["embed"], idx, axis=0)            # (B, T, E)
    emb = jnp.transpose(emb, (1, 0, 2))                      # time-major (T, B, E)
    emb = jnp.pad(emb, ((0, 0), (0, P - B), (0, 0)))
    emb = emb.reshape(T * P, E).astype(jnp.bfloat16)         # (T*P, E) bf16 slab

    vmem = pl.BlockSpec(memory_space=pltpu.MemorySpace.VMEM)
    h_all = pl.pallas_call(
        functools.partial(encoder_gru_kernel, B),
        out_shape=jax.ShapeDtypeStruct((N_pad, H), jnp.bfloat16),
        in_specs=[vmem] * 12,
        out_specs=vmem,
        scratch_shapes=[pltpu.VMEM((N_pad, E), jnp.bfloat16)],
        compiler_params=pltpu.CompilerParams(vmem_limit_bytes=32 * 1024 * 1024),
    )(pooled, w_head, params["b_head"],
      params["w_resize"], params["b_resize"], params["bn_gamma"], params["bn_beta"],
      emb,
      params["w_ih"], params["b_ih"], params["w_hh"], params["b_hh"])

    # ---------------- vocab-tiled fc projection ----------------
    V_pad = _round_up(V, 128)
    if V_pad > 1024:
        TV = 1024
        V_pad = _round_up(V_pad, TV)
    else:
        TV = V_pad
    w_fc = jnp.pad(params["w_fc"], ((0, 0), (0, V_pad - V)))
    b_fc = jnp.pad(params["b_fc"], ((0, 0), (0, V_pad - V)))

    logits = pl.pallas_call(
        fc_vocab_tile_kernel,
        out_shape=jax.ShapeDtypeStruct((N_pad, V_pad), jnp.float32),
        grid=(V_pad // TV,),
        in_specs=[pl.BlockSpec((N_pad, H), lambda j: (0, 0)),     # resident across tiles
                  pl.BlockSpec((H, TV), lambda j: (0, j)),
                  pl.BlockSpec((1, TV), lambda j: (0, j))],
        out_specs=pl.BlockSpec((N_pad, TV), lambda j: (0, j)),
        compiler_params=pltpu.CompilerParams(
            dimension_semantics=("parallel",),
            vmem_limit_bytes=48 * 1024 * 1024),      # fits v7x's 64 MiB physical VMEM
    )(h_all, w_fc, b_fc)

    # ---------------- pack_padded_sequence ordering (host glue) ----------------
    lengths = np.asarray(lengths)
    order = np.argsort(-lengths, kind="stable")        # sort by length, descending
    rows = []
    for t in range(int(lengths.max())):
        for b in order:
            if lengths[b] > t:
                rows.append(t * P + int(b))            # time-major flat row index (padded layout)
    packed_logits = logits[jnp.asarray(rows, dtype=jnp.int32)][:, :V]   # (sum(lengths), V)
    return packed_logits


# ----------------------------------------------------------------------------
# Deterministic parameter init (shapes follow DecoderRNNBase; Linear weights
# stored transposed as (in, out) for x @ W).  MXU weights in bf16, biases /
# BN params / embedding table in f32.
# ----------------------------------------------------------------------------
def init_params(key, *, in_channels, features_size, embed_size, hidden_size, vocab_size):
    ks = jax.random.split(key, 10)
    s = 0.05
    bf = jnp.bfloat16
    return {
        # synthetic encoder head (1x1 conv C -> features_size)
        "w_head": (jax.random.normal(ks[0], (in_channels, features_size), jnp.float32) * s).astype(bf),
        "b_head": jax.random.normal(ks[1], (1, features_size), jnp.float32) * s,
        # decoder.resize : Linear(features_size, embed_size)
        "w_resize": (jax.random.normal(ks[2], (features_size, embed_size), jnp.float32) * s).astype(bf),
        "b_resize": jax.random.normal(ks[3], (1, embed_size), jnp.float32) * s,
        # decoder.bn : BatchNorm1d(embed_size)
        "bn_gamma": jnp.ones((1, embed_size), jnp.float32),
        "bn_beta": jnp.zeros((1, embed_size), jnp.float32),
        # decoder.embed : Embedding(vocab_size, embed_size)
        "embed": jax.random.normal(ks[4], (vocab_size, embed_size), jnp.float32) * s,
        # decoder.gru : GRU(embed_size, hidden_size), gates ordered [r, z, n]
        "w_ih": (jax.random.normal(ks[5], (embed_size, 3 * hidden_size), jnp.float32) * s).astype(bf),
        "w_hh": (jax.random.normal(ks[6], (hidden_size, 3 * hidden_size), jnp.float32) * s).astype(bf),
        "b_ih": jax.random.normal(ks[7], (1, 3 * hidden_size), jnp.float32) * s,
        "b_hh": jax.random.normal(ks[8], (1, 3 * hidden_size), jnp.float32) * s,
        # decoder.fc : Linear(hidden_size, vocab_size)
        "w_fc": (jax.random.normal(ks[9], (hidden_size, vocab_size), jnp.float32) * s).astype(bf),
        "b_fc": jnp.zeros((1, vocab_size), jnp.float32),
    }


if __name__ == "__main__":
    # Small, TPU-friendly shapes consistent with the module structure.
    B, C, S = 4, 3, 16          # batch, image channels, spatial side
    T = 8                       # caption length
    FEAT, EMB, HID, VOCAB = 128, 128, 128, 256

    key = jax.random.PRNGKey(0)
    k_img, k_cap, k_par = jax.random.split(key, 3)

    img = jax.random.normal(k_img, (B, C, S, S), jnp.float32)            # NCHW
    captions = jax.random.randint(k_cap, (B, T), 0, VOCAB, jnp.int32)
    lengths = np.array([T + 1, T, T - 2, 3], dtype=np.int32)             # per-sample valid steps

    params = init_params(k_par, in_channels=C, features_size=FEAT,
                         embed_size=EMB, hidden_size=HID, vocab_size=VOCAB)

    out = seq2seq_forward(img, captions, lengths, params)
    out = jax.block_until_ready(out)
    assert out.shape == (int(lengths.sum()), VOCAB), out.shape
    assert bool(jnp.all(jnp.isfinite(out)))
    print("KERNEL_OK")
</pallas_src>

<mosaic_0001>
module attributes {stable_mosaic.version = 11 : i64} {
  func.func @encoder_gru_kernel(%arg0: memref<8x8xf32, #tpu.memory_space<vmem>>, %arg1: memref<8x128xbf16, #tpu.memory_space<vmem>>, %arg2: memref<1x128xf32, #tpu.memory_space<vmem>>, %arg3: memref<128x128xbf16, #tpu.memory_space<vmem>>, %arg4: memref<1x128xf32, #tpu.memory_space<vmem>>, %arg5: memref<1x128xf32, #tpu.memory_space<vmem>>, %arg6: memref<1x128xf32, #tpu.memory_space<vmem>>, %arg7: memref<64x128xbf16, #tpu.memory_space<vmem>>, %arg8: memref<128x384xbf16, #tpu.memory_space<vmem>>, %arg9: memref<1x384xf32, #tpu.memory_space<vmem>>, %arg10: memref<128x384xbf16, #tpu.memory_space<vmem>>, %arg11: memref<1x384xf32, #tpu.memory_space<vmem>>, %arg12: memref<72x128xbf16, #tpu.memory_space<vmem>>, %arg13: memref<72x128xbf16, #tpu.memory_space<vmem>>) attributes {dimension_semantics = [], scalar_prefetch = 0 : i64, scratch_operands = 1 : i64, tpu.core_type = #tpu.core_type<tc>} {
    %c0 = arith.constant 0 : index
    %c0_0 = arith.constant 0 : index
    %0 = vector.load %arg0[%c0, %c0_0] : memref<8x8xf32, #tpu.memory_space<vmem>>, vector<8x8xf32>
    %1 = arith.truncf %0 : vector<8x8xf32> to vector<8x8xbf16>
    %c0_1 = arith.constant 0 : index
    %c0_2 = arith.constant 0 : index
    %2 = vector.load %arg1[%c0_1, %c0_2] : memref<8x128xbf16, #tpu.memory_space<vmem>>, vector<8x128xbf16>
    %cst = arith.constant dense<0.000000e+00> : vector<8x128xf32>
    %3 = tpu.matmul %1, %2, %cst {dimension_numbers = #tpu.dot_dimension_numbers<[1], [0], [0], [1], [0, 0, 1, 1], [], []>} : vector<8x8xbf16>, vector<8x128xbf16>, vector<8x128xf32> -> vector<8x128xf32>
    %c0_3 = arith.constant 0 : index
    %c0_4 = arith.constant 0 : index
    %4 = vector.load %arg2[%c0_3, %c0_4] : memref<1x128xf32, #tpu.memory_space<vmem>>, vector<1x128xf32>
    %5 = vector.broadcast %4 : vector<1x128xf32> to vector<8x128xf32>
    %6 = arith.addf %3, %5 : vector<8x128xf32>
    %7 = arith.truncf %6 : vector<8x128xf32> to vector<8x128xbf16>
    %c0_5 = arith.constant 0 : index
    %c0_6 = arith.constant 0 : index
    %8 = vector.load %arg3[%c0_5, %c0_6] : memref<128x128xbf16, #tpu.memory_space<vmem>>, vector<128x128xbf16>
    %cst_7 = arith.constant dense<0.000000e+00> : vector<8x128xf32>
    %9 = tpu.matmul %7, %8, %cst_7 {dimension_numbers = #tpu.dot_dimension_numbers<[1], [0], [0], [1], [0, 0, 1, 1], [], []>} : vector<8x128xbf16>, vector<128x128xbf16>, vector<8x128xf32> -> vector<8x128xf32>
    %c0_8 = arith.constant 0 : index
    %c0_9 = arith.constant 0 : index
    %10 = vector.load %arg4[%c0_8, %c0_9] : memref<1x128xf32, #tpu.memory_space<vmem>>, vector<1x128xf32>
    %11 = vector.broadcast %10 : vector<1x128xf32> to vector<8x128xf32>
    %12 = arith.addf %9, %11 : vector<8x128xf32>
    %13 = tpu.iota {dimensions = array<i32: 0>} : vector<8x1xi32>
    %c4_i32 = arith.constant 4 : i32
    %14 = vector.broadcast %c4_i32 : i32 to vector<8x1xi32>
    %15 = arith.cmpi slt, %13, %14 : vector<8x1xi32>
    %16 = arith.extui %15 : vector<8x1xi1> to vector<8x1xi32>
    %17 = arith.sitofp %16 : vector<8x1xi32> to vector<8x1xf32>
    %18 = vector.broadcast %17 : vector<8x1xf32> to vector<8x128xf32>
    %19 = arith.mulf %12, %18 : vector<8x128xf32>
    %cst_10 = arith.constant dense<0.000000e+00> : vector<128xf32>
    %20 = vector.multi_reduction <add>, %19, %cst_10 [0] : vector<8x128xf32> to vector<128xf32>
    %21 = vector.shape_cast %20 : vector<128xf32> to vector<1x128xf32>
    %cst_11 = arith.constant 4.000000e+00 : f32
    %22 = vector.broadcast %cst_11 : f32 to vector<1x128xf32>
    %23 = arith.divf %21, %22 : vector<1x128xf32>
    %24 = vector.broadcast %23 : vector<1x128xf32> to vector<8x128xf32>
    %25 = arith.subf %12, %24 : vector<8x128xf32>
    %26 = vector.broadcast %17 : vector<8x1xf32> to vector<8x128xf32>
    %27 = arith.mulf %25, %26 : vector<8x128xf32>
    %28 = arith.mulf %27, %27 : vector<8x128xf32>
    %cst_12 = arith.constant dense<0.000000e+00> : vector<128xf32>
    %29 = vector.multi_reduction <add>, %28, %cst_12 [0] : vector<8x128xf32> to vector<128xf32>
    %30 = vector.shape_cast %29 : vector<128xf32> to vector<1x128xf32>
    %cst_13 = arith.constant 4.000000e+00 : f32
    %31 = vector.broadcast %cst_13 : f32 to vector<1x128xf32>
    %32 = arith.divf %30, %31 : vector<1x128xf32>
    %33 = vector.broadcast %23 : vector<1x128xf32> to vector<8x128xf32>
    %34 = arith.subf %12, %33 : vector<8x128xf32>
    %cst_14 = arith.constant 9.99999974E-6 : f32
    %35 = vector.broadcast %cst_14 : f32 to vector<1x128xf32>
    %36 = arith.addf %32, %35 : vector<1x128xf32>
    %37 = math.rsqrt %36 : vector<1x128xf32>
    %38 = vector.broadcast %37 : vector<1x128xf32> to vector<8x128xf32>
    %39 = arith.mulf %34, %38 : vector<8x128xf32>
    %c0_15 = arith.constant 0 : index
    %c0_16 = arith.constant 0 : index
    %40 = vector.load %arg5[%c0_15, %c0_16] : memref<1x128xf32, #tpu.memory_space<vmem>>, vector<1x128xf32>
    %41 = vector.broadcast %40 : vector<1x128xf32> to vector<8x128xf32>
    %42 = arith.mulf %39, %41 : vector<8x128xf32>
    %c0_17 = arith.constant 0 : index
    %c0_18 = arith.constant 0 : index
    %43 = vector.load %arg6[%c0_17, %c0_18] : memref<1x128xf32, #tpu.memory_space<vmem>>, vector<1x128xf32>
    %44 = vector.broadcast %43 : vector<1x128xf32> to vector<8x128xf32>
    %45 = arith.addf %42, %44 : vector<8x128xf32>
    %46 = arith.truncf %45 : vector<8x128xf32> to vector<8x128xbf16>
    %c0_19 = arith.constant 0 : index
    %c0_20 = arith.constant 0 : index
    %47 = vector.load %arg13[%c0_19, %c0_20] : memref<72x128xbf16, #tpu.memory_space<vmem>>, vector<8x128xbf16>
    tpu.vector_store %arg13[%c0_19, %c0_20], %46 {strides = array<i32>} : memref<72x128xbf16, #tpu.memory_space<vmem>>, vector<8x128xbf16>,
    %c0_21 = arith.constant 0 : index
    %c0_22 = arith.constant 0 : index
    %48 = vector.load %arg7[%c0_21, %c0_22] : memref<64x128xbf16, #tpu.memory_space<vmem>>, vector<64x128xbf16>
    %c8 = arith.constant 8 : index
    %c0_23 = arith.constant 0 : index
    %49 = vector.load %arg13[%c8, %c0_23] : memref<72x128xbf16, #tpu.memory_space<vmem>>, vector<64x128xbf16>
    tpu.vector_store %arg13[%c8, %c0_23], %48 {strides = array<i32>} : memref<72x128xbf16, #tpu.memory_space<vmem>>, vector<64x128xbf16>,
    %c0_24 = arith.constant 0 : index
    %c0_25 = arith.constant 0 : index
    %50 = vector.load %arg13[%c0_24, %c0_25] : memref<72x128xbf16, #tpu.memory_space<vmem>>, vector<72x128xbf16>
    %c0_26 = arith.constant 0 : index
    %c0_27 = arith.constant 0 : index
    %51 = vector.load %arg8[%c0_26, %c0_27] : memref<128x384xbf16, #tpu.memory_space<vmem>>, vector<128x384xbf16>
    %cst_28 = arith.constant dense<0.000000e+00> : vector<72x384xf32>
    %52 = tpu.matmul %50, %51, %cst_28 {dimension_numbers = #tpu.dot_dimension_numbers<[1], [0], [0], [1], [0, 0, 1, 1], [], []>} : vector<72x128xbf16>, vector<128x384xbf16>, vector<72x384xf32> -> vector<72x384xf32>
    %c0_29 = arith.constant 0 : index
    %c0_30 = arith.constant 0 : index
    %53 = vector.load %arg9[%c0_29, %c0_30] : memref<1x384xf32, #tpu.memory_space<vmem>>, vector<1x384xf32>
    %54 = vector.broadcast %53 : vector<1x384xf32> to vector<72x384xf32>
    %55 = arith.addf %52, %54 : vector<72x384xf32>
    %cst_31 = arith.constant 0.000000e+00 : f32
    %56 = vector.broadcast %cst_31 : f32 to vector<8x128xf32>
    %57 = vector.extract_strided_slice %55 {offsets = [0, 0], sizes = [8, 384], strides = [1, 1]} : vector<72x384xf32> to vector<8x384xf32>
    %58 = arith.truncf %56 : vector<8x128xf32> to vector<8x128xbf16>
    %c0_32 = arith.constant 0 : index
    %c0_33 = arith.constant 0 : index
    %59 = vector.load %arg10[%c0_32, %c0_33] : memref<128x384xbf16, #tpu.memory_space<vmem>>, vector<128x384xbf16>
    %cst_34 = arith.constant dense<0.000000e+00> : vector<8x384xf32>
    %60 = tpu.matmul %58, %59, %cst_34 {dimension_numbers = #tpu.dot_dimension_numbers<[1], [0], [0], [1], [0, 0, 1, 1], [], []>} : vector<8x128xbf16>, vector<128x384xbf16>, vector<8x384xf32> -> vector<8x384xf32>
    %c0_35 = arith.constant 0 : index
    %c0_36 = arith.constant 0 : index
    %61 = vector.load %arg11[%c0_35, %c0_36] : memref<1x384xf32, #tpu.memory_space<vmem>>, vector<1x384xf32>
    %62 = vector.broadcast %61 : vector<1x384xf32> to vector<8x384xf32>
    %63 = arith.addf %60, %62 : vector<8x384xf32>
    %64 = vector.extract_strided_slice %57 {offsets = [0, 0], sizes = [8, 128], strides = [1, 1]} : vector<8x384xf32> to vector<8x128xf32>
    %65 = vector.extract_strided_slice %63 {offsets = [0, 0], sizes = [8, 128], strides = [1, 1]} : vector<8x384xf32> to vector<8x128xf32>
    %66 = arith.addf %64, %65 : vector<8x128xf32>
    %67 = arith.negf %66 : vector<8x128xf32>
    %68 = math.exp %67 : vector<8x128xf32>
    %cst_37 = arith.constant 1.000000e+00 : f32
    %69 = vector.broadcast %cst_37 : f32 to vector<8x128xf32>
    %70 = arith.addf %69, %68 : vector<8x128xf32>
    %71 = arith.divf %69, %70 : vector<8x128xf32>
    %72 = vector.extract_strided_slice %57 {offsets = [0, 128], sizes = [8, 128], strides = [1, 1]} : vector<8x384xf32> to vector<8x128xf32>
    %73 = vector.extract_strided_slice %63 {offsets = [0, 128], sizes = [8, 128], strides = [1, 1]} : vector<8x384xf32> to vector<8x128xf32>
    %74 = arith.addf %72, %73 : vector<8x128xf32>
    %75 = arith.negf %74 : vector<8x128xf32>
    %76 = math.exp %75 : vector<8x128xf32>
    %cst_38 = arith.constant 1.000000e+00 : f32
    %77 = vector.broadcast %cst_38 : f32 to vector<8x128xf32>
    %78 = arith.addf %77, %76 : vector<8x128xf32>
    %79 = arith.divf %77, %78 : vector<8x128xf32>
    %80 = vector.extract_strided_slice %57 {offsets = [0, 256], sizes = [8, 128], strides = [1, 1]} : vector<8x384xf32> to vector<8x128xf32>
    %81 = vector.extract_strided_slice %63 {offsets = [0, 256], sizes = [8, 128], strides = [1, 1]} : vector<8x384xf32> to vector<8x128xf32>
    %82 = arith.mulf %71, %81 : vector<8x128xf32>
    %83 = arith.addf %80, %82 : vector<8x128xf32>
    %84 = math.tanh %83 : vector<8x128xf32>
    %cst_39 = arith.constant 1.000000e+00 : f32
    %85 = vector.broadcast %cst_39 : f32 to vector<8x128xf32>
    %86 = arith.subf %85, %79 : vector<8x128xf32>
    %87 = arith.mulf %86, %84 : vector<8x128xf32>
    %88 = arith.mulf %79, %56 : vector<8x128xf32>
    %89 = arith.addf %87, %88 : vector<8x128xf32>
    %90 = arith.truncf %89 : vector<8x128xf32> to vector<8x128xbf16>
    %c0_40 = arith.constant 0 : index
    %c0_41 = arith.constant 0 : index
    %91 = vector.load %arg12[%c0_40, %c0_41] : memref<72x128xbf16, #tpu.memory_space<vmem>>, vector<8x128xbf16>
    tpu.vector_store %arg12[%c0_40, %c0_41], %90 {strides = array<i32>} : memref<72x128xbf16, #tpu.memory_space<vmem>>, vector<8x128xbf16>,
    %92 = vector.extract_strided_slice %55 {offsets = [8, 0], sizes = [8, 384], strides = [1, 1]} : vector<72x384xf32> to vector<8x384xf32>
    %93 = arith.truncf %89 : vector<8x128xf32> to vector<8x128xbf16>
    %c0_42 = arith.constant 0 : index
    %c0_43 = arith.constant 0 : index
    %94 = vector.load %arg10[%c0_42, %c0_43] : memref<128x384xbf16, #tpu.memory_space<vmem>>, vector<128x384xbf16>
    %cst_44 = arith.constant dense<0.000000e+00> : vector<8x384xf32>
    %95 = tpu.matmul %93, %94, %cst_44 {dimension_numbers = #tpu.dot_dimension_numbers<[1], [0], [0], [1], [0, 0, 1, 1], [], []>} : vector<8x128xbf16>, vector<128x384xbf16>, vector<8x384xf32> -> vector<8x384xf32>
    %c0_45 = arith.constant 0 : index
    %c0_46 = arith.constant 0 : index
    %96 = vector.load %arg11[%c0_45, %c0_46] : memref<1x384xf32, #tpu.memory_space<vmem>>, vector<1x384xf32>
    %97 = vector.broadcast %96 : vector<1x384xf32> to vector<8x384xf32>
    %98 = arith.addf %95, %97 : vector<8x384xf32>
    %99 = vector.extract_strided_slice %92 {offsets = [0, 0], sizes = [8, 128], strides = [1, 1]} : vector<8x384xf32> to vector<8x128xf32>
    %100 = vector.extract_strided_slice %98 {offsets = [0, 0], sizes = [8, 128], strides = [1, 1]} : vector<8x384xf32> to vector<8x128xf32>
    %101 = arith.addf %99, %100 : vector<8x128xf32>
    %102 = arith.negf %101 : vector<8x128xf32>
    %103 = math.exp %102 : vector<8x128xf32>
    %cst_47 = arith.constant 1.000000e+00 : f32
    %104 = vector.broadcast %cst_47 : f32 to vector<8x128xf32>
    %105 = arith.addf %104, %103 : vector<8x128xf32>
    %106 = arith.divf %104, %105 : vector<8x128xf32>
    %107 = vector.extract_strided_slice %92 {offsets = [0, 128], sizes = [8, 128], strides = [1, 1]} : vector<8x384xf32> to vector<8x128xf32>
    %108 = vector.extract_strided_slice %98 {offsets = [0, 128], sizes = [8, 128], strides = [1, 1]} : vector<8x384xf32> to vector<8x128xf32>
    %109 = arith.addf %107, %108 : vector<8x128xf32>
    %110 = arith.negf %109 : vector<8x128xf32>
    %111 = math.exp %110 : vector<8x128xf32>
    %cst_48 = arith.constant 1.000000e+00 : f32
    %112 = vector.broadcast %cst_48 : f32 to vector<8x128xf32>
    %113 = arith.addf %112, %111 : vector<8x128xf32>
    %114 = arith.divf %112, %113 : vector<8x128xf32>
    %115 = vector.extract_strided_slice %92 {offsets = [0, 256], sizes = [8, 128], strides = [1, 1]} : vector<8x384xf32> to vector<8x128xf32>
    %116 = vector.extract_strided_slice %98 {offsets = [0, 256], sizes = [8, 128], strides = [1, 1]} : vector<8x384xf32> to vector<8x128xf32>
    %117 = arith.mulf %106, %116 : vector<8x128xf32>
    %118 = arith.addf %115, %117 : vector<8x128xf32>
    %119 = math.tanh %118 : vector<8x128xf32>
    %cst_49 = arith.constant 1.000000e+00 : f32
    %120 = vector.broadcast %cst_49 : f32 to vector<8x128xf32>
    %121 = arith.subf %120, %114 : vector<8x128xf32>
    %122 = arith.mulf %121, %119 : vector<8x128xf32>
    %123 = arith.mulf %114, %89 : vector<8x128xf32>
    %124 = arith.addf %122, %123 : vector<8x128xf32>
    %125 = arith.truncf %124 : vector<8x128xf32> to vector<8x128xbf16>
    %c8_50 = arith.constant 8 : index
    %c0_51 = arith.constant 0 : index
    %126 = vector.load %arg12[%c8_50, %c0_51] : memref<72x128xbf16, #tpu.memory_space<vmem>>, vector<8x128xbf16>
    tpu.vector_store %arg12[%c8_50, %c0_51], %125 {strides = array<i32>} : memref<72x128xbf16, #tpu.memory_space<vmem>>, vector<8x128xbf16>,
    %127 = vector.extract_strided_slice %55 {offsets = [16, 0], sizes = [8, 384], strides = [1, 1]} : vector<72x384xf32> to vector<8x384xf32>
    %128 = arith.truncf %124 : vector<8x128xf32> to vector<8x128xbf16>
    %c0_52 = arith.constant 0 : index
    %c0_53 = arith.constant 0 : index
    %129 = vector.load %arg10[%c0_52, %c0_53] : memref<128x384xbf16, #tpu.memory_space<vmem>>, vector<128x384xbf16>
    %cst_54 = arith.constant dense<0.000000e+00> : vector<8x384xf32>
    %130 = tpu.matmul %128, %129, %cst_54 {dimension_numbers = #tpu.dot_dimension_numbers<[1], [0], [0], [1], [0, 0, 1, 1], [], []>} : vector<8x128xbf16>, vector<128x384xbf16>, vector<8x384xf32> -> vector<8x384xf32>
    %c0_55 = arith.constant 0 : index
    %c0_56 = arith.constant 0 : index
    %131 = vector.load %arg11[%c0_55, %c0_56] : memref<1x384xf32, #tpu.memory_space<vmem>>, vector<1x384xf32>
    %132 = vector.broadcast %131 : vector<1x384xf32> to vector<8x384xf32>
    %133 = arith.addf %130, %132 : vector<8x384xf32>
    %134 = vector.extract_strided_slice %127 {offsets = [0, 0], sizes = [8, 128], strides = [1, 1]} : vector<8x384xf32> to vector<8x128xf32>
    %135 = vector.extract_strided_slice %133 {offsets = [0, 0], sizes = [8, 128], strides = [1, 1]} : vector<8x384xf32> to vector<8x128xf32>
    %136 = arith.addf %134, %135 : vector<8x128xf32>
    %137 = arith.negf %136 : vector<8x128xf32>
    %138 = math.exp %137 : vector<8x128xf32>
    %cst_57 = arith.constant 1.000000e+00 : f32
    %139 = vector.broadcast %cst_57 : f32 to vector<8x128xf32>
    %140 = arith.addf %139, %138 : vector<8x128xf32>
    %141 = arith.divf %139, %140 : vector<8x128xf32>
    %142 = vector.extract_strided_slice %127 {offsets = [0, 128], sizes = [8, 128], strides = [1, 1]} : vector<8x384xf32> to vector<8x128xf32>
    %143 = vector.extract_strided_slice %133 {offsets = [0, 128], sizes = [8, 128], strides = [1, 1]} : vector<8x384xf32> to vector<8x128xf32>
    %144 = arith.addf %142, %143 : vector<8x128xf32>
    %145 = arith.negf %144 : vector<8x128xf32>
    %146 = math.exp %145 : vector<8x128xf32>
    %cst_58 = arith.constant 1.000000e+00 : f32
    %147 = vector.broadcast %cst_58 : f32 to vector<8x128xf32>
    %148 = arith.addf %147, %146 : vector<8x128xf32>
    %149 = arith.divf %147, %148 : vector<8x128xf32>
    %150 = vector.extract_strided_slice %127 {offsets = [0, 256], sizes = [8, 128], strides = [1, 1]} : vector<8x384xf32> to vector<8x128xf32>
    %151 = vector.extract_strided_slice %133 {offsets = [0, 256], sizes = [8, 128], strides = [1, 1]} : vector<8x384xf32> to vector<8x128xf32>
    %152 = arith.mulf %141, %151 : vector<8x128xf32>
    %153 = arith.addf %150, %152 : vector<8x128xf32>
    %154 = math.tanh %153 : vector<8x128xf32>
    %cst_59 = arith.constant 1.000000e+00 : f32
    %155 = vector.broadcast %cst_59 : f32 to vector<8x128xf32>
    %156 = arith.subf %155, %149 : vector<8x128xf32>
    %157 = arith.mulf %156, %154 : vector<8x128xf32>
    %158 = arith.mulf %149, %124 : vector<8x128xf32>
    %159 = arith.addf %157, %158 : vector<8x128xf32>
    %160 = arith.truncf %159 : vector<8x128xf32> to vector<8x128xbf16>
    %c16 = arith.constant 16 : index
    %c0_60 = arith.constant 0 : index
    %161 = vector.load %arg12[%c16, %c0_60] : memref<72x128xbf16, #tpu.memory_space<vmem>>, vector<8x128xbf16>
    tpu.vector_store %arg12[%c16, %c0_60], %160 {strides = array<i32>} : memref<72x128xbf16, #tpu.memory_space<vmem>>, vector<8x128xbf16>,
    %162 = vector.extract_strided_slice %55 {offsets = [24, 0], sizes = [8, 384], strides = [1, 1]} : vector<72x384xf32> to vector<8x384xf32>
    %163 = arith.truncf %159 : vector<8x128xf32> to vector<8x128xbf16>
    %c0_61 = arith.constant 0 : index
    %c0_62 = arith.constant 0 : index
    %164 = vector.load %arg10[%c0_61, %c0_62] : memref<128x384xbf16, #tpu.memory_space<vmem>>, vector<128x384xbf16>
    %cst_63 = arith.constant dense<0.000000e+00> : vector<8x384xf32>
    %165 = tpu.matmul %163, %164, %cst_63 {dimension_numbers = #tpu.dot_dimension_numbers<[1], [0], [0], [1], [0, 0, 1, 1], [], []>} : vector<8x128xbf16>, vector<128x384xbf16>, vector<8x384xf32> -> vector<8x384xf32>
    %c0_64 = arith.constant 0 : index
    %c0_65 = arith.constant 0 : index
    %166 = vector.load %arg11[%c0_64, %c0_65] : memref<1x384xf32, #tpu.memory_space<vmem>>, vector<1x384xf32>
    %167 = vector.broadcast %166 : vector<1x384xf32> to vector<8x384xf32>
    %168 = arith.addf %165, %167 : vector<8x384xf32>
    %169 = vector.extract_strided_slice %162 {offsets = [0, 0], sizes = [8, 128], strides = [1, 1]} : vector<8x384xf32> to vector<8x128xf32>
    %170 = vector.extract_strided_slice %168 {offsets = [0, 0], sizes = [8, 128], strides = [1, 1]} : vector<8x384xf32> to vector<8x128xf32>
    %171 = arith.addf %169, %170 : vector<8x128xf32>
    %172 = arith.negf %171 : vector<8x128xf32>
    %173 = math.exp %172 : vector<8x128xf32>
    %cst_66 = arith.constant 1.000000e+00 : f32
    %174 = vector.broadcast %cst_66 : f32 to vector<8x128xf32>
    %175 = arith.addf %174, %173 : vector<8x128xf32>
    %176 = arith.divf %174, %175 : vector<8x128xf32>
    %177 = vector.extract_strided_slice %162 {offsets = [0, 128], sizes = [8, 128], strides = [1, 1]} : vector<8x384xf32> to vector<8x128xf32>
    %178 = vector.extract_strided_slice %168 {offsets = [0, 128], sizes = [8, 128], strides = [1, 1]} : vector<8x384xf32> to vector<8x128xf32>
    %179 = arith.addf %177, %178 : vector<8x128xf32>
    %180 = arith.negf %179 : vector<8x128xf32>
    %181 = math.exp %180 : vector<8x128xf32>
    %cst_67 = arith.constant 1.000000e+00 : f32
    %182 = vector.broadcast %cst_67 : f32 to vector<8x128xf32>
    %183 = arith.addf %182, %181 : vector<8x128xf32>
    %184 = arith.divf %182, %183 : vector<8x128xf32>
    %185 = vector.extract_strided_slice %162 {offsets = [0, 256], sizes = [8, 128], strides = [1, 1]} : vector<8x384xf32> to vector<8x128xf32>
    %186 = vector.extract_strided_slice %168 {offsets = [0, 256], sizes = [8, 128], strides = [1, 1]} : vector<8x384xf32> to vector<8x128xf32>
    %187 = arith.mulf %176, %186 : vector<8x128xf32>
    %188 = arith.addf %185, %187 : vector<8x128xf32>
    %189 = math.tanh %188 : vector<8x128xf32>
    %cst_68 = arith.constant 1.000000e+00 : f32
    %190 = vector.broadcast %cst_68 : f32 to vector<8x128xf32>
    %191 = arith.subf %190, %184 : vector<8x128xf32>
    %192 = arith.mulf %191, %189 : vector<8x128xf32>
    %193 = arith.mulf %184, %159 : vector<8x128xf32>
    %194 = arith.addf %192, %193 : vector<8x128xf32>
    %195 = arith.truncf %194 : vector<8x128xf32> to vector<8x128xbf16>
    %c24 = arith.constant 24 : index
    %c0_69 = arith.constant 0 : index
    %196 = vector.load %arg12[%c24, %c0_69] : memref<72x128xbf16, #tpu.memory_space<vmem>>, vector<8x128xbf16>
    tpu.vector_store %arg12[%c24, %c0_69], %195 {strides = array<i32>} : memref<72x128xbf16, #tpu.memory_space<vmem>>, vector<8x128xbf16>,
    %197 = vector.extract_strided_slice %55 {offsets = [32, 0], sizes = [8, 384], strides = [1, 1]} : vector<72x384xf32> to vector<8x384xf32>
    %198 = arith.truncf %194 : vector<8x128xf32> to vector<8x128xbf16>
    %c0_70 = arith.constant 0 : index
    %c0_71 = arith.constant 0 : index
    %199 = vector.load %arg10[%c0_70, %c0_71] : memref<128x384xbf16, #tpu.memory_space<vmem>>, vector<128x384xbf16>
    %cst_72 = arith.constant dense<0.000000e+00> : vector<8x384xf32>
    %200 = tpu.matmul %198, %199, %cst_72 {dimension_numbers = #tpu.dot_dimension_numbers<[1], [0], [0], [1], [0, 0, 1, 1], [], []>} : vector<8x128xbf16>, vector<128x384xbf16>, vector<8x384xf32> -> vector<8x384xf32>
    %c0_73 = arith.constant 0 : index
    %c0_74 = arith.constant 0 : index
    %201 = vector.load %arg11[%c0_73, %c0_74] : memref<1x384xf32, #tpu.memory_space<vmem>>, vector<1x384xf32>
    %202 = vector.broadcast %201 : vector<1x384xf32> to vector<8x384xf32>
    %203 = arith.addf %200, %202 : vector<8x384xf32>
    %204 = vector.extract_strided_slice %197 {offsets = [0, 0], sizes = [8, 128], strides = [1, 1]} : vector<8x384xf32> to vector<8x128xf32>
    %205 = vector.extract_strided_slice %203 {offsets = [0, 0], sizes = [8, 128], strides = [1, 1]} : vector<8x384xf32> to vector<8x128xf32>
    %206 = arith.addf %204, %205 : vector<8x128xf32>
    %207 = arith.negf %206 : vector<8x128xf32>
    %208 = math.exp %207 : vector<8x128xf32>
    %cst_75 = arith.constant 1.000000e+00 : f32
    %209 = vector.broadcast %cst_75 : f32 to vector<8x128xf32>
    %210 = arith.addf %209, %208 : vector<8x128xf32>
    %211 = arith.divf %209, %210 : vector<8x128xf32>
    %212 = vector.extract_strided_slice %197 {offsets = [0, 128], sizes = [8, 128], strides = [1, 1]} : vector<8x384xf32> to vector<8x128xf32>
    %213 = vector.extract_strided_slice %203 {offsets = [0, 128], sizes = [8, 128], strides = [1, 1]} : vector<8x384xf32> to vector<8x128xf32>
    %214 = arith.addf %212, %213 : vector<8x128xf32>
    %215 = arith.negf %214 : vector<8x128xf32>
    %216 = math.exp %215 : vector<8x128xf32>
    %cst_76 = arith.constant 1.000000e+00 : f32
    %217 = vector.broadcast %cst_76 : f32 to vector<8x128xf32>
    %218 = arith.addf %217, %216 : vector<8x128xf32>
    %219 = arith.divf %217, %218 : vector<8x128xf32>
    %220 = vector.extract_strided_slice %197 {offsets = [0, 256], sizes = [8, 128], strides = [1, 1]} : vector<8x384xf32> to vector<8x128xf32>
    %221 = vector.extract_strided_slice %203 {offsets = [0, 256], sizes = [8, 128], strides = [1, 1]} : vector<8x384xf32> to vector<8x128xf32>
    %222 = arith.mulf %211, %221 : vector<8x128xf32>
    %223 = arith.addf %220, %222 : vector<8x128xf32>
    %224 = math.tanh %223 : vector<8x128xf32>
    %cst_77 = arith.constant 1.000000e+00 : f32
    %225 = vector.broadcast %cst_77 : f32 to vector<8x128xf32>
    %226 = arith.subf %225, %219 : vector<8x128xf32>
    %227 = arith.mulf %226, %224 : vector<8x128xf32>
    %228 = arith.mulf %219, %194 : vector<8x128xf32>
    %229 = arith.addf %227, %228 : vector<8x128xf32>
    %230 = arith.truncf %229 : vector<8x128xf32> to vector<8x128xbf16>
    %c32 = arith.constant 32 : index
    %c0_78 = arith.constant 0 : index
    %231 = vector.load %arg12[%c32, %c0_78] : memref<72x128xbf16, #tpu.memory_space<vmem>>, vector<8x128xbf16>
    tpu.vector_store %arg12[%c32, %c0_78], %230 {strides = array<i32>} : memref<72x128xbf16, #tpu.memory_space<vmem>>, vector<8x128xbf16>,
    %232 = vector.extract_strided_slice %55 {offsets = [40, 0], sizes = [8, 384], strides = [1, 1]} : vector<72x384xf32> to vector<8x384xf32>
    %233 = arith.truncf %229 : vector<8x128xf32> to vector<8x128xbf16>
    %c0_79 = arith.constant 0 : index
    %c0_80 = arith.constant 0 : index
    %234 = vector.load %arg10[%c0_79, %c0_80] : memref<128x384xbf16, #tpu.memory_space<vmem>>, vector<128x384xbf16>
    %cst_81 = arith.constant dense<0.000000e+00> : vector<8x384xf32>
    %235 = tpu.matmul %233, %234, %cst_81 {dimension_numbers = #tpu.dot_dimension_numbers<[1], [0], [0], [1], [0, 0, 1, 1], [], []>} : vector<8x128xbf16>, vector<128x384xbf16>, vector<8x384xf32> -> vector<8x384xf32>
    %c0_82 = arith.constant 0 : index
    %c0_83 = arith.constant 0 : index
    %236 = vector.load %arg11[%c0_82, %c0_83] : memref<1x384xf32, #tpu.memory_space<vmem>>, vector<1x384xf32>
    %237 = vector.broadcast %236 : vector<1x384xf32> to vector<8x384xf32>
    %238 = arith.addf %235, %237 : vector<8x384xf32>
    %239 = vector.extract_strided_slice %232 {offsets = [0, 0], sizes = [8, 128], strides = [1, 1]} : vector<8x384xf32> to vector<8x128xf32>
    %240 = vector.extract_strided_slice %238 {offsets = [0, 0], sizes = [8, 128], strides = [1, 1]} : vector<8x384xf32> to vector<8x128xf32>
    %241 = arith.addf %239, %240 : vector<8x128xf32>
    %242 = arith.negf %241 : vector<8x128xf32>
    %243 = math.exp %242 : vector<8x128xf32>
    %cst_84 = arith.constant 1.000000e+00 : f32
    %244 = vector.broadcast %cst_84 : f32 to vector<8x128xf32>
    %245 = arith.addf %244, %243 : vector<8x128xf32>
    %246 = arith.divf %244, %245 : vector<8x128xf32>
    %247 = vector.extract_strided_slice %232 {offsets = [0, 128], sizes = [8, 128], strides = [1, 1]} : vector<8x384xf32> to vector<8x128xf32>
    %248 = vector.extract_strided_slice %238 {offsets = [0, 128], sizes = [8, 128], strides = [1, 1]} : vector<8x384xf32> to vector<8x128xf32>
    %249 = arith.addf %247, %248 : vector<8x128xf32>
    %250 = arith.negf %249 : vector<8x128xf32>
    %251 = math.exp %250 : vector<8x128xf32>
    %cst_85 = arith.constant 1.000000e+00 : f32
    %252 = vector.broadcast %cst_85 : f32 to vector<8x128xf32>
    %253 = arith.addf %252, %251 : vector<8x128xf32>
    %254 = arith.divf %252, %253 : vector<8x128xf32>
    %255 = vector.extract_strided_slice %232 {offsets = [0, 256], sizes = [8, 128], strides = [1, 1]} : vector<8x384xf32> to vector<8x128xf32>
    %256 = vector.extract_strided_slice %238 {offsets = [0, 256], sizes = [8, 128], strides = [1, 1]} : vector<8x384xf32> to vector<8x128xf32>
    %257 = arith.mulf %246, %256 : vector<8x128xf32>
    %258 = arith.addf %255, %257 : vector<8x128xf32>
    %259 = math.tanh %258 : vector<8x128xf32>
    %cst_86 = arith.constant 1.000000e+00 : f32
    %260 = vector.broadcast %cst_86 : f32 to vector<8x128xf32>
    %261 = arith.subf %260, %254 : vector<8x128xf32>
    %262 = arith.mulf %261, %259 : vector<8x128xf32>
    %263 = arith.mulf %254, %229 : vector<8x128xf32>
    %264 = arith.addf %262, %263 : vector<8x128xf32>
    %265 = arith.truncf %264 : vector<8x128xf32> to vector<8x128xbf16>
    %c40 = arith.constant 40 : index
    %c0_87 = arith.constant 0 : index
    %266 = vector.load %arg12[%c40, %c0_87] : memref<72x128xbf16, #tpu.memory_space<vmem>>, vector<8x128xbf16>
    tpu.vector_store %arg12[%c40, %c0_87], %265 {strides = array<i32>} : memref<72x128xbf16, #tpu.memory_space<vmem>>, vector<8x128xbf16>,
    %267 = vector.extract_strided_slice %55 {offsets = [48, 0], sizes = [8, 384], strides = [1, 1]} : vector<72x384xf32> to vector<8x384xf32>
    %268 = arith.truncf %264 : vector<8x128xf32> to vector<8x128xbf16>
    %c0_88 = arith.constant 0 : index
    %c0_89 = arith.constant 0 : index
    %269 = vector.load %arg10[%c0_88, %c0_89] : memref<128x384xbf16, #tpu.memory_space<vmem>>, vector<128x384xbf16>
    %cst_90 = arith.constant dense<0.000000e+00> : vector<8x384xf32>
    %270 = tpu.matmul %268, %269, %cst_90 {dimension_numbers = #tpu.dot_dimension_numbers<[1], [0], [0], [1], [0, 0, 1, 1], [], []>} : vector<8x128xbf16>, vector<128x384xbf16>, vector<8x384xf32> -> vector<8x384xf32>
    %c0_91 = arith.constant 0 : index
    %c0_92 = arith.constant 0 : index
    %271 = vector.load %arg11[%c0_91, %c0_92] : memref<1x384xf32, #tpu.memory_space<vmem>>, vector<1x384xf32>
    %272 = vector.broadcast %271 : vector<1x384xf32> to vector<8x384xf32>
    %273 = arith.addf %270, %272 : vector<8x384xf32>
    %274 = vector.extract_strided_slice %267 {offsets = [0, 0], sizes = [8, 128], strides = [1, 1]} : vector<8x384xf32> to vector<8x128xf32>
    %275 = vector.extract_strided_slice %273 {offsets = [0, 0], sizes = [8, 128], strides = [1, 1]} : vector<8x384xf32> to vector<8x128xf32>
    %276 = arith.addf %274, %275 : vector<8x128xf32>
    %277 = arith.negf %276 : vector<8x128xf32>
    %278 = math.exp %277 : vector<8x128xf32>
    %cst_93 = arith.constant 1.000000e+00 : f32
    %279 = vector.broadcast %cst_93 : f32 to vector<8x128xf32>
    %280 = arith.addf %279, %278 : vector<8x128xf32>
    %281 = arith.divf %279, %280 : vector<8x128xf32>
    %282 = vector.extract_strided_slice %267 {offsets = [0, 128], sizes = [8, 128], strides = [1, 1]} : vector<8x384xf32> to vector<8x128xf32>
    %283 = vector.extract_strided_slice %273 {offsets = [0, 128], sizes = [8, 128], strides = [1, 1]} : vector<8x384xf32> to vector<8x128xf32>
    %284 = arith.addf %282, %283 : vector<8x128xf32>
    %285 = arith.negf %284 : vector<8x128xf32>
    %286 = math.exp %285 : vector<8x128xf32>
    %cst_94 = arith.constant 1.000000e+00 : f32
    %287 = vector.broadcast %cst_94 : f32 to vector<8x128xf32>
    %288 = arith.addf %287, %286 : vector<8x128xf32>
    %289 = arith.divf %287, %288 : vector<8x128xf32>
    %290 = vector.extract_strided_slice %267 {offsets = [0, 256], sizes = [8, 128], strides = [1, 1]} : vector<8x384xf32> to vector<8x128xf32>
    %291 = vector.extract_strided_slice %273 {offsets = [0, 256], sizes = [8, 128], strides = [1, 1]} : vector<8x384xf32> to vector<8x128xf32>
    %292 = arith.mulf %281, %291 : vector<8x128xf32>
    %293 = arith.addf %290, %292 : vector<8x128xf32>
    %294 = math.tanh %293 : vector<8x128xf32>
    %cst_95 = arith.constant 1.000000e+00 : f32
    %295 = vector.broadcast %cst_95 : f32 to vector<8x128xf32>
    %296 = arith.subf %295, %289 : vector<8x128xf32>
    %297 = arith.mulf %296, %294 : vector<8x128xf32>
    %298 = arith.mulf %289, %264 : vector<8x128xf32>
    %299 = arith.addf %297, %298 : vector<8x128xf32>
    %300 = arith.truncf %299 : vector<8x128xf32> to vector<8x128xbf16>
    %c48 = arith.constant 48 : index
    %c0_96 = arith.constant 0 : index
    %301 = vector.load %arg12[%c48, %c0_96] : memref<72x128xbf16, #tpu.memory_space<vmem>>, vector<8x128xbf16>
    tpu.vector_store %arg12[%c48, %c0_96], %300 {strides = array<i32>} : memref<72x128xbf16, #tpu.memory_space<vmem>>, vector<8x128xbf16>,
    %302 = vector.extract_strided_slice %55 {offsets = [56, 0], sizes = [8, 384], strides = [1, 1]} : vector<72x384xf32> to vector<8x384xf32>
    %303 = arith.truncf %299 : vector<8x128xf32> to vector<8x128xbf16>
    %c0_97 = arith.constant 0 : index
    %c0_98 = arith.constant 0 : index
    %304 = vector.load %arg10[%c0_97, %c0_98] : memref<128x384xbf16, #tpu.memory_space<vmem>>, vector<128x384xbf16>
    %cst_99 = arith.constant dense<0.000000e+00> : vector<8x384xf32>
    %305 = tpu.matmul %303, %304, %cst_99 {dimension_numbers = #tpu.dot_dimension_numbers<[1], [0], [0], [1], [0, 0, 1, 1], [], []>} : vector<8x128xbf16>, vector<128x384xbf16>, vector<8x384xf32> -> vector<8x384xf32>
    %c0_100 = arith.constant 0 : index
    %c0_101 = arith.constant 0 : index
    %306 = vector.load %arg11[%c0_100, %c0_101] : memref<1x384xf32, #tpu.memory_space<vmem>>, vector<1x384xf32>
    %307 = vector.broadcast %306 : vector<1x384xf32> to vector<8x384xf32>
    %308 = arith.addf %305, %307 : vector<8x384xf32>
    %309 = vector.extract_strided_slice %302 {offsets = [0, 0], sizes = [8, 128], strides = [1, 1]} : vector<8x384xf32> to vector<8x128xf32>
    %310 = vector.extract_strided_slice %308 {offsets = [0, 0], sizes = [8, 128], strides = [1, 1]} : vector<8x384xf32> to vector<8x128xf32>
    %311 = arith.addf %309, %310 : vector<8x128xf32>
    %312 = arith.negf %311 : vector<8x128xf32>
    %313 = math.exp %312 : vector<8x128xf32>
    %cst_102 = arith.constant 1.000000e+00 : f32
    %314 = vector.broadcast %cst_102 : f32 to vector<8x128xf32>
    %315 = arith.addf %314, %313 : vector<8x128xf32>
    %316 = arith.divf %314, %315 : vector<8x128xf32>
    %317 = vector.extract_strided_slice %302 {offsets = [0, 128], sizes = [8, 128], strides = [1, 1]} : vector<8x384xf32> to vector<8x128xf32>
    %318 = vector.extract_strided_slice %308 {offsets = [0, 128], sizes = [8, 128], strides = [1, 1]} : vector<8x384xf32> to vector<8x128xf32>
    %319 = arith.addf %317, %318 : vector<8x128xf32>
    %320 = arith.negf %319 : vector<8x128xf32>
    %321 = math.exp %320 : vector<8x128xf32>
    %cst_103 = arith.constant 1.000000e+00 : f32
    %322 = vector.broadcast %cst_103 : f32 to vector<8x128xf32>
    %323 = arith.addf %322, %321 : vector<8x128xf32>
    %324 = arith.divf %322, %323 : vector<8x128xf32>
    %325 = vector.extract_strided_slice %302 {offsets = [0, 256], sizes = [8, 128], strides = [1, 1]} : vector<8x384xf32> to vector<8x128xf32>
    %326 = vector.extract_strided_slice %308 {offsets = [0, 256], sizes = [8, 128], strides = [1, 1]} : vector<8x384xf32> to vector<8x128xf32>
    %327 = arith.mulf %316, %326 : vector<8x128xf32>
    %328 = arith.addf %325, %327 : vector<8x128xf32>
    %329 = math.tanh %328 : vector<8x128xf32>
    %cst_104 = arith.constant 1.000000e+00 : f32
    %330 = vector.broadcast %cst_104 : f32 to vector<8x128xf32>
    %331 = arith.subf %330, %324 : vector<8x128xf32>
    %332 = arith.mulf %331, %329 : vector<8x128xf32>
    %333 = arith.mulf %324, %299 : vector<8x128xf32>
    %334 = arith.addf %332, %333 : vector<8x128xf32>
    %335 = arith.truncf %334 : vector<8x128xf32> to vector<8x128xbf16>
    %c56 = arith.constant 56 : index
    %c0_105 = arith.constant 0 : index
    %336 = vector.load %arg12[%c56, %c0_105] : memref<72x128xbf16, #tpu.memory_space<vmem>>, vector<8x128xbf16>
    tpu.vector_store %arg12[%c56, %c0_105], %335 {strides = array<i32>} : memref<72x128xbf16, #tpu.memory_space<vmem>>, vector<8x128xbf16>,
    %337 = vector.extract_strided_slice %55 {offsets = [64, 0], sizes = [8, 384], strides = [1, 1]} : vector<72x384xf32> to vector<8x384xf32>
    %338 = arith.truncf %334 : vector<8x128xf32> to vector<8x128xbf16>
    %c0_106 = arith.constant 0 : index
    %c0_107 = arith.constant 0 : index
    %339 = vector.load %arg10[%c0_106, %c0_107] : memref<128x384xbf16, #tpu.memory_space<vmem>>, vector<128x384xbf16>
    %cst_108 = arith.constant dense<0.000000e+00> : vector<8x384xf32>
    %340 = tpu.matmul %338, %339, %cst_108 {dimension_numbers = #tpu.dot_dimension_numbers<[1], [0], [0], [1], [0, 0, 1, 1], [], []>} : vector<8x128xbf16>, vector<128x384xbf16>, vector<8x384xf32> -> vector<8x384xf32>
    %c0_109 = arith.constant 0 : index
    %c0_110 = arith.constant 0 : index
    %341 = vector.load %arg11[%c0_109, %c0_110] : memref<1x384xf32, #tpu.memory_space<vmem>>, vector<1x384xf32>
    %342 = vector.broadcast %341 : vector<1x384xf32> to vector<8x384xf32>
    %343 = arith.addf %340, %342 : vector<8x384xf32>
    %344 = vector.extract_strided_slice %337 {offsets = [0, 0], sizes = [8, 128], strides = [1, 1]} : vector<8x384xf32> to vector<8x128xf32>
    %345 = vector.extract_strided_slice %343 {offsets = [0, 0], sizes = [8, 128], strides = [1, 1]} : vector<8x384xf32> to vector<8x128xf32>
    %346 = arith.addf %344, %345 : vector<8x128xf32>
    %347 = arith.negf %346 : vector<8x128xf32>
    %348 = math.exp %347 : vector<8x128xf32>
    %cst_111 = arith.constant 1.000000e+00 : f32
    %349 = vector.broadcast %cst_111 : f32 to vector<8x128xf32>
    %350 = arith.addf %349, %348 : vector<8x128xf32>
    %351 = arith.divf %349, %350 : vector<8x128xf32>
    %352 = vector.extract_strided_slice %337 {offsets = [0, 128], sizes = [8, 128], strides = [1, 1]} : vector<8x384xf32> to vector<8x128xf32>
    %353 = vector.extract_strided_slice %343 {offsets = [0, 128], sizes = [8, 128], strides = [1, 1]} : vector<8x384xf32> to vector<8x128xf32>
    %354 = arith.addf %352, %353 : vector<8x128xf32>
    %355 = arith.negf %354 : vector<8x128xf32>
    %356 = math.exp %355 : vector<8x128xf32>
    %cst_112 = arith.constant 1.000000e+00 : f32
    %357 = vector.broadcast %cst_112 : f32 to vector<8x128xf32>
    %358 = arith.addf %357, %356 : vector<8x128xf32>
    %359 = arith.divf %357, %358 : vector<8x128xf32>
    %360 = vector.extract_strided_slice %337 {offsets = [0, 256], sizes = [8, 128], strides = [1, 1]} : vector<8x384xf32> to vector<8x128xf32>
    %361 = vector.extract_strided_slice %343 {offsets = [0, 256], sizes = [8, 128], strides = [1, 1]} : vector<8x384xf32> to vector<8x128xf32>
    %362 = arith.mulf %351, %361 : vector<8x128xf32>
    %363 = arith.addf %360, %362 : vector<8x128xf32>
    %364 = math.tanh %363 : vector<8x128xf32>
    %cst_113 = arith.constant 1.000000e+00 : f32
    %365 = vector.broadcast %cst_113 : f32 to vector<8x128xf32>
    %366 = arith.subf %365, %359 : vector<8x128xf32>
    %367 = arith.mulf %366, %364 : vector<8x128xf32>
    %368 = arith.mulf %359, %334 : vector<8x128xf32>
    %369 = arith.addf %367, %368 : vector<8x128xf32>
    %370 = arith.truncf %369 : vector<8x128xf32> to vector<8x128xbf16>
    %c64 = arith.constant 64 : index
    %c0_114 = arith.constant 0 : index
    %371 = vector.load %arg12[%c64, %c0_114] : memref<72x128xbf16, #tpu.memory_space<vmem>>, vector<8x128xbf16>
    tpu.vector_store %arg12[%c64, %c0_114], %370 {strides = array<i32>} : memref<72x128xbf16, #tpu.memory_space<vmem>>, vector<8x128xbf16>,
    return
  }
}

</mosaic_0001>

<llo_original>
// kernel: tpu_custom_call.1
$region0: #{tpu_custom_call.1}
  #allocation0 [shape = 'u32[]', space=smem, size = 0x4, offset = 0x4, fixed_abs, tag = 'smem constant byte address 0x4 - core index']
  #allocation1 [shape = 'u32[72,128]{1,0:T(1,128)}', space=vmem, size = 0x9000, scoped, tag = 'internal scratch']
  #allocation2 [shape = 'bf16[72,128]{1,0:T(8,128)(2,1)}', space=vmem, size = 0x4800, scoped, tag = 'scratch operand']
  %s0 = inlined_call_operand.hbm [shape: f32[8,8], index: 0, kind: input, shape index: {}]
  %s1 = inlined_call_operand.hbm [shape: bf16[8,128], index: 1, kind: input, shape index: {}]
  %s2 = inlined_call_operand.hbm [shape: f32[1,128], index: 2, kind: input, shape index: {}]
  %s3 = inlined_call_operand.hbm [shape: bf16[128,128], index: 3, kind: input, shape index: {}]
  %s4 = inlined_call_operand.hbm [shape: f32[1,128], index: 4, kind: input, shape index: {}]
  %s5 = inlined_call_operand.hbm [shape: f32[1,128], index: 5, kind: input, shape index: {}]
  %s6 = inlined_call_operand.hbm [shape: f32[1,128], index: 6, kind: input, shape index: {}]
  %s7 = inlined_call_operand.hbm [shape: bf16[64,128], index: 7, kind: input, shape index: {}]
  %s8 = inlined_call_operand.hbm [shape: bf16[128,384], index: 8, kind: input, shape index: {}]
  %s9 = inlined_call_operand.vmem [shape: f32[1,384], index: 9, kind: input, shape index: {}]
  %s10 = inlined_call_operand.hbm [shape: bf16[128,384], index: 10, kind: input, shape index: {}]
  %s11 = inlined_call_operand.vmem [shape: f32[1,384], index: 11, kind: input, shape index: {}]
  %s12 = inlined_call_operand.hbm [shape: bf16[72,128], index: 12, kind: output, shape index: {}]
  %s13 = sld [smem:[#allocation0]]
  $region98: #{tpu_custom_call.1} parent=0
    _
  %s15 = ssub.s32 1, %s13
  %s16 = scalar_select 0, %s15, %s13
  $region1: #{tpu_custom_call.1} parent=0
    #allocation3 [shape = 'u8[4096]{0}', space=vmem, size = 0x1000, scoped, tag = 'input window, operand 0, single buffered']
    #allocation4 [shape = 's32[1]{0}', space=sflag, size = 0x4, scoped, tag = 'scoped memory for tpu_custom_call.1']
    #allocation5 [shape = 's32[1]{0}', space=sflag, size = 0x4, scoped, tag = 'scoped memory for tpu_custom_call.1']
    #allocation6 [shape = 'u8[2048]{0}', space=vmem, size = 0x800, scoped, tag = 'input window, operand 1, single buffered']
    #allocation7 [shape = 's32[1]{0}', space=sflag, size = 0x4, scoped, tag = 'scoped memory for tpu_custom_call.1']
    #allocation8 [shape = 'u8[512]{0}', space=vmem, size = 0x400, scoped, tag = 'input window, operand 2, single buffered']
    #allocation9 [shape = 'u8[32768]{0}', space=vmem, size = 0x8000, scoped, tag = 'input window, operand 3, single buffered']
    #allocation10 [shape = 's32[1]{0}', space=sflag, size = 0x4, scoped, tag = 'scoped memory for tpu_custom_call.1']
    #allocation11 [shape = 'u8[512]{0}', space=vmem, size = 0x400, scoped, tag = 'input window, operand 4, single buffered']
    #allocation12 [shape = 'u8[512]{0}', space=vmem, size = 0x400, scoped, tag = 'input window, operand 5, single buffered']
    #allocation13 [shape = 's32[1]{0}', space=sflag, size = 0x4, scoped, tag = 'scoped memory for tpu_custom_call.1']
    #allocation14 [shape = 'u8[512]{0}', space=vmem, size = 0x400, scoped, tag = 'input window, operand 6, single buffered']
    #allocation15 [shape = 'u8[16384]{0}', space=vmem, size = 0x4000, scoped, tag = 'input window, operand 7, single buffered']
    #allocation16 [shape = 's32[1]{0}', space=sflag, size = 0x4, scoped, tag = 'scoped memory for tpu_custom_call.1']
    #allocation17 [shape = 'u8[98304]{0}', space=vmem, size = 0x18000, scoped, tag = 'input window, operand 8, single buffered']
    #allocation18 [shape = 'u8[98304]{0}', space=vmem, size = 0x18000, scoped, tag = 'input window, operand 10, single buffered']
    #allocation19 [shape = 's32[1]{0}', space=sflag, size = 0x4, scoped, tag = 'scoped memory for tpu_custom_call.1']
    #allocation20 [shape = 'u8[18432]{0}', space=vmem, size = 0x4800, scoped, tag = 'output window, operand 0, single buffered']
    %17 = vsyncpa [#allocation4], 0
    %18 = vsyncpa [#allocation7], 0
    %19 = vsyncpa [#allocation10], 0
    %20 = vsyncpa [#allocation13], 0
    %21 = vsyncpa [#allocation16], 0
    %22 = vsyncpa [#allocation19], 0
    %23 = vsyncpa [#allocation5], 0
    // Predicated region
    $region2: #{tpu_custom_call.1} parent=1 // pred_check
      _
    $region3: #{tpu_custom_call.1} parent=1 // pred_check_branch
      %25 = sbr.rel (0) target = $region5
    $region4: #{tpu_custom_call.1} parent=1 // pred_region
      %27 = vsyncadd [#allocation4], 0
      %s29 = sshll.u32 %s0, 4
      %s30 = int_to_ptr.hbm [resolvable:$true] %s29
      %s31 = sshll.u32 [#allocation3], 4
      %s32 = int_to_ptr.vmem [resolvable:$true] %s31
      %34 = dma.hbm_to_vmem [thread:$0]  %s30, 128, %s32, [#allocation4]
    $region5: #{tpu_custom_call.1} parent=1 // pred_fallthru
      _
    // Predicated region
    $region6: #{tpu_custom_call.1} parent=1 // pred_check
      _
    $region7: #{tpu_custom_call.1} parent=1 // pred_check_branch
      %36 = sbr.rel (0) target = $region9
    $region8: #{tpu_custom_call.1} parent=1 // pred_region
      %38 = vsyncadd [#allocation7], 0
      %s40 = sshll.u32 %s1, 4
      %s41 = int_to_ptr.hbm [resolvable:$true] %s40
      %s42 = sshll.u32 [#allocation6], 4
      %s43 = int_to_ptr.vmem [resolvable:$true] %s42
      %45 = dma.hbm_to_vmem [thread:$0]  %s41, 64, %s43, [#allocation7]
    $region9: #{tpu_custom_call.1} parent=1 // pred_fallthru
      _
    // Predicated region
    $region10: #{tpu_custom_call.1} parent=1 // pred_check
      _
    $region11: #{tpu_custom_call.1} parent=1 // pred_check_branch
      %47 = sbr.rel (0) target = $region13
    $region12: #{tpu_custom_call.1} parent=1 // pred_region
      %49 = vsyncadd [#allocation7], 0
      %s51 = sshll.u32 %s2, 4
      %s52 = int_to_ptr.hbm [resolvable:$true] %s51
      %s53 = sshll.u32 [#allocation8], 4
      %s54 = int_to_ptr.vmem [resolvable:$true] %s53
      %56 = dma.hbm_to_vmem [thread:$0]  %s52, 16, %s54, [#allocation7]
    $region13: #{tpu_custom_call.1} parent=1 // pred_fallthru
      _
    // Predicated region
    $region14: #{tpu_custom_call.1} parent=1 // pred_check
      _
    $region15: #{tpu_custom_call.1} parent=1 // pred_check_branch
      %58 = sbr.rel (0) target = $region17
    $region16: #{tpu_custom_call.1} parent=1 // pred_region
      %60 = vsyncadd [#allocation10], 0
      %s61 = sshll.u32 %s3, 4
      %s62 = int_to_ptr.hbm [resolvable:$true] %s61
      %s63 = sshll.u32 [#allocation9], 4
      %s64 = int_to_ptr.vmem [resolvable:$true] %s63
      %69 = dma.hbm_to_vmem [thread:$0]  %s62, 1024, %s64, [#allocation10], 64, 64, 4
    $region17: #{tpu_custom_call.1} parent=1 // pred_fallthru
      _
    // Predicated region
    $region18: #{tpu_custom_call.1} parent=1 // pred_check
      _
    $region19: #{tpu_custom_call.1} parent=1 // pred_check_branch
      %71 = sbr.rel (0) target = $region21
    $region20: #{tpu_custom_call.1} parent=1 // pred_region
      %73 = vsyncadd [#allocation10], 0
      %s75 = sshll.u32 %s4, 4
      %s76 = int_to_ptr.hbm [resolvable:$true] %s75
      %s77 = sshll.u32 [#allocation11], 4
      %s78 = int_to_ptr.vmem [resolvable:$true] %s77
      %80 = dma.hbm_to_vmem [thread:$0]  %s76, 16, %s78, [#allocation10]
    $region21: #{tpu_custom_call.1} parent=1 // pred_fallthru
      _
    // Predicated region
    $region22: #{tpu_custom_call.1} parent=1 // pred_check
      _
    $region23: #{tpu_custom_call.1} parent=1 // pred_check_branch
      %82 = sbr.rel (0) target = $region25
    $region24: #{tpu_custom_call.1} parent=1 // pred_region
      %84 = vsyncadd [#allocation13], 0
      %s86 = sshll.u32 %s5, 4
      %s87 = int_to_ptr.hbm [resolvable:$true] %s86
      %s88 = sshll.u32 [#allocation12], 4
      %s89 = int_to_ptr.vmem [resolvable:$true] %s88
      %91 = dma.hbm_to_vmem [thread:$0]  %s87, 16, %s89, [#allocation13]
    $region25: #{tpu_custom_call.1} parent=1 // pred_fallthru
      _
    // Predicated region
    $region26: #{tpu_custom_call.1} parent=1 // pred_check
      _
    $region27: #{tpu_custom_call.1} parent=1 // pred_check_branch
      %93 = sbr.rel (0) target = $region29
    $region28: #{tpu_custom_call.1} parent=1 // pred_region
      %95 = vsyncadd [#allocation13], 0
      %s97 = sshll.u32 %s6, 4
      %s98 = int_to_ptr.hbm [resolvable:$true] %s97
      %s99 = sshll.u32 [#allocation14], 4
      %s100 = int_to_ptr.vmem [resolvable:$true] %s99
      %102 = dma.hbm_to_vmem [thread:$0]  %s98, 16, %s100, [#allocation13]
    $region29: #{tpu_custom_call.1} parent=1 // pred_fallthru
      _
    // Predicated region
    $region30: #{tpu_custom_call.1} parent=1 // pred_check
      _
    $region31: #{tpu_custom_call.1} parent=1 // pred_check_branch
      %104 = sbr.rel (0) target = $region33
    $region32: #{tpu_custom_call.1} parent=1 // pred_region
      %106 = vsyncadd [#allocation16], 0
      %s107 = sshll.u32 %s7, 4
      %s108 = int_to_ptr.hbm [resolvable:$true] %s107
      %s109 = sshll.u32 [#allocation15], 4
      %s110 = int_to_ptr.vmem [resolvable:$true] %s109
      %115 = dma.hbm_to_vmem [thread:$0]  %s108, 512, %s110, [#allocation16], 64, 64, 4
    $region33: #{tpu_custom_call.1} parent=1 // pred_fallthru
      _
    // Predicated region
    $region34: #{tpu_custom_call.1} parent=1 // pred_check
      _
    $region35: #{tpu_custom_call.1} parent=1 // pred_check_branch
      %117 = sbr.rel (0) target = $region37
    $region36: #{tpu_custom_call.1} parent=1 // pred_region
      %119 = vsyncadd [#allocation16], 0
      %s120 = sshll.u32 %s8, 4
      %s121 = int_to_ptr.hbm [resolvable:$true] %s120
      %s122 = sshll.u32 [#allocation17], 4
      %s123 = int_to_ptr.vmem [resolvable:$true] %s122
      %128 = dma.hbm_to_vmem [thread:$0]  %s121, 3072, %s123, [#allocation16], 192, 192, 12
    $region37: #{tpu_custom_call.1} parent=1 // pred_fallthru
      _
    // Predicated region
    $region38: #{tpu_custom_call.1} parent=1 // pred_check
      _
    $region39: #{tpu_custom_call.1} parent=1 // pred_check_branch
      %130 = sbr.rel (0) target = $region41
    $region40: #{tpu_custom_call.1} parent=1 // pred_region
      _
    $region41: #{tpu_custom_call.1} parent=1 // pred_fallthru
      _
    // Predicated region
    $region42: #{tpu_custom_call.1} parent=1 // pred_check
      _
    $region43: #{tpu_custom_call.1} parent=1 // pred_check_branch
      %132 = sbr.rel (0) target = $region45
    $region44: #{tpu_custom_call.1} parent=1 // pred_region
      %134 = vsyncadd [#allocation19], 0
      %s135 = sshll.u32 %s10, 4
      %s136 = int_to_ptr.hbm [resolvable:$true] %s135
      %s137 = sshll.u32 [#allocation18], 4
      %s138 = int_to_ptr.vmem [resolvable:$true] %s137
      %143 = dma.hbm_to_vmem [thread:$0]  %s136, 3072, %s138, [#allocation19], 192, 192, 12
    $region45: #{tpu_custom_call.1} parent=1 // pred_fallthru
      _
    // Predicated region
    $region46: #{tpu_custom_call.1} parent=1 // pred_check
      _
    $region47: #{tpu_custom_call.1} parent=1 // pred_check_branch
      %145 = sbr.rel (0) target = $region49
    $region48: #{tpu_custom_call.1} parent=1 // pred_region
      _
    $region49: #{tpu_custom_call.1} parent=1 // pred_fallthru
      _
    // Predicated region
    $region50: #{tpu_custom_call.1} parent=1 // pred_check
      _
    $region51: #{tpu_custom_call.1} parent=1 // pred_check_branch
      %147 = sbr.rel (0) target = $region53
    $region52: #{tpu_custom_call.1} parent=1 // pred_region
      %149 = dma.done [#allocation4], 128
    $region53: #{tpu_custom_call.1} parent=1 // pred_fallthru
      _
    // Predicated region
    $region54: #{tpu_custom_call.1} parent=1 // pred_check
      _
    $region55: #{tpu_custom_call.1} parent=1 // pred_check_branch
      %151 = sbr.rel (0) target = $region57
    $region56: #{tpu_custom_call.1} parent=1 // pred_region
      %153 = dma.done [#allocation7], 64
    $region57: #{tpu_custom_call.1} parent=1 // pred_fallthru
      _
    // Predicated region
    $region58: #{tpu_custom_call.1} parent=1 // pred_check
      _
    $region59: #{tpu_custom_call.1} parent=1 // pred_check_branch
      %155 = sbr.rel (0) target = $region61
    $region60: #{tpu_custom_call.1} parent=1 // pred_region
      %157 = dma.done [#allocation7], 16
    $region61: #{tpu_custom_call.1} parent=1 // pred_fallthru
      _
    // Predicated region
    $region62: #{tpu_custom_call.1} parent=1 // pred_check
      _
    $region63: #{tpu_custom_call.1} parent=1 // pred_check_branch
      %159 = sbr.rel (0) target = $region65
    $region64: #{tpu_custom_call.1} parent=1 // pred_region
      %161 = dma.done [#allocation10], 1024
    $region65: #{tpu_custom_call.1} parent=1 // pred_fallthru
      _
    // Predicated region
    $region66: #{tpu_custom_call.1} parent=1 // pred_check
      _
    $region67: #{tpu_custom_call.1} parent=1 // pred_check_branch
      %163 = sbr.rel (0) target = $region69
    $region68: #{tpu_custom_call.1} parent=1 // pred_region
      %165 = dma.done [#allocation10], 16
    $region69: #{tpu_custom_call.1} parent=1 // pred_fallthru
      _
    // Predicated region
    $region70: #{tpu_custom_call.1} parent=1 // pred_check
      _
    $region71: #{tpu_custom_call.1} parent=1 // pred_check_branch
      %167 = sbr.rel (0) target = $region73
    $region72: #{tpu_custom_call.1} parent=1 // pred_region
      %169 = dma.done [#allocation13], 16
    $region73: #{tpu_custom_call.1} parent=1 // pred_fallthru
      _
    // Predicated region
    $region74: #{tpu_custom_call.1} parent=1 // pred_check
      _
    $region75: #{tpu_custom_call.1} parent=1 // pred_check_branch
      %171 = sbr.rel (0) target = $region77
    $region76: #{tpu_custom_call.1} parent=1 // pred_region
      %173 = dma.done [#allocation13], 16
    $region77: #{tpu_custom_call.1} parent=1 // pred_fallthru
      _
    // Predicated region
    $region78: #{tpu_custom_call.1} parent=1 // pred_check
      _
    $region79: #{tpu_custom_call.1} parent=1 // pred_check_branch
      %175 = sbr.rel (0) target = $region81
    $region80: #{tpu_custom_call.1} parent=1 // pred_region
      %177 = dma.done [#allocation16], 512
    $region81: #{tpu_custom_call.1} parent=1 // pred_fallthru
      _
    // Predicated region
    $region82: #{tpu_custom_call.1} parent=1 // pred_check
      _
    $region83: #{tpu_custom_call.1} parent=1 // pred_check_branch
      %179 = sbr.rel (0) target = $region85
    $region84: #{tpu_custom_call.1} parent=1 // pred_region
      %181 = dma.done [#allocation16], 3072
    $region85: #{tpu_custom_call.1} parent=1 // pred_fallthru
      _
    // Predicated region
    $region86: #{tpu_custom_call.1} parent=1 // pred_check
      _
    $region87: #{tpu_custom_call.1} parent=1 // pred_check_branch
      %183 = sbr.rel (0) target = $region89
    $region88: #{tpu_custom_call.1} parent=1 // pred_region
      %185 = dma.done [#allocation19], 3072
    $region89: #{tpu_custom_call.1} parent=1 // pred_fallthru
      _
    %v187 = vld [vmem:[#allocation3] sm:$0xff]
    %v188 = vpack.c.bf16 %v187, %v187
    %v189 = vld [vmem:[#allocation6] sm:$0xf]
    %v190 = vld [vmem:[#allocation8] sm:$0x1]
    %v192 = vperm.slane %v190, 0
    %vm194 = vcmask 64512
    %v196 = vsel %vm194, %v188, 0
    %vm198 = vcmask 1043456
    %v200 = vsel %vm198, %v189, 0
    %202 = vmatpush.bf16.msra.mxu0 0
    %203 = vmatpush.bf16.msra.mxu0 0
    %204 = vmatpush.bf16.msra.mxu0 0
    %205 = vmatpush.bf16.msra.mxu0 0
    %206 = vmatpush.bf16.msra.mxu0 0
    %207 = vmatpush.bf16.msra.mxu0 0
    %208 = vmatpush.bf16.msra.mxu0 0
    %209 = vmatpush.bf16.msra.mxu0 %v200
    %210 = vmatmul.bf16.gmra.mxu0 %v196
    %v211 = vpop.f32.mrf.mxu0
    %v212 = vadd.f32 %v192, %v211
    %v213 = vpop.f32.mrf.mxu0
    %214 = vdwg.mxu0
    %v215 = vpack.c.bf16 %v212, %v212
    %v216 = vld [vmem:[#allocation9] sm:$0xf]
    %v217 = vld [vmem:[#allocation9 + $0x4] sm:$0xf]
    %v218 = vld [vmem:[#allocation9 + $0x8] sm:$0xf]
    %v219 = vld [vmem:[#allocation9 + $0xc] sm:$0xf]
    %v220 = vld [vmem:[#allocation9 + $0x10] sm:$0xf]
    %v221 = vld [vmem:[#allocation9 + $0x14] sm:$0xf]
    %v222 = vld [vmem:[#allocation9 + $0x18] sm:$0xf]
    %v223 = vld [vmem:[#allocation9 + $0x1c] sm:$0xf]
    %v224 = vld [vmem:[#allocation9 + $0x20] sm:$0xf]
    %v225 = vld [vmem:[#allocation9 + $0x24] sm:$0xf]
    %v226 = vld [vmem:[#allocation9 + $0x28] sm:$0xf]
    %v227 = vld [vmem:[#allocation9 + $0x2c] sm:$0xf]
    %v228 = vld [vmem:[#allocation9 + $0x30] sm:$0xf]
    %v229 = vld [vmem:[#allocation9 + $0x34] sm:$0xf]
    %v230 = vld [vmem:[#allocation9 + $0x38] sm:$0xf]
    %v231 = vld [vmem:[#allocation9 + $0x3c] sm:$0xf]
    %v232 = vld [vmem:[#allocation11] sm:$0x1]
    %v234 = vperm.slane %v232, 0
    %v252 = vunpack.c.l.b16 %v216
    %v253 = vunpack.c.l.b16 %v217
    %v254 = vunpack.c.l.b16 %v218
    %v255 = vunpack.c.l.b16 %v219
    %v256 = vunpack.c.l.b16 %v220
    %v257 = vunpack.c.l.b16 %v221
    %v258 = vunpack.c.l.b16 %v222
    %v259 = vunpack.c.l.b16 %v223
    %v260 = vunpack.c.l.b16 %v224
    %v261 = vunpack.c.l.b16 %v225
    %v262 = vunpack.c.l.b16 %v226
    %v263 = vunpack.c.l.b16 %v227
    %v264 = vunpack.c.l.b16 %v228
    %v265 = vunpack.c.l.b16 %v229
    %v266 = vunpack.c.l.b16 %v230
    %v267 = vunpack.c.l.b16 %v231
    %v268 = vpack.c.b16 %v253, %v252
    %v269 = vpack.c.b16 %v255, %v254
    %v270 = vpack.c.b16 %v257, %v256
    %v271 = vpack.c.b16 %v259, %v258
    %v272 = vpack.c.b16 %v261, %v260
    %v273 = vpack.c.b16 %v263, %v262
    %v274 = vpack.c.b16 %v265, %v264
    %v275 = vpack.c.b16 %v267, %v266
    %284 = vmatpush.bf16.msra.mxu0 %v275
    %285 = vmatpush.bf16.msra.mxu0 %v274
    %286 = vmatpush.bf16.msra.mxu0 %v273
    %287 = vmatpush.bf16.msra.mxu0 %v272
    %288 = vmatpush.bf16.msra.mxu0 %v271
    %289 = vmatpush.bf16.msra.mxu0 %v270
    %290 = vmatpush.bf16.msra.mxu0 %v269
    %291 = vmatpush.bf16.msra.mxu0 %v268
    %292 = vmatmul.bf16.gmra.mxu0 %v215
    %v293 = vpop.f32.mrf.mxu0
    %v294 = vadd.f32 %v234, %v293
    %v295 = vpop.f32.mrf.mxu0
    %296 = vdwg.mxu0
    %v297 = vlaneseq
    %v298 = vshrl.u32 %v297, 7
    %vm299 = vcmp.lt.s32.totalorder %v298, 4
    %v300 = vsel %vm299, 1, 0
    %v301 = vcvt.s32.f32 %v300
    %v302 = vmul.f32 %v294, %v301
    %v303 = vrot.slane %v302, 4
    %v304 = vadd.f32 %v302, %v303
    %v305 = vrot.slane %v304, 2
    %v306 = vadd.f32 %v304, %v305
    %v307 = vrot.slane %v306, 1
    %v308 = vadd.f32 %v306, %v307
    %v309 = vrcp.pop 4.0
    %v310 = vmul.f32 4.0, %v309
    %v311 = vsub.f32 1.0, %v310
    %v312 = vmul.f32 %v309, %v311
    %v313 = vadd.f32 %v309, %v312
    %vm314 = vweird.f32 %v309
    %v315 = vsel %vm314, %v309, %v313
    %v316 = vmul.f32 %v308, %v315
    %v317 = vsub.f32 %v294, %v316
    %v318 = vmul.f32 %v317, %v301
    %v319 = vmul.f32 %v318, %v318
    %v320 = vrot.slane %v319, 4
    %v321 = vadd.f32 %v319, %v320
    %v322 = vrot.slane %v321, 2
    %v323 = vadd.f32 %v321, %v322
    %v324 = vrot.slane %v323, 1
    %v325 = vadd.f32 %v323, %v324
    %v326 = vmul.f32 %v325, %v315
    %v327 = vadd.f32 %v326, 1e-05
    %v328 = vrsqrt.pop %v327
    %v329 = vmul.f32 %v328, %v327
    %v330 = vmul.f32 %v329, %v328
    %v331 = vmul.f32 0.5, %v330
    %v332 = vsub.f32 1.5, %v331
    %v333 = vmul.f32 %v328, %v332
    %vm334 = vweird.f32 %v327
    %vm335 = vweird.f32 %v328
    %vm336 = vmor %vm334, %vm335
    %v337 = vsel %vm336, %v328, %v333
    %v338 = vmul.f32 %v317, %v337
    %v339 = vld [vmem:[#allocation12] sm:$0x1]
    %v341 = vperm.slane %v339, 0
    %v343 = vmul.f32 %v338, %v341
    %v344 = vld [vmem:[#allocation14] sm:$0x1]
    %v346 = vperm.slane %v344, 0
    %v348 = vadd.f32 %v343, %v346
    %v349 = vpack.c.bf16 %v348, %v348
    %350 = vst [vmem:[#allocation2] sm:$0xf] %v349
    %v351 = vld [vmem:[#allocation15] sm:$0xf]
    %v352 = vld [vmem:[#allocation15 + $0x4] sm:$0xf]
    %v353 = vld [vmem:[#allocation15 + $0x8] sm:$0xf]
    %v354 = vld [vmem:[#allocation15 + $0xc] sm:$0xf]
    %v355 = vld [vmem:[#allocation15 + $0x10] sm:$0xf]
    %v356 = vld [vmem:[#allocation15 + $0x14] sm:$0xf]
    %v357 = vld [vmem:[#allocation15 + $0x18] sm:$0xf]
    %v358 = vld [vmem:[#allocation15 + $0x1c] sm:$0xf]
    %359 = vst [vmem:[#allocation2 + $0x4] sm:$0xf] %v351
    %360 = vst [vmem:[#allocation2 + $0x8] sm:$0xf] %v352
    %361 = vst [vmem:[#allocation2 + $0xc] sm:$0xf] %v353
    %362 = vst [vmem:[#allocation2 + $0x10] sm:$0xf] %v354
    %363 = vst [vmem:[#allocation2 + $0x14] sm:$0xf] %v355
    %364 = vst [vmem:[#allocation2 + $0x18] sm:$0xf] %v356
    %365 = vst [vmem:[#allocation2 + $0x1c] sm:$0xf] %v357
    %366 = vst [vmem:[#allocation2 + $0x20] sm:$0xf] %v358
    %v367 = vld [vmem:[#allocation2] sm:$0xf]
    %v368 = vld [vmem:[#allocation2 + $0x4] sm:$0xf]
    %v369 = vld [vmem:[#allocation2 + $0x8] sm:$0xf]
    %v370 = vld [vmem:[#allocation2 + $0xc] sm:$0xf]
    %v371 = vld [vmem:[#allocation2 + $0x10] sm:$0xf]
    %v372 = vld [vmem:[#allocation2 + $0x14] sm:$0xf]
    %v373 = vld [vmem:[#allocation2 + $0x18] sm:$0xf]
    %v374 = vld [vmem:[#allocation2 + $0x1c] sm:$0xf]
    %v375 = vld [vmem:[#allocation2 + $0x20] sm:$0xf]
    %v376 = vld [vmem:[#allocation17] sm:$0xff]
    %v377 = vld [vmem:[#allocation17 + $0x8] sm:$0xf]
    %v378 = vld [vmem:[#allocation17 + $0xc] sm:$0xff]
    %v379 = vld [vmem:[#allocation17 + $0x14] sm:$0xf]
    %v380 = vld [vmem:[#allocation17 + $0x18] sm:$0xff]
    %v381 = vld [vmem:[#allocation17 + $0x20] sm:$0xf]
    %v382 = vld [vmem:[#allocation17 + $0x24] sm:$0xff]
    %v383 = vld [vmem:[#allocation17 + $0x2c] sm:$0xf]
    %v384 = vld [vmem:[#allocation17 + $0x30] sm:$0xff]
    %v385 = vld [vmem:[#allocation17 + $0x38] sm:$0xf]
    %v386 = vld [vmem:[#allocation17 + $0x3c] sm:$0xff]
    %v387 = vld [vmem:[#allocation17 + $0x44] sm:$0xf]
    %v388 = vld [vmem:[#allocation17 + $0x48] sm:$0xff]
    %v389 = vld [vmem:[#allocation17 + $0x50] sm:$0xf]
    %v390 = vld [vmem:[#allocation17 + $0x54] sm:$0xff]
    %v391 = vld [vmem:[#allocation17 + $0x5c] sm:$0xf]
    %v392 = vld [vmem:[#allocation17 + $0x60] sm:$0xff]
    %v393 = vld [vmem:[#allocation17 + $0x68] sm:$0xf]
    %v394 = vld [vmem:[#allocation17 + $0x6c] sm:$0xff]
    %v395 = vld [vmem:[#allocation17 + $0x74] sm:$0xf]
    %v396 = vld [vmem:[#allocation17 + $0x78] sm:$0xff]
    %v397 = vld [vmem:[#allocation17 + $0x80] sm:$0xf]
    %v398 = vld [vmem:[#allocation17 + $0x84] sm:$0xff]
    %v399 = vld [vmem:[#allocation17 + $0x8c] sm:$0xf]
    %v400 = vld [vmem:[#allocation17 + $0x90] sm:$0xff]
    %v401 = vld [vmem:[#allocation17 + $0x98] sm:$0xf]
    %v402 = vld [vmem:[#allocation17 + $0x9c] sm:$0xff]
    %v403 = vld [vmem:[#allocation17 + $0xa4] sm:$0xf]
    %v404 = vld [vmem:[#allocation17 + $0xa8] sm:$0xff]
    %v405 = vld [vmem:[#allocation17 + $0xb0] sm:$0xf]
    %v406 = vld [vmem:[#allocation17 + $0xb4] sm:$0xff]
    %v407 = vld [vmem:[#allocation17 + $0xbc] sm:$0xf]
    %v408 = vld [vmem:[%s9] sm:$0x7]
    %v410 = vperm.slane %v408, 0
    %v411 = vperm.slane %v408, 1
    %v412 = vperm.slane %v408, 2
    %v425 = vunpack.c.l.b16 %v367
    %v426 = vunpack.c.l.b16 %v368
    %v427 = vunpack.c.l.b16 %v369
    %v428 = vunpack.c.l.b16 %v370
    %v429 = vunpack.c.l.b16 %v371
    %v430 = vunpack.c.l.b16 %v372
    %v431 = vunpack.c.l.b16 %v373
    %v432 = vunpack.c.l.b16 %v374
    %v433 = vunpack.c.l.b16 %v375
    %v434 = vpack.c.b16 %v426, %v425
    %v435 = vpack.c.b16 %v428, %v427
    %v436 = vpack.c.b16 %v430, %v429
    %v437 = vpack.c.b16 %v432, %v431
    %v438 = vpack.c.b16 %v433, %v433
    %v476 = vunpack.c.l.b16 %v376
    %v477 = vunpack.c.h.b16 %v376
    %v478 = vunpack.c.l.b16 %v377
    %v479 = vunpack.c.l.b16 %v378
    %v480 = vunpack.c.h.b16 %v378
    %v481 = vunpack.c.l.b16 %v379
    %v482 = vunpack.c.l.b16 %v380
    %v483 = vunpack.c.h.b16 %v380
    %v484 = vunpack.c.l.b16 %v381
    %v485 = vunpack.c.l.b16 %v382
    %v486 = vunpack.c.h.b16 %v382
    %v487 = vunpack.c.l.b16 %v383
    %v488 = vunpack.c.l.b16 %v384
    %v489 = vunpack.c.h.b16 %v384
    %v490 = vunpack.c.l.b16 %v385
    %v491 = vunpack.c.l.b16 %v386
    %v492 = vunpack.c.h.b16 %v386
    %v493 = vunpack.c.l.b16 %v387
    %v494 = vunpack.c.l.b16 %v388
    %v495 = vunpack.c.h.b16 %v388
    %v496 = vunpack.c.l.b16 %v389
    %v497 = vunpack.c.l.b16 %v390
    %v498 = vunpack.c.h.b16 %v390
    %v499 = vunpack.c.l.b16 %v391
    %v500 = vunpack.c.l.b16 %v392
    %v501 = vunpack.c.h.b16 %v392
    %v502 = vunpack.c.l.b16 %v393
    %v503 = vunpack.c.l.b16 %v394
    %v504 = vunpack.c.h.b16 %v394
    %v505 = vunpack.c.l.b16 %v395
    %v506 = vunpack.c.l.b16 %v396
    %v507 = vunpack.c.h.b16 %v396
    %v508 = vunpack.c.l.b16 %v397
    %v509 = vunpack.c.l.b16 %v398
    %v510 = vunpack.c.h.b16 %v398
    %v511 = vunpack.c.l.b16 %v399
    %v512 = vunpack.c.l.b16 %v400
    %v513 = vunpack.c.h.b16 %v400
    %v514 = vunpack.c.l.b16 %v401
    %v515 = vunpack.c.l.b16 %v402
    %v516 = vunpack.c.h.b16 %v402
    %v517 = vunpack.c.l.b16 %v403
    %v518 = vunpack.c.l.b16 %v404
    %v519 = vunpack.c.h.b16 %v404
    %v520 = vunpack.c.l.b16 %v405
    %v521 = vunpack.c.l.b16 %v406
    %v522 = vunpack.c.h.b16 %v406
    %v523 = vunpack.c.l.b16 %v407
    %v524 = vpack.c.b16 %v479, %v476
    %v525 = vpack.c.b16 %v480, %v477
    %v526 = vpack.c.b16 %v481, %v478
    %v527 = vpack.c.b16 %v485, %v482
    %v528 = vpack.c.b16 %v486, %v483
    %v529 = vpack.c.b16 %v487, %v484
    %v530 = vpack.c.b16 %v491, %v488
    %v531 = vpack.c.b16 %v492, %v489
    %v532 = vpack.c.b16 %v493, %v490
    %v533 = vpack.c.b16 %v497, %v494
    %v534 = vpack.c.b16 %v498, %v495
    %v535 = vpack.c.b16 %v499, %v496
    %v536 = vpack.c.b16 %v503, %v500
    %v537 = vpack.c.b16 %v504, %v501
    %v538 = vpack.c.b16 %v505, %v502
    %v539 = vpack.c.b16 %v509, %v506
    %v540 = vpack.c.b16 %v510, %v507
    %v541 = vpack.c.b16 %v511, %v508
    %v542 = vpack.c.b16 %v515, %v512
    %v543 = vpack.c.b16 %v516, %v513
    %v544 = vpack.c.b16 %v517, %v514
    %v545 = vpack.c.b16 %v521, %v518
    %v546 = vpack.c.b16 %v522, %v519
    %v547 = vpack.c.b16 %v523, %v520
    %572 = vmatpush.bf16.msra.mxu0 %v545
    %573 = vmatpush.bf16.msra.mxu0 %v542
    %574 = vmatpush.bf16.msra.mxu0 %v539
    %575 = vmatpush.bf16.msra.mxu0 %v536
    %576 = vmatpush.bf16.msra.mxu0 %v533
    %577 = vmatpush.bf16.msra.mxu0 %v530
    %578 = vmatpush.bf16.msra.mxu0 %v527
    %579 = vmatpush.bf16.msra.mxu0 %v524
    %580 = vmatmul.bf16.gmra.mxu0 %v434
    %v581 = vpop.f32.mrf.mxu0
    %v582 = vadd.f32 %v410, %v581
    %v583 = vpop.f32.mrf.mxu0
    %v584 = vadd.f32 %v410, %v583
    %585 = vmatmul.bf16.gmra.mxu0 %v435
    %v586 = vpop.f32.mrf.mxu0
    %v587 = vadd.f32 %v410, %v586
    %v588 = vpop.f32.mrf.mxu0
    %v589 = vadd.f32 %v410, %v588
    %590 = vmatmul.bf16.gmra.mxu0 %v436
    %v591 = vpop.f32.mrf.mxu0
    %v592 = vadd.f32 %v410, %v591
    %v593 = vpop.f32.mrf.mxu0
    %v594 = vadd.f32 %v410, %v593
    %595 = vmatmul.bf16.gmra.mxu0 %v437
    %v596 = vpop.f32.mrf.mxu0
    %v597 = vadd.f32 %v410, %v596
    %v598 = vpop.f32.mrf.mxu0
    %v599 = vadd.f32 %v410, %v598
    %600 = vmatmul.bf16.gmra.mxu0 %v438
    %v601 = vpop.f32.mrf.mxu0
    %v602 = vadd.f32 %v410, %v601
    %v603 = vpop.f32.mrf.mxu0
    %604 = vdwg.mxu0
    %605 = vmatpush.bf16.msra.mxu0 %v546
    %606 = vmatpush.bf16.msra.mxu0 %v543
    %607 = vmatpush.bf16.msra.mxu0 %v540
    %608 = vmatpush.bf16.msra.mxu0 %v537
    %609 = vmatpush.bf16.msra.mxu0 %v534
    %610 = vmatpush.bf16.msra.mxu0 %v531
    %611 = vmatpush.bf16.msra.mxu0 %v528
    %612 = vmatpush.bf16.msra.mxu0 %v525
    %613 = vmatmul.bf16.gmra.mxu0 %v434
    %v614 = vpop.f32.mrf.mxu0
    %v615 = vadd.f32 %v411, %v614
    %v616 = vpop.f32.mrf.mxu0
    %v617 = vadd.f32 %v411, %v616
    %618 = vmatmul.bf16.gmra.mxu0 %v435
    %v619 = vpop.f32.mrf.mxu0
    %v620 = vadd.f32 %v411, %v619
    %v621 = vpop.f32.mrf.mxu0
    %v622 = vadd.f32 %v411, %v621
    %623 = vmatmul.bf16.gmra.mxu0 %v436
    %v624 = vpop.f32.mrf.mxu0
    %v625 = vadd.f32 %v411, %v624
    %v626 = vpop.f32.mrf.mxu0
    %v627 = vadd.f32 %v411, %v626
    %628 = vmatmul.bf16.gmra.mxu0 %v437
    %v629 = vpop.f32.mrf.mxu0
    %v630 = vadd.f32 %v411, %v629
    %v631 = vpop.f32.mrf.mxu0
    %v632 = vadd.f32 %v411, %v631
    %633 = vmatmul.bf16.gmra.mxu0 %v438
    %v634 = vpop.f32.mrf.mxu0
    %v635 = vadd.f32 %v411, %v634
    %v636 = vpop.f32.mrf.mxu0
    %637 = vdwg.mxu0
    %638 = vmatpush.bf16.msra.mxu0 %v547
    %639 = vmatpush.bf16.msra.mxu0 %v544
    %640 = vmatpush.bf16.msra.mxu0 %v541
    %641 = vmatpush.bf16.msra.mxu0 %v538
    %642 = vmatpush.bf16.msra.mxu0 %v535
    %643 = vmatpush.bf16.msra.mxu0 %v532
    %644 = vmatpush.bf16.msra.mxu0 %v529
    %645 = vmatpush.bf16.msra.mxu0 %v526
    %646 = vmatmul.bf16.gmra.mxu0 %v434
    %v647 = vpop.f32.mrf.mxu0
    %v648 = vadd.f32 %v412, %v647
    %v649 = vpop.f32.mrf.mxu0
    %v650 = vadd.f32 %v412, %v649
    %651 = vmatmul.bf16.gmra.mxu0 %v435
    %v652 = vpop.f32.mrf.mxu0
    %v653 = vadd.f32 %v412, %v652
    %v654 = vpop.f32.mrf.mxu0
    %v655 = vadd.f32 %v412, %v654
    %656 = vmatmul.bf16.gmra.mxu0 %v436
    %v657 = vpop.f32.mrf.mxu0
    %v658 = vadd.f32 %v412, %v657
    %v659 = vpop.f32.mrf.mxu0
    %v660 = vadd.f32 %v412, %v659
    %661 = vmatmul.bf16.gmra.mxu0 %v437
    %v662 = vpop.f32.mrf.mxu0
    %v663 = vadd.f32 %v412, %v662
    %v664 = vpop.f32.mrf.mxu0
    %v665 = vadd.f32 %v412, %v664
    %666 = vmatmul.bf16.gmra.mxu0 %v438
    %v667 = vpop.f32.mrf.mxu0
    %v668 = vadd.f32 %v412, %v667
    %v669 = vpop.f32.mrf.mxu0
    %670 = vdwg.mxu0
    %v671 = vld [vmem:[#allocation18] sm:$0xff]
    %v672 = vld [vmem:[#allocation18 + $0x8] sm:$0xf]
    %v673 = vld [vmem:[#allocation18 + $0xc] sm:$0xff]
    %v674 = vld [vmem:[#allocation18 + $0x14] sm:$0xf]
    %v675 = vld [vmem:[#allocation18 + $0x18] sm:$0xff]
    %v676 = vld [vmem:[#allocation18 + $0x20] sm:$0xf]
    %v677 = vld [vmem:[#allocation18 + $0x24] sm:$0xff]
    %v678 = vld [vmem:[#allocation18 + $0x2c] sm:$0xf]
    %v679 = vld [vmem:[#allocation18 + $0x30] sm:$0xff]
    %v680 = vld [vmem:[#allocation18 + $0x38] sm:$0xf]
    %v681 = vld [vmem:[#allocation18 + $0x3c] sm:$0xff]
    %v682 = vld [vmem:[#allocation18 + $0x44] sm:$0xf]
    %v683 = vld [vmem:[#allocation18 + $0x48] sm:$0xff]
    %v684 = vld [vmem:[#allocation18 + $0x50] sm:$0xf]
    %v685 = vld [vmem:[#allocation18 + $0x54] sm:$0xff]
    %v686 = vld [vmem:[#allocation18 + $0x5c] sm:$0xf]
    %v687 = vld [vmem:[#allocation18 + $0x60] sm:$0xff]
    %v688 = vld [vmem:[#allocation18 + $0x68] sm:$0xf]
    %v689 = vld [vmem:[#allocation18 + $0x6c] sm:$0xff]
    %v690 = vld [vmem:[#allocation18 + $0x74] sm:$0xf]
    %v691 = vld [vmem:[#allocation18 + $0x78] sm:$0xff]
    %v692 = vld [vmem:[#allocation18 + $0x80] sm:$0xf]
    %v693 = vld [vmem:[#allocation18 + $0x84] sm:$0xff]
    %v694 = vld [vmem:[#allocation18 + $0x8c] sm:$0xf]
    %v695 = vld [vmem:[#allocation18 + $0x90] sm:$0xff]
    %v696 = vld [vmem:[#allocation18 + $0x98] sm:$0xf]
    %v697 = vld [vmem:[#allocation18 + $0x9c] sm:$0xff]
    %v698 = vld [vmem:[#allocation18 + $0xa4] sm:$0xf]
    %v699 = vld [vmem:[#allocation18 + $0xa8] sm:$0xff]
    %v700 = vld [vmem:[#allocation18 + $0xb0] sm:$0xf]
    %v701 = vld [vmem:[#allocation18 + $0xb4] sm:$0xff]
    %v702 = vld [vmem:[#allocation18 + $0xbc] sm:$0xf]
    %v703 = vld [vmem:[%s11] sm:$0x7]
    %v705 = vperm.slane %v703, 0
    %v706 = vperm.slane %v703, 1
    %v707 = vperm.slane %v703, 2
    %v743 = vunpack.c.l.b16 %v671
    %v744 = vunpack.c.h.b16 %v671
    %v745 = vunpack.c.l.b16 %v672
    %v746 = vunpack.c.l.b16 %v673
    %v747 = vunpack.c.h.b16 %v673
    %v748 = vunpack.c.l.b16 %v674
    %v749 = vunpack.c.l.b16 %v675
    %v750 = vunpack.c.h.b16 %v675
    %v751 = vunpack.c.l.b16 %v676
    %v752 = vunpack.c.l.b16 %v677
    %v753 = vunpack.c.h.b16 %v677
    %v754 = vunpack.c.l.b16 %v678
    %v755 = vunpack.c.l.b16 %v679
    %v756 = vunpack.c.h.b16 %v679
    %v757 = vunpack.c.l.b16 %v680
    %v758 = vunpack.c.l.b16 %v681
    %v759 = vunpack.c.h.b16 %v681
    %v760 = vunpack.c.l.b16 %v682
    %v761 = vunpack.c.l.b16 %v683
    %v762 = vunpack.c.h.b16 %v683
    %v763 = vunpack.c.l.b16 %v684
    %v764 = vunpack.c.l.b16 %v685
    %v765 = vunpack.c.h.b16 %v685
    %v766 = vunpack.c.l.b16 %v686
    %v767 = vunpack.c.l.b16 %v687
    %v768 = vunpack.c.h.b16 %v687
    %v769 = vunpack.c.l.b16 %v688
    %v770 = vunpack.c.l.b16 %v689
    %v771 = vunpack.c.h.b16 %v689
    %v772 = vunpack.c.l.b16 %v690
    %v773 = vunpack.c.l.b16 %v691
    %v774 = vunpack.c.h.b16 %v691
    %v775 = vunpack.c.l.b16 %v692
    %v776 = vunpack.c.l.b16 %v693
    %v777 = vunpack.c.h.b16 %v693
    %v778 = vunpack.c.l.b16 %v694
    %v779 = vunpack.c.l.b16 %v695
    %v780 = vunpack.c.h.b16 %v695
    %v781 = vunpack.c.l.b16 %v696
    %v782 = vunpack.c.l.b16 %v697
    %v783 = vunpack.c.h.b16 %v697
    %v784 = vunpack.c.l.b16 %v698
    %v785 = vunpack.c.l.b16 %v699
    %v786 = vunpack.c.h.b16 %v699
    %v787 = vunpack.c.l.b16 %v700
    %v788 = vunpack.c.l.b16 %v701
    %v789 = vunpack.c.h.b16 %v701
    %v790 = vunpack.c.l.b16 %v702
    %v791 = vpack.c.b16 %v746, %v743
    %v792 = vpack.c.b16 %v747, %v744
    %v793 = vpack.c.b16 %v748, %v745
    %v794 = vpack.c.b16 %v752, %v749
    %v795 = vpack.c.b16 %v753, %v750
    %v796 = vpack.c.b16 %v754, %v751
    %v797 = vpack.c.b16 %v758, %v755
    %v798 = vpack.c.b16 %v759, %v756
    %v799 = vpack.c.b16 %v760, %v757
    %v800 = vpack.c.b16 %v764, %v761
    %v801 = vpack.c.b16 %v765, %v762
    %v802 = vpack.c.b16 %v766, %v763
    %v803 = vpack.c.b16 %v770, %v767
    %v804 = vpack.c.b16 %v771, %v768
    %v805 = vpack.c.b16 %v772, %v769
    %v806 = vpack.c.b16 %v776, %v773
    %v807 = vpack.c.b16 %v777, %v774
    %v808 = vpack.c.b16 %v778, %v775
    %v809 = vpack.c.b16 %v782, %v779
    %v810 = vpack.c.b16 %v783, %v780
    %v811 = vpack.c.b16 %v784, %v781
    %v812 = vpack.c.b16 %v788, %v785
    %v813 = vpack.c.b16 %v789, %v786
    %v814 = vpack.c.b16 %v790, %v787
    %839 = vmatpush.bf16.msra.mxu0 %v812
    %840 = vmatpush.bf16.msra.mxu0 %v809
    %841 = vmatpush.bf16.msra.mxu0 %v806
    %842 = vmatpush.bf16.msra.mxu0 %v803
    %843 = vmatpush.bf16.msra.mxu0 %v800
    %844 = vmatpush.bf16.msra.mxu0 %v797
    %845 = vmatpush.bf16.msra.mxu0 %v794
    %846 = vmatpush.bf16.msra.mxu0 %v791
    %847 = vmatmul.bf16.gmra.mxu0 0
    %v848 = vpop.f32.mrf.mxu0
    %v849 = vadd.f32 %v705, %v848
    %v850 = vpop.f32.mrf.mxu0
    %851 = vdwg.mxu0
    %852 = vmatpush.bf16.msra.mxu0 %v813
    %853 = vmatpush.bf16.msra.mxu0 %v810
    %854 = vmatpush.bf16.msra.mxu0 %v807
    %855 = vmatpush.bf16.msra.mxu0 %v804
    %856 = vmatpush.bf16.msra.mxu0 %v801
    %857 = vmatpush.bf16.msra.mxu0 %v798
    %858 = vmatpush.bf16.msra.mxu0 %v795
    %859 = vmatpush.bf16.msra.mxu0 %v792
    %860 = vmatmul.bf16.gmra.mxu0 0
    %v861 = vpop.f32.mrf.mxu0
    %v862 = vadd.f32 %v706, %v861
    %v863 = vpop.f32.mrf.mxu0
    %864 = vdwg.mxu0
    %865 = vmatpush.bf16.msra.mxu0 %v814
    %866 = vmatpush.bf16.msra.mxu0 %v811
    %867 = vmatpush.bf16.msra.mxu0 %v808
    %868 = vmatpush.bf16.msra.mxu0 %v805
    %869 = vmatpush.bf16.msra.mxu0 %v802
    %870 = vmatpush.bf16.msra.mxu0 %v799
    %871 = vmatpush.bf16.msra.mxu0 %v796
    %872 = vmatpush.bf16.msra.mxu0 %v793
    %873 = vmatmul.bf16.gmra.mxu0 0
    %v874 = vpop.f32.mrf.mxu0
    %v875 = vadd.f32 %v707, %v874
    %v876 = vpop.f32.mrf.mxu0
    %877 = vdwg.mxu0
    %v878 = vadd.f32 %v582, %v849
    %v879 = vxor.u32 %v878, 2147483648
    %v880 = vmul.f32 %v879, 1.442695
    %v881 = vpow.pop %v880
    %v882 = vadd.f32 %v881, 1.0
    %v883 = vrcp.pop %v882
    %v884 = vmul.f32 %v882, %v883
    %v885 = vsub.f32 1.0, %v884
    %v886 = vmul.f32 %v883, %v885
    %v887 = vadd.f32 %v883, %v886
    %vm888 = vweird.f32 %v882
    %vm889 = vweird.f32 %v883
    %vm890 = vmor %vm888, %vm889
    %v891 = vsel %vm890, %v883, %v887
    %v892 = vand.u32 2147483647, %v882
    %vm893 = vcmp.eq.f32.partialorder %v892, 8.507059e+37
    %v894 = vand.u32 %v882, 2147483648
    %v895 = vor.u32 1.1754944e-38, %v894
    %v896 = vsel %vm893, %v895, %v891
    %v897 = vmul.f32 1.0, %v896
    %v898 = vadd.f32 %v615, %v862
    %v899 = vxor.u32 %v898, 2147483648
    %v900 = vmul.f32 %v899, 1.442695
    %v901 = vpow.pop %v900
    %v902 = vadd.f32 %v901, 1.0
    %v903 = vrcp.pop %v902
    %v904 = vmul.f32 %v902, %v903
    %v905 = vsub.f32 1.0, %v904
    %v906 = vmul.f32 %v903, %v905
    %v907 = vadd.f32 %v903, %v906
    %vm908 = vweird.f32 %v902
    %vm909 = vweird.f32 %v903
    %vm910 = vmor %vm908, %vm909
    %v911 = vsel %vm910, %v903, %v907
    %v912 = vand.u32 2147483647, %v902
    %vm913 = vcmp.eq.f32.partialorder %v912, 8.507059e+37
    %v914 = vand.u32 %v902, 2147483648
    %v915 = vor.u32 1.1754944e-38, %v914
    %v916 = vsel %vm913, %v915, %v911
    %v917 = vmul.f32 1.0, %v916
    %v918 = vmul.f32 %v897, %v875
    %v919 = vadd.f32 %v648, %v918
    %v920 = vtanh.pop %v919
    %v921 = vsub.f32 1.0, %v917
    %v922 = vmul.f32 %v921, %v920
    %v923 = vmul.f32 %v917, 0.0
    %v924 = vadd.f32 %v922, %v923
    %v925 = vpack.c.bf16 %v924, %v924
    %926 = vst [vmem:[#allocation20] sm:$0xf] %v925
    %v927 = vld [vmem:[#allocation18] sm:$0xff]
    %v928 = vld [vmem:[#allocation18 + $0x8] sm:$0xf]
    %v929 = vld [vmem:[#allocation18 + $0xc] sm:$0xff]
    %v930 = vld [vmem:[#allocation18 + $0x14] sm:$0xf]
    %v931 = vld [vmem:[#allocation18 + $0x18] sm:$0xff]
    %v932 = vld [vmem:[#allocation18 + $0x20] sm:$0xf]
    %v933 = vld [vmem:[#allocation18 + $0x24] sm:$0xff]
    %v934 = vld [vmem:[#allocation18 + $0x2c] sm:$0xf]
    %v935 = vld [vmem:[#allocation18 + $0x30] sm:$0xff]
    %v936 = vld [vmem:[#allocation18 + $0x38] sm:$0xf]
    %v937 = vld [vmem:[#allocation18 + $0x3c] sm:$0xff]
    %v938 = vld [vmem:[#allocation18 + $0x44] sm:$0xf]
    %v939 = vld [vmem:[#allocation18 + $0x48] sm:$0xff]
    %v940 = vld [vmem:[#allocation18 + $0x50] sm:$0xf]
    %v941 = vld [vmem:[#allocation18 + $0x54] sm:$0xff]
    %v942 = vld [vmem:[#allocation18 + $0x5c] sm:$0xf]
    %v943 = vld [vmem:[#allocation18 + $0x60] sm:$0xff]
    %v944 = vld [vmem:[#allocation18 + $0x68] sm:$0xf]
    %v945 = vld [vmem:[#allocation18 + $0x6c] sm:$0xff]
    %v946 = vld [vmem:[#allocation18 + $0x74] sm:$0xf]
    %v947 = vld [vmem:[#allocation18 + $0x78] sm:$0xff]
    %v948 = vld [vmem:[#allocation18 + $0x80] sm:$0xf]
    %v949 = vld [vmem:[#allocation18 + $0x84] sm:$0xff]
    %v950 = vld [vmem:[#allocation18 + $0x8c] sm:$0xf]
    %v951 = vld [vmem:[#allocation18 + $0x90] sm:$0xff]
    %v952 = vld [vmem:[#allocation18 + $0x98] sm:$0xf]
    %v953 = vld [vmem:[#allocation18 + $0x9c] sm:$0xff]
    %v954 = vld [vmem:[#allocation18 + $0xa4] sm:$0xf]
    %v955 = vld [vmem:[#allocation18 + $0xa8] sm:$0xff]
    %v956 = vld [vmem:[#allocation18 + $0xb0] sm:$0xf]
    %v957 = vld [vmem:[#allocation18 + $0xb4] sm:$0xff]
    %v958 = vld [vmem:[#allocation18 + $0xbc] sm:$0xf]
    %v959 = vld [vmem:[%s11] sm:$0x7]
    %v961 = vperm.slane %v959, 0
    %v962 = vperm.slane %v959, 1
    %v963 = vperm.slane %v959, 2
    %v999 = vunpack.c.l.b16 %v927
    %v1000 = vunpack.c.h.b16 %v927
    %v1001 = vunpack.c.l.b16 %v928
    %v1002 = vunpack.c.l.b16 %v929
    %v1003 = vunpack.c.h.b16 %v929
    %v1004 = vunpack.c.l.b16 %v930
    %v1005 = vunpack.c.l.b16 %v931
    %v1006 = vunpack.c.h.b16 %v931
    %v1007 = vunpack.c.l.b16 %v932
    %v1008 = vunpack.c.l.b16 %v933
    %v1009 = vunpack.c.h.b16 %v933
    %v1010 = vunpack.c.l.b16 %v934
    %v1011 = vunpack.c.l.b16 %v935
    %v1012 = vunpack.c.h.b16 %v935
    %v1013 = vunpack.c.l.b16 %v936
    %v1014 = vunpack.c.l.b16 %v937
    %v1015 = vunpack.c.h.b16 %v937
    %v1016 = vunpack.c.l.b16 %v938
    %v1017 = vunpack.c.l.b16 %v939
    %v1018 = vunpack.c.h.b16 %v939
    %v1019 = vunpack.c.l.b16 %v940
    %v1020 = vunpack.c.l.b16 %v941
    %v1021 = vunpack.c.h.b16 %v941
    %v1022 = vunpack.c.l.b16 %v942
    %v1023 = vunpack.c.l.b16 %v943
    %v1024 = vunpack.c.h.b16 %v943
    %v1025 = vunpack.c.l.b16 %v944
    %v1026 = vunpack.c.l.b16 %v945
    %v1027 = vunpack.c.h.b16 %v945
    %v1028 = vunpack.c.l.b16 %v946
    %v1029 = vunpack.c.l.b16 %v947
    %v1030 = vunpack.c.h.b16 %v947
    %v1031 = vunpack.c.l.b16 %v948
    %v1032 = vunpack.c.l.b16 %v949
    %v1033 = vunpack.c.h.b16 %v949
    %v1034 = vunpack.c.l.b16 %v950
    %v1035 = vunpack.c.l.b16 %v951
    %v1036 = vunpack.c.h.b16 %v951
    %v1037 = vunpack.c.l.b16 %v952
    %v1038 = vunpack.c.l.b16 %v953
    %v1039 = vunpack.c.h.b16 %v953
    %v1040 = vunpack.c.l.b16 %v954
    %v1041 = vunpack.c.l.b16 %v955
    %v1042 = vunpack.c.h.b16 %v955
    %v1043 = vunpack.c.l.b16 %v956
    %v1044 = vunpack.c.l.b16 %v957
    %v1045 = vunpack.c.h.b16 %v957
    %v1046 = vunpack.c.l.b16 %v958
    %v1047 = vpack.c.b16 %v1002, %v999
    %v1048 = vpack.c.b16 %v1003, %v1000
    %v1049 = vpack.c.b16 %v1004, %v1001
    %v1050 = vpack.c.b16 %v1008, %v1005
    %v1051 = vpack.c.b16 %v1009, %v1006
    %v1052 = vpack.c.b16 %v1010, %v1007
    %v1053 = vpack.c.b16 %v1014, %v1011
    %v1054 = vpack.c.b16 %v1015, %v1012
    %v1055 = vpack.c.b16 %v1016, %v1013
    %v1056 = vpack.c.b16 %v1020, %v1017
    %v1057 = vpack.c.b16 %v1021, %v1018
    %v1058 = vpack.c.b16 %v1022, %v1019
    %v1059 = vpack.c.b16 %v1026, %v1023
    %v1060 = vpack.c.b16 %v1027, %v1024
    %v1061 = vpack.c.b16 %v1028, %v1025
    %v1062 = vpack.c.b16 %v1032, %v1029
    %v1063 = vpack.c.b16 %v1033, %v1030
    %v1064 = vpack.c.b16 %v1034, %v1031
    %v1065 = vpack.c.b16 %v1038, %v1035
    %v1066 = vpack.c.b16 %v1039, %v1036
    %v1067 = vpack.c.b16 %v1040, %v1037
    %v1068 = vpack.c.b16 %v1044, %v1041
    %v1069 = vpack.c.b16 %v1045, %v1042
    %v1070 = vpack.c.b16 %v1046, %v1043
    %1095 = vmatpush.bf16.msra.mxu0 %v1068
    %1096 = vmatpush.bf16.msra.mxu0 %v1065
    %1097 = vmatpush.bf16.msra.mxu0 %v1062
    %1098 = vmatpush.bf16.msra.mxu0 %v1059
    %1099 = vmatpush.bf16.msra.mxu0 %v1056
    %1100 = vmatpush.bf16.msra.mxu0 %v1053
    %1101 = vmatpush.bf16.msra.mxu0 %v1050
    %1102 = vmatpush.bf16.msra.mxu0 %v1047
    %1103 = vmatmul.bf16.gmra.mxu0 %v925
    %v1104 = vpop.f32.mrf.mxu0
    %v1105 = vadd.f32 %v961, %v1104
    %v1106 = vpop.f32.mrf.mxu0
    %1107 = vdwg.mxu0
    %1108 = vmatpush.bf16.msra.mxu0 %v1069
    %1109 = vmatpush.bf16.msra.mxu0 %v1066
    %1110 = vmatpush.bf16.msra.mxu0 %v1063
    %1111 = vmatpush.bf16.msra.mxu0 %v1060
    %1112 = vmatpush.bf16.msra.mxu0 %v1057
    %1113 = vmatpush.bf16.msra.mxu0 %v1054
    %1114 = vmatpush.bf16.msra.mxu0 %v1051
    %1115 = vmatpush.bf16.msra.mxu0 %v1048
    %1116 = vmatmul.bf16.gmra.mxu0 %v925
    %v1117 = vpop.f32.mrf.mxu0
    %v1118 = vadd.f32 %v962, %v1117
    %v1119 = vpop.f32.mrf.mxu0
    %1120 = vdwg.mxu0
    %1121 = vmatpush.bf16.msra.mxu0 %v1070
    %1122 = vmatpush.bf16.msra.mxu0 %v1067
    %1123 = vmatpush.bf16.msra.mxu0 %v1064
    %1124 = vmatpush.bf16.msra.mxu0 %v1061
    %1125 = vmatpush.bf16.msra.mxu0 %v1058
    %1126 = vmatpush.bf16.msra.mxu0 %v1055
    %1127 = vmatpush.bf16.msra.mxu0 %v1052
    %1128 = vmatpush.bf16.msra.mxu0 %v1049
    %1129 = vmatmul.bf16.gmra.mxu0 %v925
    %v1130 = vpop.f32.mrf.mxu0
    %v1131 = vadd.f32 %v963, %v1130
    %v1132 = vpop.f32.mrf.mxu0
    %1133 = vdwg.mxu0
    %v1134 = vadd.f32 %v584, %v1105
    %v1135 = vxor.u32 %v1134, 2147483648
    %v1136 = vmul.f32 %v1135, 1.442695
    %v1137 = vpow.pop %v1136
    %v1138 = vadd.f32 %v1137, 1.0
    %v1139 = vrcp.pop %v1138
    %v1140 = vmul.f32 %v1138, %v1139
    %v1141 = vsub.f32 1.0, %v1140
    %v1142 = vmul.f32 %v1139, %v1141
    %v1143 = vadd.f32 %v1139, %v1142
    %vm1144 = vweird.f32 %v1138
    %vm1145 = vweird.f32 %v1139
    %vm1146 = vmor %vm1144, %vm1145
    %v1147 = vsel %vm1146, %v1139, %v1143
    %v1148 = vand.u32 2147483647, %v1138
    %vm1149 = vcmp.eq.f32.partialorder %v1148, 8.507059e+37
    %v1150 = vand.u32 %v1138, 2147483648
    %v1151 = vor.u32 1.1754944e-38, %v1150
    %v1152 = vsel %vm1149, %v1151, %v1147
    %v1153 = vmul.f32 1.0, %v1152
    %v1154 = vadd.f32 %v617, %v1118
    %v1155 = vxor.u32 %v1154, 2147483648
    %v1156 = vmul.f32 %v1155, 1.442695
    %v1157 = vpow.pop %v1156
    %v1158 = vadd.f32 %v1157, 1.0
    %v1159 = vrcp.pop %v1158
    %v1160 = vmul.f32 %v1158, %v1159
    %v1161 = vsub.f32 1.0, %v1160
    %v1162 = vmul.f32 %v1159, %v1161
    %v1163 = vadd.f32 %v1159, %v1162
    %vm1164 = vweird.f32 %v1158
    %vm1165 = vweird.f32 %v1159
    %vm1166 = vmor %vm1164, %vm1165
    %v1167 = vsel %vm1166, %v1159, %v1163
    %v1168 = vand.u32 2147483647, %v1158
    %vm1169 = vcmp.eq.f32.partialorder %v1168, 8.507059e+37
    %v1170 = vand.u32 %v1158, 2147483648
    %v1171 = vor.u32 1.1754944e-38, %v1170
    %v1172 = vsel %vm1169, %v1171, %v1167
    %v1173 = vmul.f32 1.0, %v1172
    %v1174 = vmul.f32 %v1153, %v1131
    %v1175 = vadd.f32 %v650, %v1174
    %v1176 = vtanh.pop %v1175
    %v1177 = vsub.f32 1.0, %v1173
    %v1178 = vmul.f32 %v1177, %v1176
    %v1179 = vmul.f32 %v1173, %v924
    %v1180 = vadd.f32 %v1178, %v1179
    %v1181 = vpack.c.bf16 %v1180, %v1180
    %1182 = vst [vmem:[#allocation20 + $0x4] sm:$0xf] %v1181
    %v1183 = vld [vmem:[#allocation18] sm:$0xff]
    %v1184 = vld [vmem:[#allocation18 + $0x8] sm:$0xf]
    %v1185 = vld [vmem:[#allocation18 + $0xc] sm:$0xff]
    %v1186 = vld [vmem:[#allocation18 + $0x14] sm:$0xf]
    %v1187 = vld [vmem:[#allocation18 + $0x18] sm:$0xff]
    %v1188 = vld [vmem:[#allocation18 + $0x20] sm:$0xf]
    %v1189 = vld [vmem:[#allocation18 + $0x24] sm:$0xff]
    %v1190 = vld [vmem:[#allocation18 + $0x2c] sm:$0xf]
    %v1191 = vld [vmem:[#allocation18 + $0x30] sm:$0xff]
    %v1192 = vld [vmem:[#allocation18 + $0x38] sm:$0xf]
    %v1193 = vld [vmem:[#allocation18 + $0x3c] sm:$0xff]
    %v1194 = vld [vmem:[#allocation18 + $0x44] sm:$0xf]
    %v1195 = vld [vmem:[#allocation18 + $0x48] sm:$0xff]
    %v1196 = vld [vmem:[#allocation18 + $0x50] sm:$0xf]
    %v1197 = vld [vmem:[#allocation18 + $0x54] sm:$0xff]
    %v1198 = vld [vmem:[#allocation18 + $0x5c] sm:$0xf]
    %v1199 = vld [vmem:[#allocation18 + $0x60] sm:$0xff]
    %v1200 = vld [vmem:[#allocation18 + $0x68] sm:$0xf]
    %v1201 = vld [vmem:[#allocation18 + $0x6c] sm:$0xff]
    %v1202 = vld [vmem:[#allocation18 + $0x74] sm:$0xf]
    %v1203 = vld [vmem:[#allocation18 + $0x78] sm:$0xff]
    %v1204 = vld [vmem:[#allocation18 + $0x80] sm:$0xf]
    %v1205 = vld [vmem:[#allocation18 + $0x84] sm:$0xff]
    %v1206 = vld [vmem:[#allocation18 + $0x8c] sm:$0xf]
    %v1207 = vld [vmem:[#allocation18 + $0x90] sm:$0xff]
    %v1208 = vld [vmem:[#allocation18 + $0x98] sm:$0xf]
    %v1209 = vld [vmem:[#allocation18 + $0x9c] sm:$0xff]
    %v1210 = vld [vmem:[#allocation18 + $0xa4] sm:$0xf]
    %v1211 = vld [vmem:[#allocation18 + $0xa8] sm:$0xff]
    %v1212 = vld [vmem:[#allocation18 + $0xb0] sm:$0xf]
    %v1213 = vld [vmem:[#allocation18 + $0xb4] sm:$0xff]
    %v1214 = vld [vmem:[#allocation18 + $0xbc] sm:$0xf]
    %v1215 = vld [vmem:[%s11] sm:$0x7]
    %v1217 = vperm.slane %v1215, 0
    %v1218 = vperm.slane %v1215, 1
    %v1219 = vperm.slane %v1215, 2
    %v1255 = vunpack.c.l.b16 %v1183
    %v1256 = vunpack.c.h.b16 %v1183
    %v1257 = vunpack.c.l.b16 %v1184
    %v1258 = vunpack.c.l.b16 %v1185
    %v1259 = vunpack.c.h.b16 %v1185
    %v1260 = vunpack.c.l.b16 %v1186
    %v1261 = vunpack.c.l.b16 %v1187
    %v1262 = vunpack.c.h.b16 %v1187
    %v1263 = vunpack.c.l.b16 %v1188
    %v1264 = vunpack.c.l.b16 %v1189
    %v1265 = vunpack.c.h.b16 %v1189
    %v1266 = vunpack.c.l.b16 %v1190
    %v1267 = vunpack.c.l.b16 %v1191
    %v1268 = vunpack.c.h.b16 %v1191
    %v1269 = vunpack.c.l.b16 %v1192
    %v1270 = vunpack.c.l.b16 %v1193
    %v1271 = vunpack.c.h.b16 %v1193
    %v1272 = vunpack.c.l.b16 %v1194
    %v1273 = vunpack.c.l.b16 %v1195
    %v1274 = vunpack.c.h.b16 %v1195
    %v1275 = vunpack.c.l.b16 %v1196
    %v1276 = vunpack.c.l.b16 %v1197
    %v1277 = vunpack.c.h.b16 %v1197
    %v1278 = vunpack.c.l.b16 %v1198
    %v1279 = vunpack.c.l.b16 %v1199
    %v1280 = vunpack.c.h.b16 %v1199
    %v1281 = vunpack.c.l.b16 %v1200
    %v1282 = vunpack.c.l.b16 %v1201
    %v1283 = vunpack.c.h.b16 %v1201
    %v1284 = vunpack.c.l.b16 %v1202
    %v1285 = vunpack.c.l.b16 %v1203
    %v1286 = vunpack.c.h.b16 %v1203
    %v1287 = vunpack.c.l.b16 %v1204
    %v1288 = vunpack.c.l.b16 %v1205
    %v1289 = vunpack.c.h.b16 %v1205
    %v1290 = vunpack.c.l.b16 %v1206
    %v1291 = vunpack.c.l.b16 %v1207
    %v1292 = vunpack.c.h.b16 %v1207
    %v1293 = vunpack.c.l.b16 %v1208
    %v1294 = vunpack.c.l.b16 %v1209
    %v1295 = vunpack.c.h.b16 %v1209
    %v1296 = vunpack.c.l.b16 %v1210
    %v1297 = vunpack.c.l.b16 %v1211
    %v1298 = vunpack.c.h.b16 %v1211
    %v1299 = vunpack.c.l.b16 %v1212
    %v1300 = vunpack.c.l.b16 %v1213
    %v1301 = vunpack.c.h.b16 %v1213
    %v1302 = vunpack.c.l.b16 %v1214
    %v1303 = vpack.c.b16 %v1258, %v1255
    %v1304 = vpack.c.b16 %v1259, %v1256
    %v1305 = vpack.c.b16 %v1260, %v1257
    %v1306 = vpack.c.b16 %v1264, %v1261
    %v1307 = vpack.c.b16 %v1265, %v1262
    %v1308 = vpack.c.b16 %v1266, %v1263
    %v1309 = vpack.c.b16 %v1270, %v1267
    %v1310 = vpack.c.b16 %v1271, %v1268
    %v1311 = vpack.c.b16 %v1272, %v1269
    %v1312 = vpack.c.b16 %v1276, %v1273
    %v1313 = vpack.c.b16 %v1277, %v1274
    %v1314 = vpack.c.b16 %v1278, %v1275
    %v1315 = vpack.c.b16 %v1282, %v1279
    %v1316 = vpack.c.b16 %v1283, %v1280
    %v1317 = vpack.c.b16 %v1284, %v1281
    %v1318 = vpack.c.b16 %v1288, %v1285
    %v1319 = vpack.c.b16 %v1289, %v1286
    %v1320 = vpack.c.b16 %v1290, %v1287
    %v1321 = vpack.c.b16 %v1294, %v1291
    %v1322 = vpack.c.b16 %v1295, %v1292
    %v1323 = vpack.c.b16 %v1296, %v1293
    %v1324 = vpack.c.b16 %v1300, %v1297
    %v1325 = vpack.c.b16 %v1301, %v1298
    %v1326 = vpack.c.b16 %v1302, %v1299
    %1351 = vmatpush.bf16.msra.mxu0 %v1324
    %1352 = vmatpush.bf16.msra.mxu0 %v1321
    %1353 = vmatpush.bf16.msra.mxu0 %v1318
    %1354 = vmatpush.bf16.msra.mxu0 %v1315
    %1355 = vmatpush.bf16.msra.mxu0 %v1312
    %1356 = vmatpush.bf16.msra.mxu0 %v1309
    %1357 = vmatpush.bf16.msra.mxu0 %v1306
    %1358 = vmatpush.bf16.msra.mxu0 %v1303
    %1359 = vmatmul.bf16.gmra.mxu0 %v1181
    %v1360 = vpop.f32.mrf.mxu0
    %v1361 = vadd.f32 %v1217, %v1360
    %v1362 = vpop.f32.mrf.mxu0
    %1363 = vdwg.mxu0
    %1364 = vmatpush.bf16.msra.mxu0 %v1325
    %1365 = vmatpush.bf16.msra.mxu0 %v1322
    %1366 = vmatpush.bf16.msra.mxu0 %v1319
    %1367 = vmatpush.bf16.msra.mxu0 %v1316
    %1368 = vmatpush.bf16.msra.mxu0 %v1313
    %1369 = vmatpush.bf16.msra.mxu0 %v1310
    %1370 = vmatpush.bf16.msra.mxu0 %v1307
    %1371 = vmatpush.bf16.msra.mxu0 %v1304
    %1372 = vmatmul.bf16.gmra.mxu0 %v1181
    %v1373 = vpop.f32.mrf.mxu0
    %v1374 = vadd.f32 %v1218, %v1373
    %v1375 = vpop.f32.mrf.mxu0
    %1376 = vdwg.mxu0
    %1377 = vmatpush.bf16.msra.mxu0 %v1326
    %1378 = vmatpush.bf16.msra.mxu0 %v1323
    %1379 = vmatpush.bf16.msra.mxu0 %v1320
    %1380 = vmatpush.bf16.msra.mxu0 %v1317
    %1381 = vmatpush.bf16.msra.mxu0 %v1314
    %1382 = vmatpush.bf16.msra.mxu0 %v1311
    %1383 = vmatpush.bf16.msra.mxu0 %v1308
    %1384 = vmatpush.bf16.msra.mxu0 %v1305
    %1385 = vmatmul.bf16.gmra.mxu0 %v1181
    %v1386 = vpop.f32.mrf.mxu0
    %v1387 = vadd.f32 %v1219, %v1386
    %v1388 = vpop.f32.mrf.mxu0
    %1389 = vdwg.mxu0
    %v1390 = vadd.f32 %v587, %v1361
    %v1391 = vxor.u32 %v1390, 2147483648
    %v1392 = vmul.f32 %v1391, 1.442695
    %v1393 = vpow.pop %v1392
    %v1394 = vadd.f32 %v1393, 1.0
    %v1395 = vrcp.pop %v1394
    %v1396 = vmul.f32 %v1394, %v1395
    %v1397 = vsub.f32 1.0, %v1396
    %v1398 = vmul.f32 %v1395, %v1397
    %v1399 = vadd.f32 %v1395, %v1398
    %vm1400 = vweird.f32 %v1394
    %vm1401 = vweird.f32 %v1395
    %vm1402 = vmor %vm1400, %vm1401
    %v1403 = vsel %vm1402, %v1395, %v1399
    %v1404 = vand.u32 2147483647, %v1394
    %vm1405 = vcmp.eq.f32.partialorder %v1404, 8.507059e+37
    %v1406 = vand.u32 %v1394, 2147483648
    %v1407 = vor.u32 1.1754944e-38, %v1406
    %v1408 = vsel %vm1405, %v1407, %v1403
    %v1409 = vmul.f32 1.0, %v1408
    %v1410 = vadd.f32 %v620, %v1374
    %v1411 = vxor.u32 %v1410, 2147483648
    %v1412 = vmul.f32 %v1411, 1.442695
    %v1413 = vpow.pop %v1412
    %v1414 = vadd.f32 %v1413, 1.0
    %v1415 = vrcp.pop %v1414
    %v1416 = vmul.f32 %v1414, %v1415
    %v1417 = vsub.f32 1.0, %v1416
    %v1418 = vmul.f32 %v1415, %v1417
    %v1419 = vadd.f32 %v1415, %v1418
    %vm1420 = vweird.f32 %v1414
    %vm1421 = vweird.f32 %v1415
    %vm1422 = vmor %vm1420, %vm1421
    %v1423 = vsel %vm1422, %v1415, %v1419
    %v1424 = vand.u32 2147483647, %v1414
    %vm1425 = vcmp.eq.f32.partialorder %v1424, 8.507059e+37
    %v1426 = vand.u32 %v1414, 2147483648
    %v1427 = vor.u32 1.1754944e-38, %v1426
    %v1428 = vsel %vm1425, %v1427, %v1423
    %v1429 = vmul.f32 1.0, %v1428
    %v1430 = vmul.f32 %v1409, %v1387
    %v1431 = vadd.f32 %v653, %v1430
    %v1432 = vtanh.pop %v1431
    %v1433 = vsub.f32 1.0, %v1429
    %v1434 = vmul.f32 %v1433, %v1432
    %v1435 = vmul.f32 %v1429, %v1180
    %v1436 = vadd.f32 %v1434, %v1435
    %v1437 = vpack.c.bf16 %v1436, %v1436
    %1438 = vst [vmem:[#allocation20 + $0x8] sm:$0xf] %v1437
    %v1439 = vld [vmem:[#allocation18] sm:$0xff]
    %v1440 = vld [vmem:[#allocation18 + $0x8] sm:$0xf]
    %v1441 = vld [vmem:[#allocation18 + $0xc] sm:$0xff]
    %v1442 = vld [vmem:[#allocation18 + $0x14] sm:$0xf]
    %v1443 = vld [vmem:[#allocation18 + $0x18] sm:$0xff]
    %v1444 = vld [vmem:[#allocation18 + $0x20] sm:$0xf]
    %v1445 = vld [vmem:[#allocation18 + $0x24] sm:$0xff]
    %v1446 = vld [vmem:[#allocation18 + $0x2c] sm:$0xf]
    %v1447 = vld [vmem:[#allocation18 + $0x30] sm:$0xff]
    %v1448 = vld [vmem:[#allocation18 + $0x38] sm:$0xf]
    %v1449 = vld [vmem:[#allocation18 + $0x3c] sm:$0xff]
    %v1450 = vld [vmem:[#allocation18 + $0x44] sm:$0xf]
    %v1451 = vld [vmem:[#allocation18 + $0x48] sm:$0xff]
    %v1452 = vld [vmem:[#allocation18 + $0x50] sm:$0xf]
    %v1453 = vld [vmem:[#allocation18 + $0x54] sm:$0xff]
    %v1454 = vld [vmem:[#allocation18 + $0x5c] sm:$0xf]
    %v1455 = vld [vmem:[#allocation18 + $0x60] sm:$0xff]
    %v1456 = vld [vmem:[#allocation18 + $0x68] sm:$0xf]
    %v1457 = vld [vmem:[#allocation18 + $0x6c] sm:$0xff]
    %v1458 = vld [vmem:[#allocation18 + $0x74] sm:$0xf]
    %v1459 = vld [vmem:[#allocation18 + $0x78] sm:$0xff]
    %v1460 = vld [vmem:[#allocation18 + $0x80] sm:$0xf]
    %v1461 = vld [vmem:[#allocation18 + $0x84] sm:$0xff]
    %v1462 = vld [vmem:[#allocation18 + $0x8c] sm:$0xf]
    %v1463 = vld [vmem:[#allocation18 + $0x90] sm:$0xff]
    %v1464 = vld [vmem:[#allocation18 + $0x98] sm:$0xf]
    %v1465 = vld [vmem:[#allocation18 + $0x9c] sm:$0xff]
    %v1466 = vld [vmem:[#allocation18 + $0xa4] sm:$0xf]
    %v1467 = vld [vmem:[#allocation18 + $0xa8] sm:$0xff]
    %v1468 = vld [vmem:[#allocation18 + $0xb0] sm:$0xf]
    %v1469 = vld [vmem:[#allocation18 + $0xb4] sm:$0xff]
    %v1470 = vld [vmem:[#allocation18 + $0xbc] sm:$0xf]
    %v1471 = vld [vmem:[%s11] sm:$0x7]
    %v1473 = vperm.slane %v1471, 0
    %v1474 = vperm.slane %v1471, 1
    %v1475 = vperm.slane %v1471, 2
    %v1511 = vunpack.c.l.b16 %v1439
    %v1512 = vunpack.c.h.b16 %v1439
    %v1513 = vunpack.c.l.b16 %v1440
    %v1514 = vunpack.c.l.b16 %v1441
    %v1515 = vunpack.c.h.b16 %v1441
    %v1516 = vunpack.c.l.b16 %v1442
    %v1517 = vunpack.c.l.b16 %v1443
    %v1518 = vunpack.c.h.b16 %v1443
    %v1519 = vunpack.c.l.b16 %v1444
    %v1520 = vunpack.c.l.b16 %v1445
    %v1521 = vunpack.c.h.b16 %v1445
    %v1522 = vunpack.c.l.b16 %v1446
    %v1523 = vunpack.c.l.b16 %v1447
    %v1524 = vunpack.c.h.b16 %v1447
    %v1525 = vunpack.c.l.b16 %v1448
    %v1526 = vunpack.c.l.b16 %v1449
    %v1527 = vunpack.c.h.b16 %v1449
    %v1528 = vunpack.c.l.b16 %v1450
    %v1529 = vunpack.c.l.b16 %v1451
    %v1530 = vunpack.c.h.b16 %v1451
    %v1531 = vunpack.c.l.b16 %v1452
    %v1532 = vunpack.c.l.b16 %v1453
    %v1533 = vunpack.c.h.b16 %v1453
    %v1534 = vunpack.c.l.b16 %v1454
    %v1535 = vunpack.c.l.b16 %v1455
    %v1536 = vunpack.c.h.b16 %v1455
    %v1537 = vunpack.c.l.b16 %v1456
    %v1538 = vunpack.c.l.b16 %v1457
    %v1539 = vunpack.c.h.b16 %v1457
    %v1540 = vunpack.c.l.b16 %v1458
    %v1541 = vunpack.c.l.b16 %v1459
    %v1542 = vunpack.c.h.b16 %v1459
    %v1543 = vunpack.c.l.b16 %v1460
    %v1544 = vunpack.c.l.b16 %v1461
    %v1545 = vunpack.c.h.b16 %v1461
    %v1546 = vunpack.c.l.b16 %v1462
    %v1547 = vunpack.c.l.b16 %v1463
    %v1548 = vunpack.c.h.b16 %v1463
    %v1549 = vunpack.c.l.b16 %v1464
    %v1550 = vunpack.c.l.b16 %v1465
    %v1551 = vunpack.c.h.b16 %v1465
    %v1552 = vunpack.c.l.b16 %v1466
    %v1553 = vunpack.c.l.b16 %v1467
    %v1554 = vunpack.c.h.b16 %v1467
    %v1555 = vunpack.c.l.b16 %v1468
    %v1556 = vunpack.c.l.b16 %v1469
    %v1557 = vunpack.c.h.b16 %v1469
    %v1558 = vunpack.c.l.b16 %v1470
    %v1559 = vpack.c.b16 %v1514, %v1511
    %v1560 = vpack.c.b16 %v1515, %v1512
    %v1561 = vpack.c.b16 %v1516, %v1513
    %v1562 = vpack.c.b16 %v1520, %v1517
    %v1563 = vpack.c.b16 %v1521, %v1518
    %v1564 = vpack.c.b16 %v1522, %v1519
    %v1565 = vpack.c.b16 %v1526, %v1523
    %v1566 = vpack.c.b16 %v1527, %v1524
    %v1567 = vpack.c.b16 %v1528, %v1525
    %v1568 = vpack.c.b16 %v1532, %v1529
    %v1569 = vpack.c.b16 %v1533, %v1530
    %v1570 = vpack.c.b16 %v1534, %v1531
    %v1571 = vpack.c.b16 %v1538, %v1535
    %v1572 = vpack.c.b16 %v1539, %v1536
    %v1573 = vpack.c.b16 %v1540, %v1537
    %v1574 = vpack.c.b16 %v1544, %v1541
    %v1575 = vpack.c.b16 %v1545, %v1542
    %v1576 = vpack.c.b16 %v1546, %v1543
    %v1577 = vpack.c.b16 %v1550, %v1547
    %v1578 = vpack.c.b16 %v1551, %v1548
    %v1579 = vpack.c.b16 %v1552, %v1549
    %v1580 = vpack.c.b16 %v1556, %v1553
    %v1581 = vpack.c.b16 %v1557, %v1554
    %v1582 = vpack.c.b16 %v1558, %v1555
    %1607 = vmatpush.bf16.msra.mxu0 %v1580
    %1608 = vmatpush.bf16.msra.mxu0 %v1577
    %1609 = vmatpush.bf16.msra.mxu0 %v1574
    %1610 = vmatpush.bf16.msra.mxu0 %v1571
    %1611 = vmatpush.bf16.msra.mxu0 %v1568
    %1612 = vmatpush.bf16.msra.mxu0 %v1565
    %1613 = vmatpush.bf16.msra.mxu0 %v1562
    %1614 = vmatpush.bf16.msra.mxu0 %v1559
    %1615 = vmatmul.bf16.gmra.mxu0 %v1437
    %v1616 = vpop.f32.mrf.mxu0
    %v1617 = vadd.f32 %v1473, %v1616
    %v1618 = vpop.f32.mrf.mxu0
    %1619 = vdwg.mxu0
    %1620 = vmatpush.bf16.msra.mxu0 %v1581
    %1621 = vmatpush.bf16.msra.mxu0 %v1578
    %1622 = vmatpush.bf16.msra.mxu0 %v1575
    %1623 = vmatpush.bf16.msra.mxu0 %v1572
    %1624 = vmatpush.bf16.msra.mxu0 %v1569
    %1625 = vmatpush.bf16.msra.mxu0 %v1566
    %1626 = vmatpush.bf16.msra.mxu0 %v1563
    %1627 = vmatpush.bf16.msra.mxu0 %v1560
    %1628 = vmatmul.bf16.gmra.mxu0 %v1437
    %v1629 = vpop.f32.mrf.mxu0
    %v1630 = vadd.f32 %v1474, %v1629
    %v1631 = vpop.f32.mrf.mxu0
    %1632 = vdwg.mxu0
    %1633 = vmatpush.bf16.msra.mxu0 %v1582
    %1634 = vmatpush.bf16.msra.mxu0 %v1579
    %1635 = vmatpush.bf16.msra.mxu0 %v1576
    %1636 = vmatpush.bf16.msra.mxu0 %v1573
    %1637 = vmatpush.bf16.msra.mxu0 %v1570
    %1638 = vmatpush.bf16.msra.mxu0 %v1567
    %1639 = vmatpush.bf16.msra.mxu0 %v1564
    %1640 = vmatpush.bf16.msra.mxu0 %v1561
    %1641 = vmatmul.bf16.gmra.mxu0 %v1437
    %v1642 = vpop.f32.mrf.mxu0
    %v1643 = vadd.f32 %v1475, %v1642
    %v1644 = vpop.f32.mrf.mxu0
    %1645 = vdwg.mxu0
    %v1646 = vadd.f32 %v589, %v1617
    %v1647 = vxor.u32 %v1646, 2147483648
    %v1648 = vmul.f32 %v1647, 1.442695
    %v1649 = vpow.pop %v1648
    %v1650 = vadd.f32 %v1649, 1.0
    %v1651 = vrcp.pop %v1650
    %v1652 = vmul.f32 %v1650, %v1651
    %v1653 = vsub.f32 1.0, %v1652
    %v1654 = vmul.f32 %v1651, %v1653
    %v1655 = vadd.f32 %v1651, %v1654
    %vm1656 = vweird.f32 %v1650
    %vm1657 = vweird.f32 %v1651
    %vm1658 = vmor %vm1656, %vm1657
    %v1659 = vsel %vm1658, %v1651, %v1655
    %v1660 = vand.u32 2147483647, %v1650
    %vm1661 = vcmp.eq.f32.partialorder %v1660, 8.507059e+37
    %v1662 = vand.u32 %v1650, 2147483648
    %v1663 = vor.u32 1.1754944e-38, %v1662
    %v1664 = vsel %vm1661, %v1663, %v1659
    %v1665 = vmul.f32 1.0, %v1664
    %v1666 = vadd.f32 %v622, %v1630
    %v1667 = vxor.u32 %v1666, 2147483648
    %v1668 = vmul.f32 %v1667, 1.442695
    %v1669 = vpow.pop %v1668
    %v1670 = vadd.f32 %v1669, 1.0
    %v1671 = vrcp.pop %v1670
    %v1672 = vmul.f32 %v1670, %v1671
    %v1673 = vsub.f32 1.0, %v1672
    %v1674 = vmul.f32 %v1671, %v1673
    %v1675 = vadd.f32 %v1671, %v1674
    %vm1676 = vweird.f32 %v1670
    %vm1677 = vweird.f32 %v1671
    %vm1678 = vmor %vm1676, %vm1677
    %v1679 = vsel %vm1678, %v1671, %v1675
    %v1680 = vand.u32 2147483647, %v1670
    %vm1681 = vcmp.eq.f32.partialorder %v1680, 8.507059e+37
    %v1682 = vand.u32 %v1670, 2147483648
    %v1683 = vor.u32 1.1754944e-38, %v1682
    %v1684 = vsel %vm1681, %v1683, %v1679
    %v1685 = vmul.f32 1.0, %v1684
    %v1686 = vmul.f32 %v1665, %v1643
    %v1687 = vadd.f32 %v655, %v1686
    %v1688 = vtanh.pop %v1687
    %v1689 = vsub.f32 1.0, %v1685
    %v1690 = vmul.f32 %v1689, %v1688
    %v1691 = vmul.f32 %v1685, %v1436
    %v1692 = vadd.f32 %v1690, %v1691
    %v1693 = vpack.c.bf16 %v1692, %v1692
    %1694 = vst [vmem:[#allocation20 + $0xc] sm:$0xf] %v1693
    %v1695 = vld [vmem:[#allocation18] sm:$0xff]
    %v1696 = vld [vmem:[#allocation18 + $0x8] sm:$0xf]
    %v1697 = vld [vmem:[#allocation18 + $0xc] sm:$0xff]
    %v1698 = vld [vmem:[#allocation18 + $0x14] sm:$0xf]
    %v1699 = vld [vmem:[#allocation18 + $0x18] sm:$0xff]
    %v1700 = vld [vmem:[#allocation18 + $0x20] sm:$0xf]
    %v1701 = vld [vmem:[#allocation18 + $0x24] sm:$0xff]
    %v1702 = vld [vmem:[#allocation18 + $0x2c] sm:$0xf]
    %v1703 = vld [vmem:[#allocation18 + $0x30] sm:$0xff]
    %v1704 = vld [vmem:[#allocation18 + $0x38] sm:$0xf]
    %v1705 = vld [vmem:[#allocation18 + $0x3c] sm:$0xff]
    %v1706 = vld [vmem:[#allocation18 + $0x44] sm:$0xf]
    %v1707 = vld [vmem:[#allocation18 + $0x48] sm:$0xff]
    %v1708 = vld [vmem:[#allocation18 + $0x50] sm:$0xf]
    %v1709 = vld [vmem:[#allocation18 + $0x54] sm:$0xff]
    %v1710 = vld [vmem:[#allocation18 + $0x5c] sm:$0xf]
    %v1711 = vld [vmem:[#allocation18 + $0x60] sm:$0xff]
    %v1712 = vld [vmem:[#allocation18 + $0x68] sm:$0xf]
    %v1713 = vld [vmem:[#allocation18 + $0x6c] sm:$0xff]
    %v1714 = vld [vmem:[#allocation18 + $0x74] sm:$0xf]
    %v1715 = vld [vmem:[#allocation18 + $0x78] sm:$0xff]
    %v1716 = vld [vmem:[#allocation18 + $0x80] sm:$0xf]
    %v1717 = vld [vmem:[#allocation18 + $0x84] sm:$0xff]
    %v1718 = vld [vmem:[#allocation18 + $0x8c] sm:$0xf]
    %v1719 = vld [vmem:[#allocation18 + $0x90] sm:$0xff]
    %v1720 = vld [vmem:[#allocation18 + $0x98] sm:$0xf]
    %v1721 = vld [vmem:[#allocation18 + $0x9c] sm:$0xff]
    %v1722 = vld [vmem:[#allocation18 + $0xa4] sm:$0xf]
    %v1723 = vld [vmem:[#allocation18 + $0xa8] sm:$0xff]
    %v1724 = vld [vmem:[#allocation18 + $0xb0] sm:$0xf]
    %v1725 = vld [vmem:[#allocation18 + $0xb4] sm:$0xff]
    %v1726 = vld [vmem:[#allocation18 + $0xbc] sm:$0xf]
    %v1727 = vld [vmem:[%s11] sm:$0x7]
    %v1729 = vperm.slane %v1727, 0
    %v1730 = vperm.slane %v1727, 1
    %v1731 = vperm.slane %v1727, 2
    %v1767 = vunpack.c.l.b16 %v1695
    %v1768 = vunpack.c.h.b16 %v1695
    %v1769 = vunpack.c.l.b16 %v1696
    %v1770 = vunpack.c.l.b16 %v1697
    %v1771 = vunpack.c.h.b16 %v1697
    %v1772 = vunpack.c.l.b16 %v1698
    %v1773 = vunpack.c.l.b16 %v1699
    %v1774 = vunpack.c.h.b16 %v1699
    %v1775 = vunpack.c.l.b16 %v1700
    %v1776 = vunpack.c.l.b16 %v1701
    %v1777 = vunpack.c.h.b16 %v1701
    %v1778 = vunpack.c.l.b16 %v1702
    %v1779 = vunpack.c.l.b16 %v1703
    %v1780 = vunpack.c.h.b16 %v1703
    %v1781 = vunpack.c.l.b16 %v1704
    %v1782 = vunpack.c.l.b16 %v1705
    %v1783 = vunpack.c.h.b16 %v1705
    %v1784 = vunpack.c.l.b16 %v1706
    %v1785 = vunpack.c.l.b16 %v1707
    %v1786 = vunpack.c.h.b16 %v1707
    %v1787 = vunpack.c.l.b16 %v1708
    %v1788 = vunpack.c.l.b16 %v1709
    %v1789 = vunpack.c.h.b16 %v1709
    %v1790 = vunpack.c.l.b16 %v1710
    %v1791 = vunpack.c.l.b16 %v1711
    %v1792 = vunpack.c.h.b16 %v1711
    %v1793 = vunpack.c.l.b16 %v1712
    %v1794 = vunpack.c.l.b16 %v1713
    %v1795 = vunpack.c.h.b16 %v1713
    %v1796 = vunpack.c.l.b16 %v1714
    %v1797 = vunpack.c.l.b16 %v1715
    %v1798 = vunpack.c.h.b16 %v1715
    %v1799 = vunpack.c.l.b16 %v1716
    %v1800 = vunpack.c.l.b16 %v1717
    %v1801 = vunpack.c.h.b16 %v1717
    %v1802 = vunpack.c.l.b16 %v1718
    %v1803 = vunpack.c.l.b16 %v1719
    %v1804 = vunpack.c.h.b16 %v1719
    %v1805 = vunpack.c.l.b16 %v1720
    %v1806 = vunpack.c.l.b16 %v1721
    %v1807 = vunpack.c.h.b16 %v1721
    %v1808 = vunpack.c.l.b16 %v1722
    %v1809 = vunpack.c.l.b16 %v1723
    %v1810 = vunpack.c.h.b16 %v1723
    %v1811 = vunpack.c.l.b16 %v1724
    %v1812 = vunpack.c.l.b16 %v1725
    %v1813 = vunpack.c.h.b16 %v1725
    %v1814 = vunpack.c.l.b16 %v1726
    %v1815 = vpack.c.b16 %v1770, %v1767
    %v1816 = vpack.c.b16 %v1771, %v1768
    %v1817 = vpack.c.b16 %v1772, %v1769
    %v1818 = vpack.c.b16 %v1776, %v1773
    %v1819 = vpack.c.b16 %v1777, %v1774
    %v1820 = vpack.c.b16 %v1778, %v1775
    %v1821 = vpack.c.b16 %v1782, %v1779
    %v1822 = vpack.c.b16 %v1783, %v1780
    %v1823 = vpack.c.b16 %v1784, %v1781
    %v1824 = vpack.c.b16 %v1788, %v1785
    %v1825 = vpack.c.b16 %v1789, %v1786
    %v1826 = vpack.c.b16 %v1790, %v1787
    %v1827 = vpack.c.b16 %v1794, %v1791
    %v1828 = vpack.c.b16 %v1795, %v1792
    %v1829 = vpack.c.b16 %v1796, %v1793
    %v1830 = vpack.c.b16 %v1800, %v1797
    %v1831 = vpack.c.b16 %v1801, %v1798
    %v1832 = vpack.c.b16 %v1802, %v1799
    %v1833 = vpack.c.b16 %v1806, %v1803
    %v1834 = vpack.c.b16 %v1807, %v1804
    %v1835 = vpack.c.b16 %v1808, %v1805
    %v1836 = vpack.c.b16 %v1812, %v1809
    %v1837 = vpack.c.b16 %v1813, %v1810
    %v1838 = vpack.c.b16 %v1814, %v1811
    %1863 = vmatpush.bf16.msra.mxu0 %v1836
    %1864 = vmatpush.bf16.msra.mxu0 %v1833
    %1865 = vmatpush.bf16.msra.mxu0 %v1830
    %1866 = vmatpush.bf16.msra.mxu0 %v1827
    %1867 = vmatpush.bf16.msra.mxu0 %v1824
    %1868 = vmatpush.bf16.msra.mxu0 %v1821
    %1869 = vmatpush.bf16.msra.mxu0 %v1818
    %1870 = vmatpush.bf16.msra.mxu0 %v1815
    %1871 = vmatmul.bf16.gmra.mxu0 %v1693
    %v1872 = vpop.f32.mrf.mxu0
    %v1873 = vadd.f32 %v1729, %v1872
    %v1874 = vpop.f32.mrf.mxu0
    %1875 = vdwg.mxu0
    %1876 = vmatpush.bf16.msra.mxu0 %v1837
    %1877 = vmatpush.bf16.msra.mxu0 %v1834
    %1878 = vmatpush.bf16.msra.mxu0 %v1831
    %1879 = vmatpush.bf16.msra.mxu0 %v1828
    %1880 = vmatpush.bf16.msra.mxu0 %v1825
    %1881 = vmatpush.bf16.msra.mxu0 %v1822
    %1882 = vmatpush.bf16.msra.mxu0 %v1819
    %1883 = vmatpush.bf16.msra.mxu0 %v1816
    %1884 = vmatmul.bf16.gmra.mxu0 %v1693
    %v1885 = vpop.f32.mrf.mxu0
    %v1886 = vadd.f32 %v1730, %v1885
    %v1887 = vpop.f32.mrf.mxu0
    %1888 = vdwg.mxu0
    %1889 = vmatpush.bf16.msra.mxu0 %v1838
    %1890 = vmatpush.bf16.msra.mxu0 %v1835
    %1891 = vmatpush.bf16.msra.mxu0 %v1832
    %1892 = vmatpush.bf16.msra.mxu0 %v1829
    %1893 = vmatpush.bf16.msra.mxu0 %v1826
    %1894 = vmatpush.bf16.msra.mxu0 %v1823
    %1895 = vmatpush.bf16.msra.mxu0 %v1820
    %1896 = vmatpush.bf16.msra.mxu0 %v1817
    %1897 = vmatmul.bf16.gmra.mxu0 %v1693
    %v1898 = vpop.f32.mrf.mxu0
    %v1899 = vadd.f32 %v1731, %v1898
    %v1900 = vpop.f32.mrf.mxu0
    %1901 = vdwg.mxu0
    %v1902 = vadd.f32 %v592, %v1873
    %v1903 = vxor.u32 %v1902, 2147483648
    %v1904 = vmul.f32 %v1903, 1.442695
    %v1905 = vpow.pop %v1904
    %v1906 = vadd.f32 %v1905, 1.0
    %v1907 = vrcp.pop %v1906
    %v1908 = vmul.f32 %v1906, %v1907
    %v1909 = vsub.f32 1.0, %v1908
    %v1910 = vmul.f32 %v1907, %v1909
    %v1911 = vadd.f32 %v1907, %v1910
    %vm1912 = vweird.f32 %v1906
    %vm1913 = vweird.f32 %v1907
    %vm1914 = vmor %vm1912, %vm1913
    %v1915 = vsel %vm1914, %v1907, %v1911
    %v1916 = vand.u32 2147483647, %v1906
    %vm1917 = vcmp.eq.f32.partialorder %v1916, 8.507059e+37
    %v1918 = vand.u32 %v1906, 2147483648
    %v1919 = vor.u32 1.1754944e-38, %v1918
    %v1920 = vsel %vm1917, %v1919, %v1915
    %v1921 = vmul.f32 1.0, %v1920
    %v1922 = vadd.f32 %v625, %v1886
    %v1923 = vxor.u32 %v1922, 2147483648
    %v1924 = vmul.f32 %v1923, 1.442695
    %v1925 = vpow.pop %v1924
    %v1926 = vadd.f32 %v1925, 1.0
    %v1927 = vrcp.pop %v1926
    %v1928 = vmul.f32 %v1926, %v1927
    %v1929 = vsub.f32 1.0, %v1928
    %v1930 = vmul.f32 %v1927, %v1929
    %v1931 = vadd.f32 %v1927, %v1930
    %vm1932 = vweird.f32 %v1926
    %vm1933 = vweird.f32 %v1927
    %vm1934 = vmor %vm1932, %vm1933
    %v1935 = vsel %vm1934, %v1927, %v1931
    %v1936 = vand.u32 2147483647, %v1926
    %vm1937 = vcmp.eq.f32.partialorder %v1936, 8.507059e+37
    %v1938 = vand.u32 %v1926, 2147483648
    %v1939 = vor.u32 1.1754944e-38, %v1938
    %v1940 = vsel %vm1937, %v1939, %v1935
    %v1941 = vmul.f32 1.0, %v1940
    %v1942 = vmul.f32 %v1921, %v1899
    %v1943 = vadd.f32 %v658, %v1942
    %v1944 = vtanh.pop %v1943
    %v1945 = vsub.f32 1.0, %v1941
    %v1946 = vmul.f32 %v1945, %v1944
    %v1947 = vmul.f32 %v1941, %v1692
    %v1948 = vadd.f32 %v1946, %v1947
    %v1949 = vpack.c.bf16 %v1948, %v1948
    %1950 = vst [vmem:[#allocation20 + $0x10] sm:$0xf] %v1949
    %v1951 = vld [vmem:[#allocation18] sm:$0xff]
    %v1952 = vld [vmem:[#allocation18 + $0x8] sm:$0xf]
    %v1953 = vld [vmem:[#allocation18 + $0xc] sm:$0xff]
    %v1954 = vld [vmem:[#allocation18 + $0x14] sm:$0xf]
    %v1955 = vld [vmem:[#allocation18 + $0x18] sm:$0xff]
    %v1956 = vld [vmem:[#allocation18 + $0x20] sm:$0xf]
    %v1957 = vld [vmem:[#allocation18 + $0x24] sm:$0xff]
    %v1958 = vld [vmem:[#allocation18 + $0x2c] sm:$0xf]
    %v1959 = vld [vmem:[#allocation18 + $0x30] sm:$0xff]
    %v1960 = vld [vmem:[#allocation18 + $0x38] sm:$0xf]
    %v1961 = vld [vmem:[#allocation18 + $0x3c] sm:$0xff]
    %v1962 = vld [vmem:[#allocation18 + $0x44] sm:$0xf]
    %v1963 = vld [vmem:[#allocation18 + $0x48] sm:$0xff]
    %v1964 = vld [vmem:[#allocation18 + $0x50] sm:$0xf]
    %v1965 = vld [vmem:[#allocation18 + $0x54] sm:$0xff]
    %v1966 = vld [vmem:[#allocation18 + $0x5c] sm:$0xf]
    %v1967 = vld [vmem:[#allocation18 + $0x60] sm:$0xff]
    %v1968 = vld [vmem:[#allocation18 + $0x68] sm:$0xf]
    %v1969 = vld [vmem:[#allocation18 + $0x6c] sm:$0xff]
    %v1970 = vld [vmem:[#allocation18 + $0x74] sm:$0xf]
    %v1971 = vld [vmem:[#allocation18 + $0x78] sm:$0xff]
    %v1972 = vld [vmem:[#allocation18 + $0x80] sm:$0xf]
    %v1973 = vld [vmem:[#allocation18 + $0x84] sm:$0xff]
    %v1974 = vld [vmem:[#allocation18 + $0x8c] sm:$0xf]
    %v1975 = vld [vmem:[#allocation18 + $0x90] sm:$0xff]
    %v1976 = vld [vmem:[#allocation18 + $0x98] sm:$0xf]
    %v1977 = vld [vmem:[#allocation18 + $0x9c] sm:$0xff]
    %v1978 = vld [vmem:[#allocation18 + $0xa4] sm:$0xf]
    %v1979 = vld [vmem:[#allocation18 + $0xa8] sm:$0xff]
    %v1980 = vld [vmem:[#allocation18 + $0xb0] sm:$0xf]
    %v1981 = vld [vmem:[#allocation18 + $0xb4] sm:$0xff]
    %v1982 = vld [vmem:[#allocation18 + $0xbc] sm:$0xf]
    %v1983 = vld [vmem:[%s11] sm:$0x7]
    %v1985 = vperm.slane %v1983, 0
    %v1986 = vperm.slane %v1983, 1
    %v1987 = vperm.slane %v1983, 2
    %v2023 = vunpack.c.l.b16 %v1951
    %v2024 = vunpack.c.h.b16 %v1951
    %v2025 = vunpack.c.l.b16 %v1952
    %v2026 = vunpack.c.l.b16 %v1953
    %v2027 = vunpack.c.h.b16 %v1953
    %v2028 = vunpack.c.l.b16 %v1954
    %v2029 = vunpack.c.l.b16 %v1955
    %v2030 = vunpack.c.h.b16 %v1955
    %v2031 = vunpack.c.l.b16 %v1956
    %v2032 = vunpack.c.l.b16 %v1957
    %v2033 = vunpack.c.h.b16 %v1957
    %v2034 = vunpack.c.l.b16 %v1958
    %v2035 = vunpack.c.l.b16 %v1959
    %v2036 = vunpack.c.h.b16 %v1959
    %v2037 = vunpack.c.l.b16 %v1960
    %v2038 = vunpack.c.l.b16 %v1961
    %v2039 = vunpack.c.h.b16 %v1961
    %v2040 = vunpack.c.l.b16 %v1962
    %v2041 = vunpack.c.l.b16 %v1963
    %v2042 = vunpack.c.h.b16 %v1963
    %v2043 = vunpack.c.l.b16 %v1964
    %v2044 = vunpack.c.l.b16 %v1965
    %v2045 = vunpack.c.h.b16 %v1965
    %v2046 = vunpack.c.l.b16 %v1966
    %v2047 = vunpack.c.l.b16 %v1967
    %v2048 = vunpack.c.h.b16 %v1967
    %v2049 = vunpack.c.l.b16 %v1968
    %v2050 = vunpack.c.l.b16 %v1969
    %v2051 = vunpack.c.h.b16 %v1969
    %v2052 = vunpack.c.l.b16 %v1970
    %v2053 = vunpack.c.l.b16 %v1971
    %v2054 = vunpack.c.h.b16 %v1971
    %v2055 = vunpack.c.l.b16 %v1972
    %v2056 = vunpack.c.l.b16 %v1973
    %v2057 = vunpack.c.h.b16 %v1973
    %v2058 = vunpack.c.l.b16 %v1974
    %v2059 = vunpack.c.l.b16 %v1975
    %v2060 = vunpack.c.h.b16 %v1975
    %v2061 = vunpack.c.l.b16 %v1976
    %v2062 = vunpack.c.l.b16 %v1977
    %v2063 = vunpack.c.h.b16 %v1977
    %v2064 = vunpack.c.l.b16 %v1978
    %v2065 = vunpack.c.l.b16 %v1979
    %v2066 = vunpack.c.h.b16 %v1979
    %v2067 = vunpack.c.l.b16 %v1980
    %v2068 = vunpack.c.l.b16 %v1981
    %v2069 = vunpack.c.h.b16 %v1981
    %v2070 = vunpack.c.l.b16 %v1982
    %v2071 = vpack.c.b16 %v2026, %v2023
    %v2072 = vpack.c.b16 %v2027, %v2024
    %v2073 = vpack.c.b16 %v2028, %v2025
    %v2074 = vpack.c.b16 %v2032, %v2029
    %v2075 = vpack.c.b16 %v2033, %v2030
    %v2076 = vpack.c.b16 %v2034, %v2031
    %v2077 = vpack.c.b16 %v2038, %v2035
    %v2078 = vpack.c.b16 %v2039, %v2036
    %v2079 = vpack.c.b16 %v2040, %v2037
    %v2080 = vpack.c.b16 %v2044, %v2041
    %v2081 = vpack.c.b16 %v2045, %v2042
    %v2082 = vpack.c.b16 %v2046, %v2043
    %v2083 = vpack.c.b16 %v2050, %v2047
    %v2084 = vpack.c.b16 %v2051, %v2048
    %v2085 = vpack.c.b16 %v2052, %v2049
    %v2086 = vpack.c.b16 %v2056, %v2053
    %v2087 = vpack.c.b16 %v2057, %v2054
    %v2088 = vpack.c.b16 %v2058, %v2055
    %v2089 = vpack.c.b16 %v2062, %v2059
    %v2090 = vpack.c.b16 %v2063, %v2060
    %v2091 = vpack.c.b16 %v2064, %v2061
    %v2092 = vpack.c.b16 %v2068, %v2065
    %v2093 = vpack.c.b16 %v2069, %v2066
    %v2094 = vpack.c.b16 %v2070, %v2067
    %2119 = vmatpush.bf16.msra.mxu0 %v2092
    %2120 = vmatpush.bf16.msra.mxu0 %v2089
    %2121 = vmatpush.bf16.msra.mxu0 %v2086
    %2122 = vmatpush.bf16.msra.mxu0 %v2083
    %2123 = vmatpush.bf16.msra.mxu0 %v2080
    %2124 = vmatpush.bf16.msra.mxu0 %v2077
    %2125 = vmatpush.bf16.msra.mxu0 %v2074
    %2126 = vmatpush.bf16.msra.mxu0 %v2071
    %2127 = vmatmul.bf16.gmra.mxu0 %v1949
    %v2128 = vpop.f32.mrf.mxu0
    %v2129 = vadd.f32 %v1985, %v2128
    %v2130 = vpop.f32.mrf.mxu0
    %2131 = vdwg.mxu0
    %2132 = vmatpush.bf16.msra.mxu0 %v2093
    %2133 = vmatpush.bf16.msra.mxu0 %v2090
    %2134 = vmatpush.bf16.msra.mxu0 %v2087
    %2135 = vmatpush.bf16.msra.mxu0 %v2084
    %2136 = vmatpush.bf16.msra.mxu0 %v2081
    %2137 = vmatpush.bf16.msra.mxu0 %v2078
    %2138 = vmatpush.bf16.msra.mxu0 %v2075
    %2139 = vmatpush.bf16.msra.mxu0 %v2072
    %2140 = vmatmul.bf16.gmra.mxu0 %v1949
    %v2141 = vpop.f32.mrf.mxu0
    %v2142 = vadd.f32 %v1986, %v2141
    %v2143 = vpop.f32.mrf.mxu0
    %2144 = vdwg.mxu0
    %2145 = vmatpush.bf16.msra.mxu0 %v2094
    %2146 = vmatpush.bf16.msra.mxu0 %v2091
    %2147 = vmatpush.bf16.msra.mxu0 %v2088
    %2148 = vmatpush.bf16.msra.mxu0 %v2085
    %2149 = vmatpush.bf16.msra.mxu0 %v2082
    %2150 = vmatpush.bf16.msra.mxu0 %v2079
    %2151 = vmatpush.bf16.msra.mxu0 %v2076
    %2152 = vmatpush.bf16.msra.mxu0 %v2073
    %2153 = vmatmul.bf16.gmra.mxu0 %v1949
    %v2154 = vpop.f32.mrf.mxu0
    %v2155 = vadd.f32 %v1987, %v2154
    %v2156 = vpop.f32.mrf.mxu0
    %2157 = vdwg.mxu0
    %v2158 = vadd.f32 %v594, %v2129
    %v2159 = vxor.u32 %v2158, 2147483648
    %v2160 = vmul.f32 %v2159, 1.442695
    %v2161 = vpow.pop %v2160
    %v2162 = vadd.f32 %v2161, 1.0
    %v2163 = vrcp.pop %v2162
    %v2164 = vmul.f32 %v2162, %v2163
    %v2165 = vsub.f32 1.0, %v2164
    %v2166 = vmul.f32 %v2163, %v2165
    %v2167 = vadd.f32 %v2163, %v2166
    %vm2168 = vweird.f32 %v2162
    %vm2169 = vweird.f32 %v2163
    %vm2170 = vmor %vm2168, %vm2169
    %v2171 = vsel %vm2170, %v2163, %v2167
    %v2172 = vand.u32 2147483647, %v2162
    %vm2173 = vcmp.eq.f32.partialorder %v2172, 8.507059e+37
    %v2174 = vand.u32 %v2162, 2147483648
    %v2175 = vor.u32 1.1754944e-38, %v2174
    %v2176 = vsel %vm2173, %v2175, %v2171
    %v2177 = vmul.f32 1.0, %v2176
    %v2178 = vadd.f32 %v627, %v2142
    %v2179 = vxor.u32 %v2178, 2147483648
    %v2180 = vmul.f32 %v2179, 1.442695
    %v2181 = vpow.pop %v2180
    %v2182 = vadd.f32 %v2181, 1.0
    %v2183 = vrcp.pop %v2182
    %v2184 = vmul.f32 %v2182, %v2183
    %v2185 = vsub.f32 1.0, %v2184
    %v2186 = vmul.f32 %v2183, %v2185
    %v2187 = vadd.f32 %v2183, %v2186
    %vm2188 = vweird.f32 %v2182
    %vm2189 = vweird.f32 %v2183
    %vm2190 = vmor %vm2188, %vm2189
    %v2191 = vsel %vm2190, %v2183, %v2187
    %v2192 = vand.u32 2147483647, %v2182
    %vm2193 = vcmp.eq.f32.partialorder %v2192, 8.507059e+37
    %v2194 = vand.u32 %v2182, 2147483648
    %v2195 = vor.u32 1.1754944e-38, %v2194
    %v2196 = vsel %vm2193, %v2195, %v2191
    %v2197 = vmul.f32 1.0, %v2196
    %v2198 = vmul.f32 %v2177, %v2155
    %v2199 = vadd.f32 %v660, %v2198
    %v2200 = vtanh.pop %v2199
    %v2201 = vsub.f32 1.0, %v2197
    %v2202 = vmul.f32 %v2201, %v2200
    %v2203 = vmul.f32 %v2197, %v1948
    %v2204 = vadd.f32 %v2202, %v2203
    %v2205 = vpack.c.bf16 %v2204, %v2204
    %2206 = vst [vmem:[#allocation20 + $0x14] sm:$0xf] %v2205
    %v2207 = vld [vmem:[#allocation18] sm:$0xff]
    %v2208 = vld [vmem:[#allocation18 + $0x8] sm:$0xf]
    %v2209 = vld [vmem:[#allocation18 + $0xc] sm:$0xff]
    %v2210 = vld [vmem:[#allocation18 + $0x14] sm:$0xf]
    %v2211 = vld [vmem:[#allocation18 + $0x18] sm:$0xff]
    %v2212 = vld [vmem:[#allocation18 + $0x20] sm:$0xf]
    %v2213 = vld [vmem:[#allocation18 + $0x24] sm:$0xff]
    %v2214 = vld [vmem:[#allocation18 + $0x2c] sm:$0xf]
    %v2215 = vld [vmem:[#allocation18 + $0x30] sm:$0xff]
    %v2216 = vld [vmem:[#allocation18 + $0x38] sm:$0xf]
    %v2217 = vld [vmem:[#allocation18 + $0x3c] sm:$0xff]
    %v2218 = vld [vmem:[#allocation18 + $0x44] sm:$0xf]
    %v2219 = vld [vmem:[#allocation18 + $0x48] sm:$0xff]
    %v2220 = vld [vmem:[#allocation18 + $0x50] sm:$0xf]
    %v2221 = vld [vmem:[#allocation18 + $0x54] sm:$0xff]
    %v2222 = vld [vmem:[#allocation18 + $0x5c] sm:$0xf]
    %v2223 = vld [vmem:[#allocation18 + $0x60] sm:$0xff]
    %v2224 = vld [vmem:[#allocation18 + $0x68] sm:$0xf]
    %v2225 = vld [vmem:[#allocation18 + $0x6c] sm:$0xff]
    %v2226 = vld [vmem:[#allocation18 + $0x74] sm:$0xf]
    %v2227 = vld [vmem:[#allocation18 + $0x78] sm:$0xff]
    %v2228 = vld [vmem:[#allocation18 + $0x80] sm:$0xf]
    %v2229 = vld [vmem:[#allocation18 + $0x84] sm:$0xff]
    %v2230 = vld [vmem:[#allocation18 + $0x8c] sm:$0xf]
    %v2231 = vld [vmem:[#allocation18 + $0x90] sm:$0xff]
    %v2232 = vld [vmem:[#allocation18 + $0x98] sm:$0xf]
    %v2233 = vld [vmem:[#allocation18 + $0x9c] sm:$0xff]
    %v2234 = vld [vmem:[#allocation18 + $0xa4] sm:$0xf]
    %v2235 = vld [vmem:[#allocation18 + $0xa8] sm:$0xff]
    %v2236 = vld [vmem:[#allocation18 + $0xb0] sm:$0xf]
    %v2237 = vld [vmem:[#allocation18 + $0xb4] sm:$0xff]
    %v2238 = vld [vmem:[#allocation18 + $0xbc] sm:$0xf]
    %v2239 = vld [vmem:[%s11] sm:$0x7]
    %v2241 = vperm.slane %v2239, 0
    %v2242 = vperm.slane %v2239, 1
    %v2243 = vperm.slane %v2239, 2
    %v2279 = vunpack.c.l.b16 %v2207
    %v2280 = vunpack.c.h.b16 %v2207
    %v2281 = vunpack.c.l.b16 %v2208
    %v2282 = vunpack.c.l.b16 %v2209
    %v2283 = vunpack.c.h.b16 %v2209
    %v2284 = vunpack.c.l.b16 %v2210
    %v2285 = vunpack.c.l.b16 %v2211
    %v2286 = vunpack.c.h.b16 %v2211
    %v2287 = vunpack.c.l.b16 %v2212
    %v2288 = vunpack.c.l.b16 %v2213
    %v2289 = vunpack.c.h.b16 %v2213
    %v2290 = vunpack.c.l.b16 %v2214
    %v2291 = vunpack.c.l.b16 %v2215
    %v2292 = vunpack.c.h.b16 %v2215
    %v2293 = vunpack.c.l.b16 %v2216
    %v2294 = vunpack.c.l.b16 %v2217
    %v2295 = vunpack.c.h.b16 %v2217
    %v2296 = vunpack.c.l.b16 %v2218
    %v2297 = vunpack.c.l.b16 %v2219
    %v2298 = vunpack.c.h.b16 %v2219
    %v2299 = vunpack.c.l.b16 %v2220
    %v2300 = vunpack.c.l.b16 %v2221
    %v2301 = vunpack.c.h.b16 %v2221
    %v2302 = vunpack.c.l.b16 %v2222
    %v2303 = vunpack.c.l.b16 %v2223
    %v2304 = vunpack.c.h.b16 %v2223
    %v2305 = vunpack.c.l.b16 %v2224
    %v2306 = vunpack.c.l.b16 %v2225
    %v2307 = vunpack.c.h.b16 %v2225
    %v2308 = vunpack.c.l.b16 %v2226
    %v2309 = vunpack.c.l.b16 %v2227
    %v2310 = vunpack.c.h.b16 %v2227
    %v2311 = vunpack.c.l.b16 %v2228
    %v2312 = vunpack.c.l.b16 %v2229
    %v2313 = vunpack.c.h.b16 %v2229
    %v2314 = vunpack.c.l.b16 %v2230
    %v2315 = vunpack.c.l.b16 %v2231
    %v2316 = vunpack.c.h.b16 %v2231
    %v2317 = vunpack.c.l.b16 %v2232
    %v2318 = vunpack.c.l.b16 %v2233
    %v2319 = vunpack.c.h.b16 %v2233
    %v2320 = vunpack.c.l.b16 %v2234
    %v2321 = vunpack.c.l.b16 %v2235
    %v2322 = vunpack.c.h.b16 %v2235
    %v2323 = vunpack.c.l.b16 %v2236
    %v2324 = vunpack.c.l.b16 %v2237
    %v2325 = vunpack.c.h.b16 %v2237
    %v2326 = vunpack.c.l.b16 %v2238
    %v2327 = vpack.c.b16 %v2282, %v2279
    %v2328 = vpack.c.b16 %v2283, %v2280
    %v2329 = vpack.c.b16 %v2284, %v2281
    %v2330 = vpack.c.b16 %v2288, %v2285
    %v2331 = vpack.c.b16 %v2289, %v2286
    %v2332 = vpack.c.b16 %v2290, %v2287
    %v2333 = vpack.c.b16 %v2294, %v2291
    %v2334 = vpack.c.b16 %v2295, %v2292
    %v2335 = vpack.c.b16 %v2296, %v2293
    %v2336 = vpack.c.b16 %v2300, %v2297
    %v2337 = vpack.c.b16 %v2301, %v2298
    %v2338 = vpack.c.b16 %v2302, %v2299
    %v2339 = vpack.c.b16 %v2306, %v2303
    %v2340 = vpack.c.b16 %v2307, %v2304
    %v2341 = vpack.c.b16 %v2308, %v2305
    %v2342 = vpack.c.b16 %v2312, %v2309
    %v2343 = vpack.c.b16 %v2313, %v2310
    %v2344 = vpack.c.b16 %v2314, %v2311
    %v2345 = vpack.c.b16 %v2318, %v2315
    %v2346 = vpack.c.b16 %v2319, %v2316
    %v2347 = vpack.c.b16 %v2320, %v2317
    %v2348 = vpack.c.b16 %v2324, %v2321
    %v2349 = vpack.c.b16 %v2325, %v2322
    %v2350 = vpack.c.b16 %v2326, %v2323
    %2375 = vmatpush.bf16.msra.mxu0 %v2348
    %2376 = vmatpush.bf16.msra.mxu0 %v2345
    %2377 = vmatpush.bf16.msra.mxu0 %v2342
    %2378 = vmatpush.bf16.msra.mxu0 %v2339
    %2379 = vmatpush.bf16.msra.mxu0 %v2336
    %2380 = vmatpush.bf16.msra.mxu0 %v2333
    %2381 = vmatpush.bf16.msra.mxu0 %v2330
    %2382 = vmatpush.bf16.msra.mxu0 %v2327
    %2383 = vmatmul.bf16.gmra.mxu0 %v2205
    %v2384 = vpop.f32.mrf.mxu0
    %v2385 = vadd.f32 %v2241, %v2384
    %v2386 = vpop.f32.mrf.mxu0
    %2387 = vdwg.mxu0
    %2388 = vmatpush.bf16.msra.mxu0 %v2349
    %2389 = vmatpush.bf16.msra.mxu0 %v2346
    %2390 = vmatpush.bf16.msra.mxu0 %v2343
    %2391 = vmatpush.bf16.msra.mxu0 %v2340
    %2392 = vmatpush.bf16.msra.mxu0 %v2337
    %2393 = vmatpush.bf16.msra.mxu0 %v2334
    %2394 = vmatpush.bf16.msra.mxu0 %v2331
    %2395 = vmatpush.bf16.msra.mxu0 %v2328
    %2396 = vmatmul.bf16.gmra.mxu0 %v2205
    %v2397 = vpop.f32.mrf.mxu0
    %v2398 = vadd.f32 %v2242, %v2397
    %v2399 = vpop.f32.mrf.mxu0
    %2400 = vdwg.mxu0
    %2401 = vmatpush.bf16.msra.mxu0 %v2350
    %2402 = vmatpush.bf16.msra.mxu0 %v2347
    %2403 = vmatpush.bf16.msra.mxu0 %v2344
    %2404 = vmatpush.bf16.msra.mxu0 %v2341
    %2405 = vmatpush.bf16.msra.mxu0 %v2338
    %2406 = vmatpush.bf16.msra.mxu0 %v2335
    %2407 = vmatpush.bf16.msra.mxu0 %v2332
    %2408 = vmatpush.bf16.msra.mxu0 %v2329
    %2409 = vmatmul.bf16.gmra.mxu0 %v2205
    %v2410 = vpop.f32.mrf.mxu0
    %v2411 = vadd.f32 %v2243, %v2410
    %v2412 = vpop.f32.mrf.mxu0
    %2413 = vdwg.mxu0
    %v2414 = vadd.f32 %v597, %v2385
    %v2415 = vxor.u32 %v2414, 2147483648
    %v2416 = vmul.f32 %v2415, 1.442695
    %v2417 = vpow.pop %v2416
    %v2418 = vadd.f32 %v2417, 1.0
    %v2419 = vrcp.pop %v2418
    %v2420 = vmul.f32 %v2418, %v2419
    %v2421 = vsub.f32 1.0, %v2420
    %v2422 = vmul.f32 %v2419, %v2421
    %v2423 = vadd.f32 %v2419, %v2422
    %vm2424 = vweird.f32 %v2418
    %vm2425 = vweird.f32 %v2419
    %vm2426 = vmor %vm2424, %vm2425
    %v2427 = vsel %vm2426, %v2419, %v2423
    %v2428 = vand.u32 2147483647, %v2418
    %vm2429 = vcmp.eq.f32.partialorder %v2428, 8.507059e+37
    %v2430 = vand.u32 %v2418, 2147483648
    %v2431 = vor.u32 1.1754944e-38, %v2430
    %v2432 = vsel %vm2429, %v2431, %v2427
    %v2433 = vmul.f32 1.0, %v2432
    %v2434 = vadd.f32 %v630, %v2398
    %v2435 = vxor.u32 %v2434, 2147483648
    %v2436 = vmul.f32 %v2435, 1.442695
    %v2437 = vpow.pop %v2436
    %v2438 = vadd.f32 %v2437, 1.0
    %v2439 = vrcp.pop %v2438
    %v2440 = vmul.f32 %v2438, %v2439
    %v2441 = vsub.f32 1.0, %v2440
    %v2442 = vmul.f32 %v2439, %v2441
    %v2443 = vadd.f32 %v2439, %v2442
    %vm2444 = vweird.f32 %v2438
    %vm2445 = vweird.f32 %v2439
    %vm2446 = vmor %vm2444, %vm2445
    %v2447 = vsel %vm2446, %v2439, %v2443
    %v2448 = vand.u32 2147483647, %v2438
    %vm2449 = vcmp.eq.f32.partialorder %v2448, 8.507059e+37
    %v2450 = vand.u32 %v2438, 2147483648
    %v2451 = vor.u32 1.1754944e-38, %v2450
    %v2452 = vsel %vm2449, %v2451, %v2447
    %v2453 = vmul.f32 1.0, %v2452
    %v2454 = vmul.f32 %v2433, %v2411
    %v2455 = vadd.f32 %v663, %v2454
    %v2456 = vtanh.pop %v2455
    %v2457 = vsub.f32 1.0, %v2453
    %v2458 = vmul.f32 %v2457, %v2456
    %v2459 = vmul.f32 %v2453, %v2204
    %v2460 = vadd.f32 %v2458, %v2459
    %v2461 = vpack.c.bf16 %v2460, %v2460
    %2462 = vst [vmem:[#allocation20 + $0x18] sm:$0xf] %v2461
    %v2463 = vld [vmem:[#allocation18] sm:$0xff]
    %v2464 = vld [vmem:[#allocation18 + $0x8] sm:$0xf]
    %v2465 = vld [vmem:[#allocation18 + $0xc] sm:$0xff]
    %v2466 = vld [vmem:[#allocation18 + $0x14] sm:$0xf]
    %v2467 = vld [vmem:[#allocation18 + $0x18] sm:$0xff]
    %v2468 = vld [vmem:[#allocation18 + $0x20] sm:$0xf]
    %v2469 = vld [vmem:[#allocation18 + $0x24] sm:$0xff]
    %v2470 = vld [vmem:[#allocation18 + $0x2c] sm:$0xf]
    %v2471 = vld [vmem:[#allocation18 + $0x30] sm:$0xff]
    %v2472 = vld [vmem:[#allocation18 + $0x38] sm:$0xf]
    %v2473 = vld [vmem:[#allocation18 + $0x3c] sm:$0xff]
    %v2474 = vld [vmem:[#allocation18 + $0x44] sm:$0xf]
    %v2475 = vld [vmem:[#allocation18 + $0x48] sm:$0xff]
    %v2476 = vld [vmem:[#allocation18 + $0x50] sm:$0xf]
    %v2477 = vld [vmem:[#allocation18 + $0x54] sm:$0xff]
    %v2478 = vld [vmem:[#allocation18 + $0x5c] sm:$0xf]
    %v2479 = vld [vmem:[#allocation18 + $0x60] sm:$0xff]
    %v2480 = vld [vmem:[#allocation18 + $0x68] sm:$0xf]
    %v2481 = vld [vmem:[#allocation18 + $0x6c] sm:$0xff]
    %v2482 = vld [vmem:[#allocation18 + $0x74] sm:$0xf]
    %v2483 = vld [vmem:[#allocation18 + $0x78] sm:$0xff]
    %v2484 = vld [vmem:[#allocation18 + $0x80] sm:$0xf]
    %v2485 = vld [vmem:[#allocation18 + $0x84] sm:$0xff]
    %v2486 = vld [vmem:[#allocation18 + $0x8c] sm:$0xf]
    %v2487 = vld [vmem:[#allocation18 + $0x90] sm:$0xff]
    %v2488 = vld [vmem:[#allocation18 + $0x98] sm:$0xf]
    %v2489 = vld [vmem:[#allocation18 + $0x9c] sm:$0xff]
    %v2490 = vld [vmem:[#allocation18 + $0xa4] sm:$0xf]
    %v2491 = vld [vmem:[#allocation18 + $0xa8] sm:$0xff]
    %v2492 = vld [vmem:[#allocation18 + $0xb0] sm:$0xf]
    %v2493 = vld [vmem:[#allocation18 + $0xb4] sm:$0xff]
    %v2494 = vld [vmem:[#allocation18 + $0xbc] sm:$0xf]
    %v2495 = vld [vmem:[%s11] sm:$0x7]
    %v2497 = vperm.slane %v2495, 0
    %v2498 = vperm.slane %v2495, 1
    %v2499 = vperm.slane %v2495, 2
    %v2535 = vunpack.c.l.b16 %v2463
    %v2536 = vunpack.c.h.b16 %v2463
    %v2537 = vunpack.c.l.b16 %v2464
    %v2538 = vunpack.c.l.b16 %v2465
    %v2539 = vunpack.c.h.b16 %v2465
    %v2540 = vunpack.c.l.b16 %v2466
    %v2541 = vunpack.c.l.b16 %v2467
    %v2542 = vunpack.c.h.b16 %v2467
    %v2543 = vunpack.c.l.b16 %v2468
    %v2544 = vunpack.c.l.b16 %v2469
    %v2545 = vunpack.c.h.b16 %v2469
    %v2546 = vunpack.c.l.b16 %v2470
    %v2547 = vunpack.c.l.b16 %v2471
    %v2548 = vunpack.c.h.b16 %v2471
    %v2549 = vunpack.c.l.b16 %v2472
    %v2550 = vunpack.c.l.b16 %v2473
    %v2551 = vunpack.c.h.b16 %v2473
    %v2552 = vunpack.c.l.b16 %v2474
    %v2553 = vunpack.c.l.b16 %v2475
    %v2554 = vunpack.c.h.b16 %v2475
    %v2555 = vunpack.c.l.b16 %v2476
    %v2556 = vunpack.c.l.b16 %v2477
    %v2557 = vunpack.c.h.b16 %v2477
    %v2558 = vunpack.c.l.b16 %v2478
    %v2559 = vunpack.c.l.b16 %v2479
    %v2560 = vunpack.c.h.b16 %v2479
    %v2561 = vunpack.c.l.b16 %v2480
    %v2562 = vunpack.c.l.b16 %v2481
    %v2563 = vunpack.c.h.b16 %v2481
    %v2564 = vunpack.c.l.b16 %v2482
    %v2565 = vunpack.c.l.b16 %v2483
    %v2566 = vunpack.c.h.b16 %v2483
    %v2567 = vunpack.c.l.b16 %v2484
    %v2568 = vunpack.c.l.b16 %v2485
    %v2569 = vunpack.c.h.b16 %v2485
    %v2570 = vunpack.c.l.b16 %v2486
    %v2571 = vunpack.c.l.b16 %v2487
    %v2572 = vunpack.c.h.b16 %v2487
    %v2573 = vunpack.c.l.b16 %v2488
    %v2574 = vunpack.c.l.b16 %v2489
    %v2575 = vunpack.c.h.b16 %v2489
    %v2576 = vunpack.c.l.b16 %v2490
    %v2577 = vunpack.c.l.b16 %v2491
    %v2578 = vunpack.c.h.b16 %v2491
    %v2579 = vunpack.c.l.b16 %v2492
    %v2580 = vunpack.c.l.b16 %v2493
    %v2581 = vunpack.c.h.b16 %v2493
    %v2582 = vunpack.c.l.b16 %v2494
    %v2583 = vpack.c.b16 %v2538, %v2535
    %v2584 = vpack.c.b16 %v2539, %v2536
    %v2585 = vpack.c.b16 %v2540, %v2537
    %v2586 = vpack.c.b16 %v2544, %v2541
    %v2587 = vpack.c.b16 %v2545, %v2542
    %v2588 = vpack.c.b16 %v2546, %v2543
    %v2589 = vpack.c.b16 %v2550, %v2547
    %v2590 = vpack.c.b16 %v2551, %v2548
    %v2591 = vpack.c.b16 %v2552, %v2549
    %v2592 = vpack.c.b16 %v2556, %v2553
    %v2593 = vpack.c.b16 %v2557, %v2554
    %v2594 = vpack.c.b16 %v2558, %v2555
    %v2595 = vpack.c.b16 %v2562, %v2559
    %v2596 = vpack.c.b16 %v2563, %v2560
    %v2597 = vpack.c.b16 %v2564, %v2561
    %v2598 = vpack.c.b16 %v2568, %v2565
    %v2599 = vpack.c.b16 %v2569, %v2566
    %v2600 = vpack.c.b16 %v2570, %v2567
    %v2601 = vpack.c.b16 %v2574, %v2571
    %v2602 = vpack.c.b16 %v2575, %v2572
    %v2603 = vpack.c.b16 %v2576, %v2573
    %v2604 = vpack.c.b16 %v2580, %v2577
    %v2605 = vpack.c.b16 %v2581, %v2578
    %v2606 = vpack.c.b16 %v2582, %v2579
    %2631 = vmatpush.bf16.msra.mxu0 %v2604
    %2632 = vmatpush.bf16.msra.mxu0 %v2601
    %2633 = vmatpush.bf16.msra.mxu0 %v2598
    %2634 = vmatpush.bf16.msra.mxu0 %v2595
    %2635 = vmatpush.bf16.msra.mxu0 %v2592
    %2636 = vmatpush.bf16.msra.mxu0 %v2589
    %2637 = vmatpush.bf16.msra.mxu0 %v2586
    %2638 = vmatpush.bf16.msra.mxu0 %v2583
    %2639 = vmatmul.bf16.gmra.mxu0 %v2461
    %v2640 = vpop.f32.mrf.mxu0
    %v2641 = vadd.f32 %v2497, %v2640
    %v2642 = vpop.f32.mrf.mxu0
    %2643 = vdwg.mxu0
    %2644 = vmatpush.bf16.msra.mxu0 %v2605
    %2645 = vmatpush.bf16.msra.mxu0 %v2602
    %2646 = vmatpush.bf16.msra.mxu0 %v2599
    %2647 = vmatpush.bf16.msra.mxu0 %v2596
    %2648 = vmatpush.bf16.msra.mxu0 %v2593
    %2649 = vmatpush.bf16.msra.mxu0 %v2590
    %2650 = vmatpush.bf16.msra.mxu0 %v2587
    %2651 = vmatpush.bf16.msra.mxu0 %v2584
    %2652 = vmatmul.bf16.gmra.mxu0 %v2461
    %v2653 = vpop.f32.mrf.mxu0
    %v2654 = vadd.f32 %v2498, %v2653
    %v2655 = vpop.f32.mrf.mxu0
    %2656 = vdwg.mxu0
    %2657 = vmatpush.bf16.msra.mxu0 %v2606
    %2658 = vmatpush.bf16.msra.mxu0 %v2603
    %2659 = vmatpush.bf16.msra.mxu0 %v2600
    %2660 = vmatpush.bf16.msra.mxu0 %v2597
    %2661 = vmatpush.bf16.msra.mxu0 %v2594
    %2662 = vmatpush.bf16.msra.mxu0 %v2591
    %2663 = vmatpush.bf16.msra.mxu0 %v2588
    %2664 = vmatpush.bf16.msra.mxu0 %v2585
    %2665 = vmatmul.bf16.gmra.mxu0 %v2461
    %v2666 = vpop.f32.mrf.mxu0
    %v2667 = vadd.f32 %v2499, %v2666
    %v2668 = vpop.f32.mrf.mxu0
    %2669 = vdwg.mxu0
    %v2670 = vadd.f32 %v599, %v2641
    %v2671 = vxor.u32 %v2670, 2147483648
    %v2672 = vmul.f32 %v2671, 1.442695
    %v2673 = vpow.pop %v2672
    %v2674 = vadd.f32 %v2673, 1.0
    %v2675 = vrcp.pop %v2674
    %v2676 = vmul.f32 %v2674, %v2675
    %v2677 = vsub.f32 1.0, %v2676
    %v2678 = vmul.f32 %v2675, %v2677
    %v2679 = vadd.f32 %v2675, %v2678
    %vm2680 = vweird.f32 %v2674
    %vm2681 = vweird.f32 %v2675
    %vm2682 = vmor %vm2680, %vm2681
    %v2683 = vsel %vm2682, %v2675, %v2679
    %v2684 = vand.u32 2147483647, %v2674
    %vm2685 = vcmp.eq.f32.partialorder %v2684, 8.507059e+37
    %v2686 = vand.u32 %v2674, 2147483648
    %v2687 = vor.u32 1.1754944e-38, %v2686
    %v2688 = vsel %vm2685, %v2687, %v2683
    %v2689 = vmul.f32 1.0, %v2688
    %v2690 = vadd.f32 %v632, %v2654
    %v2691 = vxor.u32 %v2690, 2147483648
    %v2692 = vmul.f32 %v2691, 1.442695
    %v2693 = vpow.pop %v2692
    %v2694 = vadd.f32 %v2693, 1.0
    %v2695 = vrcp.pop %v2694
    %v2696 = vmul.f32 %v2694, %v2695
    %v2697 = vsub.f32 1.0, %v2696
    %v2698 = vmul.f32 %v2695, %v2697
    %v2699 = vadd.f32 %v2695, %v2698
    %vm2700 = vweird.f32 %v2694
    %vm2701 = vweird.f32 %v2695
    %vm2702 = vmor %vm2700, %vm2701
    %v2703 = vsel %vm2702, %v2695, %v2699
    %v2704 = vand.u32 2147483647, %v2694
    %vm2705 = vcmp.eq.f32.partialorder %v2704, 8.507059e+37
    %v2706 = vand.u32 %v2694, 2147483648
    %v2707 = vor.u32 1.1754944e-38, %v2706
    %v2708 = vsel %vm2705, %v2707, %v2703
    %v2709 = vmul.f32 1.0, %v2708
    %v2710 = vmul.f32 %v2689, %v2667
    %v2711 = vadd.f32 %v665, %v2710
    %v2712 = vtanh.pop %v2711
    %v2713 = vsub.f32 1.0, %v2709
    %v2714 = vmul.f32 %v2713, %v2712
    %v2715 = vmul.f32 %v2709, %v2460
    %v2716 = vadd.f32 %v2714, %v2715
    %v2717 = vpack.c.bf16 %v2716, %v2716
    %2718 = vst [vmem:[#allocation20 + $0x1c] sm:$0xf] %v2717
    %v2719 = vld [vmem:[#allocation18] sm:$0xff]
    %v2720 = vld [vmem:[#allocation18 + $0x8] sm:$0xf]
    %v2721 = vld [vmem:[#allocation18 + $0xc] sm:$0xff]
    %v2722 = vld [vmem:[#allocation18 + $0x14] sm:$0xf]
    %v2723 = vld [vmem:[#allocation18 + $0x18] sm:$0xff]
    %v2724 = vld [vmem:[#allocation18 + $0x20] sm:$0xf]
    %v2725 = vld [vmem:[#allocation18 + $0x24] sm:$0xff]
    %v2726 = vld [vmem:[#allocation18 + $0x2c] sm:$0xf]
    %v2727 = vld [vmem:[#allocation18 + $0x30] sm:$0xff]
    %v2728 = vld [vmem:[#allocation18 + $0x38] sm:$0xf]
    %v2729 = vld [vmem:[#allocation18 + $0x3c] sm:$0xff]
    %v2730 = vld [vmem:[#allocation18 + $0x44] sm:$0xf]
    %v2731 = vld [vmem:[#allocation18 + $0x48] sm:$0xff]
    %v2732 = vld [vmem:[#allocation18 + $0x50] sm:$0xf]
    %v2733 = vld [vmem:[#allocation18 + $0x54] sm:$0xff]
    %v2734 = vld [vmem:[#allocation18 + $0x5c] sm:$0xf]
    %v2735 = vld [vmem:[#allocation18 + $0x60] sm:$0xff]
    %v2736 = vld [vmem:[#allocation18 + $0x68] sm:$0xf]
    %v2737 = vld [vmem:[#allocation18 + $0x6c] sm:$0xff]
    %v2738 = vld [vmem:[#allocation18 + $0x74] sm:$0xf]
    %v2739 = vld [vmem:[#allocation18 + $0x78] sm:$0xff]
    %v2740 = vld [vmem:[#allocation18 + $0x80] sm:$0xf]
    %v2741 = vld [vmem:[#allocation18 + $0x84] sm:$0xff]
    %v2742 = vld [vmem:[#allocation18 + $0x8c] sm:$0xf]
    %v2743 = vld [vmem:[#allocation18 + $0x90] sm:$0xff]
    %v2744 = vld [vmem:[#allocation18 + $0x98] sm:$0xf]
    %v2745 = vld [vmem:[#allocation18 + $0x9c] sm:$0xff]
    %v2746 = vld [vmem:[#allocation18 + $0xa4] sm:$0xf]
    %v2747 = vld [vmem:[#allocation18 + $0xa8] sm:$0xff]
    %v2748 = vld [vmem:[#allocation18 + $0xb0] sm:$0xf]
    %v2749 = vld [vmem:[#allocation18 + $0xb4] sm:$0xff]
    %v2750 = vld [vmem:[#allocation18 + $0xbc] sm:$0xf]
    %v2751 = vld [vmem:[%s11] sm:$0x7]
    %v2753 = vperm.slane %v2751, 0
    %v2754 = vperm.slane %v2751, 1
    %v2755 = vperm.slane %v2751, 2
    %v2791 = vunpack.c.l.b16 %v2719
    %v2792 = vunpack.c.h.b16 %v2719
    %v2793 = vunpack.c.l.b16 %v2720
    %v2794 = vunpack.c.l.b16 %v2721
    %v2795 = vunpack.c.h.b16 %v2721
    %v2796 = vunpack.c.l.b16 %v2722
    %v2797 = vunpack.c.l.b16 %v2723
    %v2798 = vunpack.c.h.b16 %v2723
    %v2799 = vunpack.c.l.b16 %v2724
    %v2800 = vunpack.c.l.b16 %v2725
    %v2801 = vunpack.c.h.b16 %v2725
    %v2802 = vunpack.c.l.b16 %v2726
    %v2803 = vunpack.c.l.b16 %v2727
    %v2804 = vunpack.c.h.b16 %v2727
    %v2805 = vunpack.c.l.b16 %v2728
    %v2806 = vunpack.c.l.b16 %v2729
    %v2807 = vunpack.c.h.b16 %v2729
    %v2808 = vunpack.c.l.b16 %v2730
    %v2809 = vunpack.c.l.b16 %v2731
    %v2810 = vunpack.c.h.b16 %v2731
    %v2811 = vunpack.c.l.b16 %v2732
    %v2812 = vunpack.c.l.b16 %v2733
    %v2813 = vunpack.c.h.b16 %v2733
    %v2814 = vunpack.c.l.b16 %v2734
    %v2815 = vunpack.c.l.b16 %v2735
    %v2816 = vunpack.c.h.b16 %v2735
    %v2817 = vunpack.c.l.b16 %v2736
    %v2818 = vunpack.c.l.b16 %v2737
    %v2819 = vunpack.c.h.b16 %v2737
    %v2820 = vunpack.c.l.b16 %v2738
    %v2821 = vunpack.c.l.b16 %v2739
    %v2822 = vunpack.c.h.b16 %v2739
    %v2823 = vunpack.c.l.b16 %v2740
    %v2824 = vunpack.c.l.b16 %v2741
    %v2825 = vunpack.c.h.b16 %v2741
    %v2826 = vunpack.c.l.b16 %v2742
    %v2827 = vunpack.c.l.b16 %v2743
    %v2828 = vunpack.c.h.b16 %v2743
    %v2829 = vunpack.c.l.b16 %v2744
    %v2830 = vunpack.c.l.b16 %v2745
    %v2831 = vunpack.c.h.b16 %v2745
    %v2832 = vunpack.c.l.b16 %v2746
    %v2833 = vunpack.c.l.b16 %v2747
    %v2834 = vunpack.c.h.b16 %v2747
    %v2835 = vunpack.c.l.b16 %v2748
    %v2836 = vunpack.c.l.b16 %v2749
    %v2837 = vunpack.c.h.b16 %v2749
    %v2838 = vunpack.c.l.b16 %v2750
    %v2839 = vpack.c.b16 %v2794, %v2791
    %v2840 = vpack.c.b16 %v2795, %v2792
    %v2841 = vpack.c.b16 %v2796, %v2793
    %v2842 = vpack.c.b16 %v2800, %v2797
    %v2843 = vpack.c.b16 %v2801, %v2798
    %v2844 = vpack.c.b16 %v2802, %v2799
    %v2845 = vpack.c.b16 %v2806, %v2803
    %v2846 = vpack.c.b16 %v2807, %v2804
    %v2847 = vpack.c.b16 %v2808, %v2805
    %v2848 = vpack.c.b16 %v2812, %v2809
    %v2849 = vpack.c.b16 %v2813, %v2810
    %v2850 = vpack.c.b16 %v2814, %v2811
    %v2851 = vpack.c.b16 %v2818, %v2815
    %v2852 = vpack.c.b16 %v2819, %v2816
    %v2853 = vpack.c.b16 %v2820, %v2817
    %v2854 = vpack.c.b16 %v2824, %v2821
    %v2855 = vpack.c.b16 %v2825, %v2822
    %v2856 = vpack.c.b16 %v2826, %v2823
    %v2857 = vpack.c.b16 %v2830, %v2827
    %v2858 = vpack.c.b16 %v2831, %v2828
    %v2859 = vpack.c.b16 %v2832, %v2829
    %v2860 = vpack.c.b16 %v2836, %v2833
    %v2861 = vpack.c.b16 %v2837, %v2834
    %v2862 = vpack.c.b16 %v2838, %v2835
    %2887 = vmatpush.bf16.msra.mxu0 %v2860
    %2888 = vmatpush.bf16.msra.mxu0 %v2857
    %2889 = vmatpush.bf16.msra.mxu0 %v2854
    %2890 = vmatpush.bf16.msra.mxu0 %v2851
    %2891 = vmatpush.bf16.msra.mxu0 %v2848
    %2892 = vmatpush.bf16.msra.mxu0 %v2845
    %2893 = vmatpush.bf16.msra.mxu0 %v2842
    %2894 = vmatpush.bf16.msra.mxu0 %v2839
    %2895 = vmatmul.bf16.gmra.mxu0 %v2717
    %v2896 = vpop.f32.mrf.mxu0
    %v2897 = vadd.f32 %v2753, %v2896
    %v2898 = vpop.f32.mrf.mxu0
    %2899 = vdwg.mxu0
    %2900 = vmatpush.bf16.msra.mxu0 %v2861
    %2901 = vmatpush.bf16.msra.mxu0 %v2858
    %2902 = vmatpush.bf16.msra.mxu0 %v2855
    %2903 = vmatpush.bf16.msra.mxu0 %v2852
    %2904 = vmatpush.bf16.msra.mxu0 %v2849
    %2905 = vmatpush.bf16.msra.mxu0 %v2846
    %2906 = vmatpush.bf16.msra.mxu0 %v2843
    %2907 = vmatpush.bf16.msra.mxu0 %v2840
    %2908 = vmatmul.bf16.gmra.mxu0 %v2717
    %v2909 = vpop.f32.mrf.mxu0
    %v2910 = vadd.f32 %v2754, %v2909
    %v2911 = vpop.f32.mrf.mxu0
    %2912 = vdwg.mxu0
    %2913 = vmatpush.bf16.msra.mxu0 %v2862
    %2914 = vmatpush.bf16.msra.mxu0 %v2859
    %2915 = vmatpush.bf16.msra.mxu0 %v2856
    %2916 = vmatpush.bf16.msra.mxu0 %v2853
    %2917 = vmatpush.bf16.msra.mxu0 %v2850
    %2918 = vmatpush.bf16.msra.mxu0 %v2847
    %2919 = vmatpush.bf16.msra.mxu0 %v2844
    %2920 = vmatpush.bf16.msra.mxu0 %v2841
    %2921 = vmatmul.bf16.gmra.mxu0 %v2717
    %v2922 = vpop.f32.mrf.mxu0
    %v2923 = vadd.f32 %v2755, %v2922
    %v2924 = vpop.f32.mrf.mxu0
    %2925 = vdwg.mxu0
    %v2926 = vadd.f32 %v602, %v2897
    %v2927 = vxor.u32 %v2926, 2147483648
    %v2928 = vmul.f32 %v2927, 1.442695
    %v2929 = vpow.pop %v2928
    %v2930 = vadd.f32 %v2929, 1.0
    %v2931 = vrcp.pop %v2930
    %v2932 = vmul.f32 %v2930, %v2931
    %v2933 = vsub.f32 1.0, %v2932
    %v2934 = vmul.f32 %v2931, %v2933
    %v2935 = vadd.f32 %v2931, %v2934
    %vm2936 = vweird.f32 %v2930
    %vm2937 = vweird.f32 %v2931
    %vm2938 = vmor %vm2936, %vm2937
    %v2939 = vsel %vm2938, %v2931, %v2935
    %v2940 = vand.u32 2147483647, %v2930
    %vm2941 = vcmp.eq.f32.partialorder %v2940, 8.507059e+37
    %v2942 = vand.u32 %v2930, 2147483648
    %v2943 = vor.u32 1.1754944e-38, %v2942
    %v2944 = vsel %vm2941, %v2943, %v2939
    %v2945 = vmul.f32 1.0, %v2944
    %v2946 = vadd.f32 %v635, %v2910
    %v2947 = vxor.u32 %v2946, 2147483648
    %v2948 = vmul.f32 %v2947, 1.442695
    %v2949 = vpow.pop %v2948
    %v2950 = vadd.f32 %v2949, 1.0
    %v2951 = vrcp.pop %v2950
    %v2952 = vmul.f32 %v2950, %v2951
    %v2953 = vsub.f32 1.0, %v2952
    %v2954 = vmul.f32 %v2951, %v2953
    %v2955 = vadd.f32 %v2951, %v2954
    %vm2956 = vweird.f32 %v2950
    %vm2957 = vweird.f32 %v2951
    %vm2958 = vmor %vm2956, %vm2957
    %v2959 = vsel %vm2958, %v2951, %v2955
    %v2960 = vand.u32 2147483647, %v2950
    %vm2961 = vcmp.eq.f32.partialorder %v2960, 8.507059e+37
    %v2962 = vand.u32 %v2950, 2147483648
    %v2963 = vor.u32 1.1754944e-38, %v2962
    %v2964 = vsel %vm2961, %v2963, %v2959
    %v2965 = vmul.f32 1.0, %v2964
    %v2966 = vmul.f32 %v2945, %v2923
    %v2967 = vadd.f32 %v668, %v2966
    %v2968 = vtanh.pop %v2967
    %v2969 = vsub.f32 1.0, %v2965
    %v2970 = vmul.f32 %v2969, %v2968
    %v2971 = vmul.f32 %v2965, %v2716
    %v2972 = vadd.f32 %v2970, %v2971
    %v2973 = vpack.c.bf16 %v2972, %v2972
    %2974 = vst [vmem:[#allocation20 + $0x20] sm:$0xf] %v2973
    // Predicated region
    $region90: #{tpu_custom_call.1} parent=1 // pred_check
      _
    $region91: #{tpu_custom_call.1} parent=1 // pred_check_branch
      %2976 = sbr.rel (0) target = $region93
    $region92: #{tpu_custom_call.1} parent=1 // pred_region
      %2978 = vsyncadd [#allocation5], 0
      %s2979 = sshll.u32 [#allocation20], 4
      %s2980 = int_to_ptr.vmem [resolvable:$true] %s2979
      %s2981 = sshll.u32 %s12, 4
      %s2982 = int_to_ptr.hbm [resolvable:$true] %s2981
      %2987 = dma.vmem_to_hbm [thread:$0]  %s2980, 576, %s2982, [#allocation5], 64, 64, 4
    $region93: #{tpu_custom_call.1} parent=1 // pred_fallthru
      _
    // Predicated region
    $region94: #{tpu_custom_call.1} parent=1 // pred_check
      _
    $region95: #{tpu_custom_call.1} parent=1 // pred_check_branch
      %2989 = sbr.rel (0) target = $region97
    $region96: #{tpu_custom_call.1} parent=1 // pred_region
      %2991 = dma.done [#allocation5], 576
    $region97: #{tpu_custom_call.1} parent=1 // pred_fallthru
      _
    %2992 = vsyncpa [#allocation4], 1
    %2993 = vsyncpa [#allocation7], 1
    %2994 = vsyncpa [#allocation10], 1
    %2995 = vsyncpa [#allocation13], 1
    %2996 = vsyncpa [#allocation16], 1
    %2997 = vsyncpa [#allocation19], 1
    %2998 = vsyncpa [#allocation5], 1

</llo_original>
